<compile_context>
chip_gen: v7x
topology: tpu7x:2x2x1
jax: 0.10.0
libtpu: 0.0.40
codegen_flags: <defaults>
</compile_context>

<pallas_src>
import math

import jax
import jax.numpy as jnp
from jax.experimental import pallas as pl
from jax.experimental.pallas import tpu as pltpu


# ----------------------------------------------------------------------------
# Fused kernel: conv+pos (layer 0) -> encoder layer l -> last-token fc (layer L-1)
# ----------------------------------------------------------------------------
def fused_robustlog_kernel(
        zcol_ref, pos_ref, convw_ref, convb_ref,
        wqkv_ref, bqkv_ref, wo_ref, w1_ref, b1_ref, w2_ref, vecs_ref,
        fcw_ref, fcb_ref,
        o_ref, x_scr):
    Bt, S, Kc = zcol_ref.shape
    H = pos_ref.shape[-1]
    M = Bt * S
    l = pl.program_id(1)
    last_l = pl.num_programs(1) - 1
    scale = 1.0 / math.sqrt(H)

    def mm(a_bf16, w):
        # bf16 x bf16 -> f32 MXU matmul, contracting (1, 0); weights are
        # pre-transposed on the host so no in-kernel relayout.
        return jax.lax.dot_general(
            a_bf16, w.astype(jnp.bfloat16),
            (((1,), (0,)), ((), ())),
            preferred_element_type=jnp.float32)

    def layernorm(y, gamma, beta):
        mu = jnp.mean(y, axis=-1, keepdims=True)
        var = jnp.mean(jnp.square(y - mu), axis=-1, keepdims=True)
        return (y - mu) * jax.lax.rsqrt(var + 1e-5) * gamma + beta

    # packed per-layer vectors: rows = [bo, g1, be1, b2, g2, be2]
    bo, g1, be1 = vecs_ref[0:1, :], vecs_ref[1:2, :], vecs_ref[2:3, :]
    b2, g2, be2 = vecs_ref[3:4, :], vecs_ref[4:5, :], vecs_ref[5:6, :]

    # -- layer 0 only: causal conv (one im2col matmul) + tanh + positional add --
    @pl.when(l == 0)
    def _init():
        zcol = zcol_ref[...].reshape(M, Kc).astype(jnp.bfloat16)
        conv = mm(zcol, convw_ref[...]) + convb_ref[...]              # (M, H)
        x_scr[...] = jnp.tanh(conv) + pos_ref[...].reshape(M, H)

    x = x_scr[...]                                                    # (M, H) f32
    x_b = x.astype(jnp.bfloat16)                                      # one cast/layer

    # ---- self-attention over the whole batch tile (single head, no mask) ----
    q = (mm(x_b, wqkv_ref[0]) + bqkv_ref[0:1, :]).reshape(Bt, S, H)
    k = (mm(x_b, wqkv_ref[1]) + bqkv_ref[1:2, :]).reshape(Bt, S, H)
    v = (mm(x_b, wqkv_ref[2]) + bqkv_ref[2:3, :]).reshape(Bt, S, H)

    s = jnp.einsum('bqd,bkd->bqk', q.astype(jnp.bfloat16), k.astype(jnp.bfloat16),
                   preferred_element_type=jnp.float32) * scale        # (Bt, S, S)
    m = jnp.max(s, axis=-1, keepdims=True)
    e = jnp.exp(s - m)
    p = e * pl.reciprocal(jnp.sum(e, axis=-1, keepdims=True), approx=True)
    a = jnp.einsum('bqk,bkd->bqd', p.astype(jnp.bfloat16), v.astype(jnp.bfloat16),
                   preferred_element_type=jnp.float32).reshape(M, H)
    a = mm(a.astype(jnp.bfloat16), wo_ref[...]) + bo

    # ---- residual + LayerNorm 1 (post-norm, eps = 1e-5) ----
    y = layernorm(x + a, g1, be1)                                     # (M, H)

    # ---- all but the last layer: FFN on every token, activation stays in VMEM --
    @pl.when(l < last_l)
    def _full():
        h = jnp.maximum(mm(y.astype(jnp.bfloat16), w1_ref[...]) + b1_ref[...], 0.0)
        h2 = mm(h.astype(jnp.bfloat16), w2_ref[...]) + b2
        x_scr[...] = layernorm(y + h2, g2, be2)

    # ---- last layer: only the final token per batch element feeds fc, so the
    # (dominant) FFN + LN2 + fc run on just Bt rows.  Rows are compacted with an
    # exact one-hot f32 matmul (avoids non-tile-aligned relayouts).
    @pl.when(l == last_l)
    def _last():
        rows = jax.lax.broadcasted_iota(jnp.int32, (Bt, M), 0)
        cols = jax.lax.broadcasted_iota(jnp.int32, (Bt, M), 1)
        sel = jnp.where(cols == rows * S + (S - 1), 1.0, 0.0)         # (Bt, M) f32
        y_last = jax.lax.dot_general(sel, y, (((1,), (0,)), ((), ())),
                                     preferred_element_type=jnp.float32)  # (Bt, H)
        h = jnp.maximum(mm(y_last.astype(jnp.bfloat16), w1_ref[...]) + b1_ref[...], 0.0)
        h2 = mm(h.astype(jnp.bfloat16), w2_ref[...]) + b2
        out = layernorm(y_last + h2, g2, be2)                          # (Bt, H)
        o_ref[...] = (mm(out.astype(jnp.bfloat16), fcw_ref[...])
                      + fcb_ref[...]).astype(o_ref.dtype)


# ----------------------------------------------------------------------------
# Wrapper
# ----------------------------------------------------------------------------
def robustlog_forward(z, params, num_batch_tiles=None):
    # z: (B, S, 1) float32 (values are log-key indices, as in logdeep)
    B, S, _ = z.shape
    K, H = params['conv_w'].shape
    L = params['wqkv'].shape[0]
    FF = params['w1'].shape[2]
    NK = params['fc_w'].shape[1]
    assert S % 8 == 0, "seq length must be a multiple of 8 (sublane tile) for the folded batch layout"

    # Two parallel batch tiles only when each still fills the MXU (>=256 rows):
    # pays off on v7x's 2 TensorCores; otherwise one block per chip so weights
    # are streamed from HBM exactly once.
    if num_batch_tiles is None:
        num_batch_tiles = 2 if (B % 2 == 0 and (B // 2) * S >= 256) else 1
    nbt = num_batch_tiles
    assert B % nbt == 0
    Bt = B // nbt

    # Host-side glue: im2col for the causal conv + positional-embedding gather.
    # TODO(synk): embedding-table gather kept outside the Pallas kernel (no hot matmul).
    zseq = z[:, :, 0]                                        # (B, S)
    zpad = jnp.pad(zseq, ((0, 0), (K - 1, 0)))               # causal left pad
    zcol = jnp.stack([zpad[:, k:k + S] for k in range(K)], axis=-1)   # (B, S, K)
    idx = zseq.astype(jnp.int32)
    pos = jnp.take(params['pos_emb'], idx, axis=0)           # (B, S, H)

    # Lane-dense fc output: pad num_keys up to a multiple of 128.
    NKp = ((NK + 127) // 128) * 128
    fc_w = jnp.pad(params['fc_w'], ((0, 0), (0, NKp - NK)))
    fc_b = jnp.pad(params['fc_b'], ((0, 0), (0, NKp - NK)))

    per_bt = lambda bt, l: (bt, 0, 0)
    per_layer3 = lambda bt, l: (l, 0, 0)
    per_layer4 = lambda bt, l: (l, 0, 0, 0)
    shared2 = lambda bt, l: (0, 0)

    in_specs = [
        pl.BlockSpec((Bt, S, K), per_bt),           # zcol
        pl.BlockSpec((Bt, S, H), per_bt),           # pos
        pl.BlockSpec((K, H), shared2),              # conv_w
        pl.BlockSpec((1, H), shared2),              # conv_b
        pl.BlockSpec((None, 3, H, H), per_layer4),  # wqkv (packed q,k,v)
        pl.BlockSpec((None, 3, H), per_layer3),     # bqkv
        pl.BlockSpec((None, H, H), per_layer3),     # wo
        pl.BlockSpec((None, H, FF), per_layer3),    # w1
        pl.BlockSpec((None, 1, FF), per_layer3),    # b1
        pl.BlockSpec((None, FF, H), per_layer3),    # w2
        pl.BlockSpec((None, 6, H), per_layer3),     # vecs (bo,g1,be1,b2,g2,be2)
        pl.BlockSpec((H, NKp), shared2),            # fc_w (lane padded)
        pl.BlockSpec((1, NKp), shared2),            # fc_b (lane padded)
    ]
    out_specs = pl.BlockSpec((None, Bt, NKp), per_bt)

    args = (zcol, pos, params['conv_w'], params['conv_b'],
            params['wqkv'], params['bqkv'], params['wo'],
            params['w1'], params['b1'], params['w2'], params['vecs'],
            fc_w, fc_b)

    # Advisory cost estimate (weights are streamed once per batch *tile*).
    M = B * S
    flops = int(
        2 * M * K * H
        + L * (6 * M * H * H + 4 * B * S * S * H + 2 * M * H * H)   # qkv + attn + wo
        + max(L - 1, 0) * 4 * M * H * FF                            # FFN, full seq
        + 4 * B * H * FF                                            # FFN, last tokens
        + 2 * B * M * H                                             # row compaction
        + 2 * B * H * NKp)                                          # fc
    transcendentals = int(M * H + L * B * S * S + B * S)
    weight_bytes = sum(int(a.size) * a.dtype.itemsize for a in args[2:])
    act_bytes = int(zcol.size * 4 + pos.size * 4 + nbt * Bt * NKp * 4)
    bytes_accessed = int(nbt * weight_bytes + act_bytes)

    logits = pl.pallas_call(
        fused_robustlog_kernel,
        out_shape=jax.ShapeDtypeStruct((nbt, Bt, NKp), jnp.float32),
        grid_spec=pltpu.PrefetchScalarGridSpec(
            num_scalar_prefetch=0,
            grid=(nbt, L),                       # layer axis innermost (carried x_scr)
            in_specs=in_specs,
            out_specs=out_specs,
            scratch_shapes=[pltpu.VMEM((Bt * S, H), jnp.float32)],
        ),
        compiler_params=pltpu.CompilerParams(
            dimension_semantics=("parallel", "arbitrary"),
            vmem_limit_bytes=32 * 1024 * 1024),   # safe on v5e(16 default)/v6e/v7x(64 phys)
        cost_estimate=pl.CostEstimate(
            flops=flops, transcendentals=transcendentals,
            bytes_accessed=bytes_accessed),
    )(*args)
    return logits.reshape(B, NKp)[:, :NK]         # (B, num_keys)


# ----------------------------------------------------------------------------
# Deterministic parameter construction.
# Layouts (relative to PyTorch):
#   conv_w = conv.weight (H,1,K)          -> (K,H)            bf16
#   wqkv   = in_proj_weight rows, each .T -> (L,3,H,H)        bf16
#   bqkv   = in_proj_bias split           -> (L,3,H)          f32
#   wo     = out_proj.weight.T            -> (L,H,H)          bf16
#   w1     = linear1.weight.T             -> (L,H,FF)         bf16
#   w2     = linear2.weight.T             -> (L,FF,H)         bf16
#   vecs   = [bo, ln1.w, ln1.b, b2, ln2.w, ln2.b]  -> (L,6,H) f32
#   fc_w   = fc.weight.T                  -> (H,NK)           bf16
# ----------------------------------------------------------------------------
def init_params(key, input_size, hidden_size, num_layers, num_keys,
                ff_dim=2048, kernel_size=9):
    assert input_size == 1, "forward() squeezes dim=1, so input_size must be 1"
    H, FF, K, L, NK = hidden_size, ff_dim, kernel_size, num_layers, num_keys
    s = 0.05
    keys = jax.random.split(key, 17)

    def w(k, shape, dtype=jnp.bfloat16):
        return (s * jax.random.normal(k, shape, jnp.float32)).astype(dtype)

    wq, wk, wv = w(keys[3], (L, H, H)), w(keys[4], (L, H, H)), w(keys[5], (L, H, H))
    bq = w(keys[6], (L, H), jnp.float32)
    bk = w(keys[7], (L, H), jnp.float32)
    bv = w(keys[8], (L, H), jnp.float32)
    bo = w(keys[10], (L, H), jnp.float32)
    b2 = w(keys[11], (L, H), jnp.float32)
    ones = jnp.ones((L, H), jnp.float32)
    zeros = jnp.zeros((L, H), jnp.float32)

    return {
        'conv_w': w(keys[0], (K, H)),
        'conv_b': w(keys[1], (1, H), jnp.float32),
        'pos_emb': w(keys[2], (2 * H, H), jnp.float32),
        'wqkv': jnp.stack([wq, wk, wv], axis=1),                 # (L,3,H,H) bf16
        'bqkv': jnp.stack([bq, bk, bv], axis=1),                 # (L,3,H)   f32
        'wo': w(keys[9], (L, H, H)),
        'w1': w(keys[12], (L, H, FF)),
        'b1': w(keys[13], (L, 1, FF), jnp.float32),
        'w2': w(keys[14], (L, FF, H)),
        'vecs': jnp.stack([bo, ones, zeros, b2, ones, zeros], axis=1),  # (L,6,H)
        'fc_w': w(keys[15], (H, NK)),
        'fc_b': w(keys[16], (1, NK), jnp.float32),
    }


if __name__ == "__main__":
    B, S = 2, 8
    input_size, hidden_size, num_layers, num_keys = 1, 32, 2, 28

    key = jax.random.PRNGKey(0)
    k_param, k_data = jax.random.split(key)
    params = init_params(k_param, input_size, hidden_size, num_layers, num_keys)

    # z values double as embedding indices, so they must lie in [0, 2*H)
    z = jax.random.randint(k_data, (B, S, input_size), 0, 2 * hidden_size).astype(jnp.float32)

    fwd = jax.jit(lambda zz: robustlog_forward(zz, params))
    out = fwd(z)
    jax.block_until_ready(out)

    assert out.shape == (B, num_keys), out.shape
    assert bool(jnp.all(jnp.isfinite(out)))
    print("KERNEL_OK")
</pallas_src>

<mosaic_0001>
module attributes {stable_mosaic.version = 11 : i64} {
  func.func @fused_robustlog_kernel(%arg0: i32, %arg1: i32, %arg2: memref<2x8x9xf32, #tpu.memory_space<vmem>>, %arg3: memref<2x8x32xf32, #tpu.memory_space<vmem>>, %arg4: memref<9x32xbf16, #tpu.memory_space<vmem>>, %arg5: memref<1x32xf32, #tpu.memory_space<vmem>>, %arg6: memref<1x3x32x32xbf16, #tpu.memory_space<vmem>>, %arg7: memref<1x3x32xf32, #tpu.memory_space<vmem>>, %arg8: memref<1x32x32xbf16, #tpu.memory_space<vmem>>, %arg9: memref<1x32x2048xbf16, #tpu.memory_space<vmem>>, %arg10: memref<1x1x2048xf32, #tpu.memory_space<vmem>>, %arg11: memref<1x2048x32xbf16, #tpu.memory_space<vmem>>, %arg12: memref<1x6x32xf32, #tpu.memory_space<vmem>>, %arg13: memref<32x128xbf16, #tpu.memory_space<vmem>>, %arg14: memref<1x128xf32, #tpu.memory_space<vmem>>, %arg15: memref<1x2x128xf32, #tpu.memory_space<vmem>>, %arg16: memref<16x32xf32, #tpu.memory_space<vmem>>) attributes {dimension_semantics = [#tpu.dimension_semantics<parallel>, #tpu.dimension_semantics<arbitrary>], iteration_bounds = array<i64: 1, 2>, scalar_prefetch = 0 : i64, scratch_operands = 1 : i64, tpu.core_type = #tpu.core_type<tc>, window_params = [{transform_indices = @transform_0, window_bounds = array<i64: 2, 8, 9>}, {transform_indices = @transform_1, window_bounds = array<i64: 2, 8, 32>}, {pipeline_mode = #tpu.pipeline_mode<synchronous>, transform_indices = @transform_2, window_bounds = array<i64: 9, 32>}, {pipeline_mode = #tpu.pipeline_mode<synchronous>, transform_indices = @transform_3, window_bounds = array<i64: 1, 32>}, {transform_indices = @transform_4, window_bounds = array<i64: 1, 3, 32, 32>}, {transform_indices = @transform_5, window_bounds = array<i64: 1, 3, 32>}, {transform_indices = @transform_6, window_bounds = array<i64: 1, 32, 32>}, {transform_indices = @transform_7, window_bounds = array<i64: 1, 32, 2048>}, {transform_indices = @transform_8, window_bounds = array<i64: 1, 1, 2048>}, {transform_indices = @transform_9, window_bounds = array<i64: 1, 2048, 32>}, {transform_indices = @transform_10, window_bounds = array<i64: 1, 6, 32>}, {pipeline_mode = #tpu.pipeline_mode<synchronous>, transform_indices = @transform_11, window_bounds = array<i64: 32, 128>}, {pipeline_mode = #tpu.pipeline_mode<synchronous>, transform_indices = @transform_12, window_bounds = array<i64: 1, 128>}, {transform_indices = @transform_13, window_bounds = array<i64: 1, 2, 128>}]} {
    %c0 = arith.constant 0 : index
    %c0_0 = arith.constant 0 : index
    %c0_1 = arith.constant 0 : index
    %0 = vector.load %arg12[%c0, %c0_0, %c0_1] : memref<1x6x32xf32, #tpu.memory_space<vmem>>, vector<1x1x32xf32>
    %1 = vector.shape_cast %0 : vector<1x1x32xf32> to vector<1x32xf32>
    %c0_2 = arith.constant 0 : index
    %c1 = arith.constant 1 : index
    %c0_3 = arith.constant 0 : index
    %2 = vector.load %arg12[%c0_2, %c1, %c0_3] : memref<1x6x32xf32, #tpu.memory_space<vmem>>, vector<1x1x32xf32>
    %3 = vector.shape_cast %2 : vector<1x1x32xf32> to vector<1x32xf32>
    %c0_4 = arith.constant 0 : index
    %c2 = arith.constant 2 : index
    %c0_5 = arith.constant 0 : index
    %4 = vector.load %arg12[%c0_4, %c2, %c0_5] : memref<1x6x32xf32, #tpu.memory_space<vmem>>, vector<1x1x32xf32>
    %5 = vector.shape_cast %4 : vector<1x1x32xf32> to vector<1x32xf32>
    %c0_6 = arith.constant 0 : index
    %c3 = arith.constant 3 : index
    %c0_7 = arith.constant 0 : index
    %6 = vector.load %arg12[%c0_6, %c3, %c0_7] : memref<1x6x32xf32, #tpu.memory_space<vmem>>, vector<1x1x32xf32>
    %7 = vector.shape_cast %6 : vector<1x1x32xf32> to vector<1x32xf32>
    %c0_8 = arith.constant 0 : index
    %c4 = arith.constant 4 : index
    %c0_9 = arith.constant 0 : index
    %8 = vector.load %arg12[%c0_8, %c4, %c0_9] : memref<1x6x32xf32, #tpu.memory_space<vmem>>, vector<1x1x32xf32>
    %9 = vector.shape_cast %8 : vector<1x1x32xf32> to vector<1x32xf32>
    %c0_10 = arith.constant 0 : index
    %c5 = arith.constant 5 : index
    %c0_11 = arith.constant 0 : index
    %10 = vector.load %arg12[%c0_10, %c5, %c0_11] : memref<1x6x32xf32, #tpu.memory_space<vmem>>, vector<1x1x32xf32>
    %11 = vector.shape_cast %10 : vector<1x1x32xf32> to vector<1x32xf32>
    %c0_i32 = arith.constant 0 : i32
    %12 = arith.cmpi eq, %arg1, %c0_i32 : i32
    %13 = arith.extui %12 : i1 to i32
    %c0_i32_12 = arith.constant 0 : i32
    %14 = arith.cmpi ne, %13, %c0_i32_12 : i32
    scf.if %14 {
      %c0_55 = arith.constant 0 : index
      %c0_56 = arith.constant 0 : index
      %c0_57 = arith.constant 0 : index
      %95 = vector.load %arg2[%c0_55, %c0_56, %c0_57] : memref<2x8x9xf32, #tpu.memory_space<vmem>>, vector<2x8x9xf32>
      %96 = vector.shape_cast %95 : vector<2x8x9xf32> to vector<16x9xf32>
      %97 = arith.truncf %96 : vector<16x9xf32> to vector<16x9xbf16>
      %c0_58 = arith.constant 0 : index
      %c0_59 = arith.constant 0 : index
      %98 = vector.load %arg4[%c0_58, %c0_59] : memref<9x32xbf16, #tpu.memory_space<vmem>>, vector<9x32xbf16>
      %cst_60 = arith.constant dense<0.000000e+00> : vector<16x32xf32>
      %99 = tpu.matmul %97, %98, %cst_60 {dimension_numbers = #tpu.dot_dimension_numbers<[1], [0], [0], [1], [0, 0, 1, 1], [], []>} : vector<16x9xbf16>, vector<9x32xbf16>, vector<16x32xf32> -> vector<16x32xf32>
      %c0_61 = arith.constant 0 : index
      %c0_62 = arith.constant 0 : index
      %100 = vector.load %arg5[%c0_61, %c0_62] : memref<1x32xf32, #tpu.memory_space<vmem>>, vector<1x32xf32>
      %101 = vector.broadcast %100 : vector<1x32xf32> to vector<16x32xf32>
      %102 = arith.addf %99, %101 : vector<16x32xf32>
      %103 = math.tanh %102 : vector<16x32xf32>
      %c0_63 = arith.constant 0 : index
      %c0_64 = arith.constant 0 : index
      %c0_65 = arith.constant 0 : index
      %104 = vector.load %arg3[%c0_63, %c0_64, %c0_65] : memref<2x8x32xf32, #tpu.memory_space<vmem>>, vector<2x8x32xf32>
      %105 = vector.shape_cast %104 : vector<2x8x32xf32> to vector<16x32xf32>
      %106 = arith.addf %103, %105 : vector<16x32xf32>
      %c0_66 = arith.constant 0 : index
      %c0_67 = arith.constant 0 : index
      %107 = vector.load %arg16[%c0_66, %c0_67] : memref<16x32xf32, #tpu.memory_space<vmem>>, vector<16x32xf32>
      tpu.vector_store %arg16[%c0_66, %c0_67], %106 {strides = array<i32>} : memref<16x32xf32, #tpu.memory_space<vmem>>, vector<16x32xf32>,
    } else {
    }
    %c0_13 = arith.constant 0 : index
    %c0_14 = arith.constant 0 : index
    %15 = vector.load %arg16[%c0_13, %c0_14] : memref<16x32xf32, #tpu.memory_space<vmem>>, vector<16x32xf32>
    %16 = arith.truncf %15 : vector<16x32xf32> to vector<16x32xbf16>
    %c0_15 = arith.constant 0 : index
    %c0_16 = arith.constant 0 : index
    %c0_17 = arith.constant 0 : index
    %c0_18 = arith.constant 0 : index
    %17 = vector.load %arg6[%c0_15, %c0_16, %c0_17, %c0_18] : memref<1x3x32x32xbf16, #tpu.memory_space<vmem>>, vector<1x1x32x32xbf16>
    %18 = vector.shape_cast %17 : vector<1x1x32x32xbf16> to vector<32x32xbf16>
    %cst = arith.constant dense<0.000000e+00> : vector<16x32xf32>
    %19 = tpu.matmul %16, %18, %cst {dimension_numbers = #tpu.dot_dimension_numbers<[1], [0], [0], [1], [0, 0, 1, 1], [], []>} : vector<16x32xbf16>, vector<32x32xbf16>, vector<16x32xf32> -> vector<16x32xf32>
    %c0_19 = arith.constant 0 : index
    %c0_20 = arith.constant 0 : index
    %c0_21 = arith.constant 0 : index
    %20 = vector.load %arg7[%c0_19, %c0_20, %c0_21] : memref<1x3x32xf32, #tpu.memory_space<vmem>>, vector<1x1x32xf32>
    %21 = vector.shape_cast %20 : vector<1x1x32xf32> to vector<1x32xf32>
    %22 = vector.broadcast %21 : vector<1x32xf32> to vector<16x32xf32>
    %23 = arith.addf %19, %22 : vector<16x32xf32>
    %24 = vector.shape_cast %23 : vector<16x32xf32> to vector<2x8x32xf32>
    %c0_22 = arith.constant 0 : index
    %c1_23 = arith.constant 1 : index
    %c0_24 = arith.constant 0 : index
    %c0_25 = arith.constant 0 : index
    %25 = vector.load %arg6[%c0_22, %c1_23, %c0_24, %c0_25] : memref<1x3x32x32xbf16, #tpu.memory_space<vmem>>, vector<1x1x32x32xbf16>
    %26 = vector.shape_cast %25 : vector<1x1x32x32xbf16> to vector<32x32xbf16>
    %cst_26 = arith.constant dense<0.000000e+00> : vector<16x32xf32>
    %27 = tpu.matmul %16, %26, %cst_26 {dimension_numbers = #tpu.dot_dimension_numbers<[1], [0], [0], [1], [0, 0, 1, 1], [], []>} : vector<16x32xbf16>, vector<32x32xbf16>, vector<16x32xf32> -> vector<16x32xf32>
    %c0_27 = arith.constant 0 : index
    %c1_28 = arith.constant 1 : index
    %c0_29 = arith.constant 0 : index
    %28 = vector.load %arg7[%c0_27, %c1_28, %c0_29] : memref<1x3x32xf32, #tpu.memory_space<vmem>>, vector<1x1x32xf32>
    %29 = vector.shape_cast %28 : vector<1x1x32xf32> to vector<1x32xf32>
    %30 = vector.broadcast %29 : vector<1x32xf32> to vector<16x32xf32>
    %31 = arith.addf %27, %30 : vector<16x32xf32>
    %32 = vector.shape_cast %31 : vector<16x32xf32> to vector<2x8x32xf32>
    %c0_30 = arith.constant 0 : index
    %c2_31 = arith.constant 2 : index
    %c0_32 = arith.constant 0 : index
    %c0_33 = arith.constant 0 : index
    %33 = vector.load %arg6[%c0_30, %c2_31, %c0_32, %c0_33] : memref<1x3x32x32xbf16, #tpu.memory_space<vmem>>, vector<1x1x32x32xbf16>
    %34 = vector.shape_cast %33 : vector<1x1x32x32xbf16> to vector<32x32xbf16>
    %cst_34 = arith.constant dense<0.000000e+00> : vector<16x32xf32>
    %35 = tpu.matmul %16, %34, %cst_34 {dimension_numbers = #tpu.dot_dimension_numbers<[1], [0], [0], [1], [0, 0, 1, 1], [], []>} : vector<16x32xbf16>, vector<32x32xbf16>, vector<16x32xf32> -> vector<16x32xf32>
    %c0_35 = arith.constant 0 : index
    %c2_36 = arith.constant 2 : index
    %c0_37 = arith.constant 0 : index
    %36 = vector.load %arg7[%c0_35, %c2_36, %c0_37] : memref<1x3x32xf32, #tpu.memory_space<vmem>>, vector<1x1x32xf32>
    %37 = vector.shape_cast %36 : vector<1x1x32xf32> to vector<1x32xf32>
    %38 = vector.broadcast %37 : vector<1x32xf32> to vector<16x32xf32>
    %39 = arith.addf %35, %38 : vector<16x32xf32>
    %40 = vector.shape_cast %39 : vector<16x32xf32> to vector<2x8x32xf32>
    %41 = arith.truncf %24 : vector<2x8x32xf32> to vector<2x8x32xbf16>
    %42 = arith.truncf %32 : vector<2x8x32xf32> to vector<2x8x32xbf16>
    "tpu.trace_start"() <{level = 10 : i32, message = "bqd,bkd->bqk"}> : () -> ()
    %cst_38 = arith.constant dense<0.000000e+00> : vector<2x8x8xf32>
    %43 = tpu.matmul %41, %42, %cst_38 {dimension_numbers = #tpu.dot_dimension_numbers<[2], [2], [1], [1], [0, 0, 0, 1, 1, 1], [0], [0]>} : vector<2x8x32xbf16>, vector<2x8x32xbf16>, vector<2x8x8xf32> -> vector<2x8x8xf32>
    "tpu.trace_stop"() : () -> ()
    %cst_39 = arith.constant 0.176776692 : f32
    %44 = vector.broadcast %cst_39 : f32 to vector<2x8x8xf32>
    %45 = arith.mulf %43, %44 : vector<2x8x8xf32>
    %cst_40 = arith.constant dense<0xFF800000> : vector<2x8xf32>
    %46 = vector.multi_reduction <maximumf>, %45, %cst_40 [2] : vector<2x8x8xf32> to vector<2x8xf32>
    %47 = vector.shape_cast %46 : vector<2x8xf32> to vector<2x8x1xf32>
    %48 = vector.broadcast %47 : vector<2x8x1xf32> to vector<2x8x8xf32>
    %49 = arith.subf %45, %48 : vector<2x8x8xf32>
    %50 = math.exp %49 : vector<2x8x8xf32>
    %cst_41 = arith.constant dense<0.000000e+00> : vector<2x8xf32>
    %51 = vector.multi_reduction <add>, %50, %cst_41 [2] : vector<2x8x8xf32> to vector<2x8xf32>
    %52 = vector.shape_cast %51 : vector<2x8xf32> to vector<2x8x1xf32>
    %53 = tpu.reciprocal %52 {approx = true} : vector<2x8x1xf32> -> vector<2x8x1xf32>
    %54 = vector.broadcast %53 : vector<2x8x1xf32> to vector<2x8x8xf32>
    %55 = arith.mulf %50, %54 : vector<2x8x8xf32>
    %56 = arith.truncf %55 : vector<2x8x8xf32> to vector<2x8x8xbf16>
    %57 = arith.truncf %40 : vector<2x8x32xf32> to vector<2x8x32xbf16>
    "tpu.trace_start"() <{level = 10 : i32, message = "bqk,bkd->bqd"}> : () -> ()
    %cst_42 = arith.constant dense<0.000000e+00> : vector<2x8x32xf32>
    %58 = tpu.matmul %56, %57, %cst_42 {dimension_numbers = #tpu.dot_dimension_numbers<[2], [1], [1], [2], [0, 0, 0, 1, 1, 2], [0], [0]>} : vector<2x8x8xbf16>, vector<2x8x32xbf16>, vector<2x8x32xf32> -> vector<2x8x32xf32>
    "tpu.trace_stop"() : () -> ()
    %59 = vector.shape_cast %58 : vector<2x8x32xf32> to vector<16x32xf32>
    %60 = arith.truncf %59 : vector<16x32xf32> to vector<16x32xbf16>
    %c0_43 = arith.constant 0 : index
    %c0_44 = arith.constant 0 : index
    %c0_45 = arith.constant 0 : index
    %61 = vector.load %arg8[%c0_43, %c0_44, %c0_45] : memref<1x32x32xbf16, #tpu.memory_space<vmem>>, vector<1x32x32xbf16>
    %62 = vector.shape_cast %61 : vector<1x32x32xbf16> to vector<32x32xbf16>
    %cst_46 = arith.constant dense<0.000000e+00> : vector<16x32xf32>
    %63 = tpu.matmul %60, %62, %cst_46 {dimension_numbers = #tpu.dot_dimension_numbers<[1], [0], [0], [1], [0, 0, 1, 1], [], []>} : vector<16x32xbf16>, vector<32x32xbf16>, vector<16x32xf32> -> vector<16x32xf32>
    %64 = vector.broadcast %1 : vector<1x32xf32> to vector<16x32xf32>
    %65 = arith.addf %63, %64 : vector<16x32xf32>
    %66 = arith.addf %15, %65 : vector<16x32xf32>
    %cst_47 = arith.constant dense<0.000000e+00> : vector<16xf32>
    %67 = vector.multi_reduction <add>, %66, %cst_47 [1] : vector<16x32xf32> to vector<16xf32>
    %68 = vector.shape_cast %67 : vector<16xf32> to vector<16x1xf32>
    %cst_48 = arith.constant 3.200000e+01 : f32
    %69 = vector.broadcast %cst_48 : f32 to vector<16x1xf32>
    %70 = arith.divf %68, %69 : vector<16x1xf32>
    %71 = vector.broadcast %70 : vector<16x1xf32> to vector<16x32xf32>
    %72 = arith.subf %66, %71 : vector<16x32xf32>
    %73 = arith.mulf %72, %72 : vector<16x32xf32>
    %cst_49 = arith.constant dense<0.000000e+00> : vector<16xf32>
    %74 = vector.multi_reduction <add>, %73, %cst_49 [1] : vector<16x32xf32> to vector<16xf32>
    %75 = vector.shape_cast %74 : vector<16xf32> to vector<16x1xf32>
    %cst_50 = arith.constant 3.200000e+01 : f32
    %76 = vector.broadcast %cst_50 : f32 to vector<16x1xf32>
    %77 = arith.divf %75, %76 : vector<16x1xf32>
    %78 = vector.broadcast %70 : vector<16x1xf32> to vector<16x32xf32>
    %79 = arith.subf %66, %78 : vector<16x32xf32>
    %cst_51 = arith.constant 9.99999974E-6 : f32
    %80 = vector.broadcast %cst_51 : f32 to vector<16x1xf32>
    %81 = arith.addf %77, %80 : vector<16x1xf32>
    %82 = math.rsqrt %81 : vector<16x1xf32>
    %83 = vector.broadcast %82 : vector<16x1xf32> to vector<16x32xf32>
    %84 = arith.mulf %79, %83 : vector<16x32xf32>
    %85 = vector.broadcast %3 : vector<1x32xf32> to vector<16x32xf32>
    %86 = arith.mulf %84, %85 : vector<16x32xf32>
    %87 = vector.broadcast %5 : vector<1x32xf32> to vector<16x32xf32>
    %88 = arith.addf %86, %87 : vector<16x32xf32>
    %c1_i32 = arith.constant 1 : i32
    %89 = arith.cmpi slt, %arg1, %c1_i32 : i32
    %90 = arith.extui %89 : i1 to i32
    %c0_i32_52 = arith.constant 0 : i32
    %91 = arith.cmpi ne, %90, %c0_i32_52 : i32
    scf.if %91 {
      %95 = arith.truncf %88 : vector<16x32xf32> to vector<16x32xbf16>
      %c0_55 = arith.constant 0 : index
      %c0_56 = arith.constant 0 : index
      %c0_57 = arith.constant 0 : index
      %96 = vector.load %arg9[%c0_55, %c0_56, %c0_57] : memref<1x32x2048xbf16, #tpu.memory_space<vmem>>, vector<1x32x2048xbf16>
      %97 = vector.shape_cast %96 : vector<1x32x2048xbf16> to vector<32x2048xbf16>
      %cst_58 = arith.constant dense<0.000000e+00> : vector<16x2048xf32>
      %98 = tpu.matmul %95, %97, %cst_58 {dimension_numbers = #tpu.dot_dimension_numbers<[1], [0], [0], [1], [0, 0, 1, 1], [], []>} : vector<16x32xbf16>, vector<32x2048xbf16>, vector<16x2048xf32> -> vector<16x2048xf32>
      %c0_59 = arith.constant 0 : index
      %c0_60 = arith.constant 0 : index
      %c0_61 = arith.constant 0 : index
      %99 = vector.load %arg10[%c0_59, %c0_60, %c0_61] : memref<1x1x2048xf32, #tpu.memory_space<vmem>>, vector<1x1x2048xf32>
      %100 = vector.shape_cast %99 : vector<1x1x2048xf32> to vector<1x2048xf32>
      %101 = vector.broadcast %100 : vector<1x2048xf32> to vector<16x2048xf32>
      %102 = arith.addf %98, %101 : vector<16x2048xf32>
      %cst_62 = arith.constant 0.000000e+00 : f32
      %103 = vector.broadcast %cst_62 : f32 to vector<16x2048xf32>
      %104 = arith.maximumf %102, %103 : vector<16x2048xf32>
      %105 = arith.truncf %104 : vector<16x2048xf32> to vector<16x2048xbf16>
      %c0_63 = arith.constant 0 : index
      %c0_64 = arith.constant 0 : index
      %c0_65 = arith.constant 0 : index
      %106 = vector.load %arg11[%c0_63, %c0_64, %c0_65] : memref<1x2048x32xbf16, #tpu.memory_space<vmem>>, vector<1x2048x32xbf16>
      %107 = vector.shape_cast %106 : vector<1x2048x32xbf16> to vector<2048x32xbf16>
      %cst_66 = arith.constant dense<0.000000e+00> : vector<16x32xf32>
      %108 = tpu.matmul %105, %107, %cst_66 {dimension_numbers = #tpu.dot_dimension_numbers<[1], [0], [0], [1], [0, 0, 1, 1], [], []>} : vector<16x2048xbf16>, vector<2048x32xbf16>, vector<16x32xf32> -> vector<16x32xf32>
      %109 = vector.broadcast %7 : vector<1x32xf32> to vector<16x32xf32>
      %110 = arith.addf %108, %109 : vector<16x32xf32>
      %111 = arith.addf %88, %110 : vector<16x32xf32>
      %cst_67 = arith.constant dense<0.000000e+00> : vector<16xf32>
      %112 = vector.multi_reduction <add>, %111, %cst_67 [1] : vector<16x32xf32> to vector<16xf32>
      %113 = vector.shape_cast %112 : vector<16xf32> to vector<16x1xf32>
      %cst_68 = arith.constant 3.200000e+01 : f32
      %114 = vector.broadcast %cst_68 : f32 to vector<16x1xf32>
      %115 = arith.divf %113, %114 : vector<16x1xf32>
      %116 = vector.broadcast %115 : vector<16x1xf32> to vector<16x32xf32>
      %117 = arith.subf %111, %116 : vector<16x32xf32>
      %118 = arith.mulf %117, %117 : vector<16x32xf32>
      %cst_69 = arith.constant dense<0.000000e+00> : vector<16xf32>
      %119 = vector.multi_reduction <add>, %118, %cst_69 [1] : vector<16x32xf32> to vector<16xf32>
      %120 = vector.shape_cast %119 : vector<16xf32> to vector<16x1xf32>
      %cst_70 = arith.constant 3.200000e+01 : f32
      %121 = vector.broadcast %cst_70 : f32 to vector<16x1xf32>
      %122 = arith.divf %120, %121 : vector<16x1xf32>
      %123 = vector.broadcast %115 : vector<16x1xf32> to vector<16x32xf32>
      %124 = arith.subf %111, %123 : vector<16x32xf32>
      %cst_71 = arith.constant 9.99999974E-6 : f32
      %125 = vector.broadcast %cst_71 : f32 to vector<16x1xf32>
      %126 = arith.addf %122, %125 : vector<16x1xf32>
      %127 = math.rsqrt %126 : vector<16x1xf32>
      %128 = vector.broadcast %127 : vector<16x1xf32> to vector<16x32xf32>
      %129 = arith.mulf %124, %128 : vector<16x32xf32>
      %130 = vector.broadcast %9 : vector<1x32xf32> to vector<16x32xf32>
      %131 = arith.mulf %129, %130 : vector<16x32xf32>
      %132 = vector.broadcast %11 : vector<1x32xf32> to vector<16x32xf32>
      %133 = arith.addf %131, %132 : vector<16x32xf32>
      %c0_72 = arith.constant 0 : index
      %c0_73 = arith.constant 0 : index
      %134 = vector.load %arg16[%c0_72, %c0_73] : memref<16x32xf32, #tpu.memory_space<vmem>>, vector<16x32xf32>
      tpu.vector_store %arg16[%c0_72, %c0_73], %133 {strides = array<i32>} : memref<16x32xf32, #tpu.memory_space<vmem>>, vector<16x32xf32>,
    } else {
    }
    %c1_i32_53 = arith.constant 1 : i32
    %92 = arith.cmpi eq, %arg1, %c1_i32_53 : i32
    %93 = arith.extui %92 : i1 to i32
    %c0_i32_54 = arith.constant 0 : i32
    %94 = arith.cmpi ne, %93, %c0_i32_54 : i32
    scf.if %94 {
      %95 = tpu.iota {dimensions = array<i32: 0>} : vector<2x16xi32>
      %96 = tpu.iota {dimensions = array<i32: 1>} : vector<2x16xi32>
      %c8_i32 = arith.constant 8 : i32
      %97 = vector.broadcast %c8_i32 : i32 to vector<2x16xi32>
      %98 = arith.muli %95, %97 : vector<2x16xi32>
      %c7_i32 = arith.constant 7 : i32
      %99 = vector.broadcast %c7_i32 : i32 to vector<2x16xi32>
      %100 = arith.addi %98, %99 : vector<2x16xi32>
      %101 = arith.cmpi eq, %96, %100 : vector<2x16xi32>
      %cst_55 = arith.constant 1.000000e+00 : f32
      %cst_56 = arith.constant 0.000000e+00 : f32
      %102 = vector.broadcast %cst_55 : f32 to vector<2x16xf32>
      %103 = vector.broadcast %cst_56 : f32 to vector<2x16xf32>
      %104 = arith.select %101, %102, %103 : vector<2x16xi1>, vector<2x16xf32>
      %cst_57 = arith.constant dense<0.000000e+00> : vector<2x32xf32>
      %105 = tpu.matmul %104, %88, %cst_57 {dimension_numbers = #tpu.dot_dimension_numbers<[1], [0], [0], [1], [0, 0, 1, 1], [], []>} : vector<2x16xf32>, vector<16x32xf32>, vector<2x32xf32> -> vector<2x32xf32>
      %106 = arith.truncf %105 : vector<2x32xf32> to vector<2x32xbf16>
      %c0_58 = arith.constant 0 : index
      %c0_59 = arith.constant 0 : index
      %c0_60 = arith.constant 0 : index
      %107 = vector.load %arg9[%c0_58, %c0_59, %c0_60] : memref<1x32x2048xbf16, #tpu.memory_space<vmem>>, vector<1x32x2048xbf16>
      %108 = vector.shape_cast %107 : vector<1x32x2048xbf16> to vector<32x2048xbf16>
      %cst_61 = arith.constant dense<0.000000e+00> : vector<2x2048xf32>
      %109 = tpu.matmul %106, %108, %cst_61 {dimension_numbers = #tpu.dot_dimension_numbers<[1], [0], [0], [1], [0, 0, 1, 1], [], []>} : vector<2x32xbf16>, vector<32x2048xbf16>, vector<2x2048xf32> -> vector<2x2048xf32>
      %c0_62 = arith.constant 0 : index
      %c0_63 = arith.constant 0 : index
      %c0_64 = arith.constant 0 : index
      %110 = vector.load %arg10[%c0_62, %c0_63, %c0_64] : memref<1x1x2048xf32, #tpu.memory_space<vmem>>, vector<1x1x2048xf32>
      %111 = vector.shape_cast %110 : vector<1x1x2048xf32> to vector<1x2048xf32>
      %112 = vector.broadcast %111 : vector<1x2048xf32> to vector<2x2048xf32>
      %113 = arith.addf %109, %112 : vector<2x2048xf32>
      %cst_65 = arith.constant 0.000000e+00 : f32
      %114 = vector.broadcast %cst_65 : f32 to vector<2x2048xf32>
      %115 = arith.maximumf %113, %114 : vector<2x2048xf32>
      %116 = arith.truncf %115 : vector<2x2048xf32> to vector<2x2048xbf16>
      %c0_66 = arith.constant 0 : index
      %c0_67 = arith.constant 0 : index
      %c0_68 = arith.constant 0 : index
      %117 = vector.load %arg11[%c0_66, %c0_67, %c0_68] : memref<1x2048x32xbf16, #tpu.memory_space<vmem>>, vector<1x2048x32xbf16>
      %118 = vector.shape_cast %117 : vector<1x2048x32xbf16> to vector<2048x32xbf16>
      %cst_69 = arith.constant dense<0.000000e+00> : vector<2x32xf32>
      %119 = tpu.matmul %116, %118, %cst_69 {dimension_numbers = #tpu.dot_dimension_numbers<[1], [0], [0], [1], [0, 0, 1, 1], [], []>} : vector<2x2048xbf16>, vector<2048x32xbf16>, vector<2x32xf32> -> vector<2x32xf32>
      %120 = vector.broadcast %7 : vector<1x32xf32> to vector<2x32xf32>
      %121 = arith.addf %119, %120 : vector<2x32xf32>
      %122 = arith.addf %105, %121 : vector<2x32xf32>
      %cst_70 = arith.constant dense<0.000000e+00> : vector<2xf32>
      %123 = vector.multi_reduction <add>, %122, %cst_70 [1] : vector<2x32xf32> to vector<2xf32>
      %124 = vector.shape_cast %123 : vector<2xf32> to vector<2x1xf32>
      %cst_71 = arith.constant 3.200000e+01 : f32
      %125 = vector.broadcast %cst_71 : f32 to vector<2x1xf32>
      %126 = arith.divf %124, %125 : vector<2x1xf32>
      %127 = vector.broadcast %126 : vector<2x1xf32> to vector<2x32xf32>
      %128 = arith.subf %122, %127 : vector<2x32xf32>
      %129 = arith.mulf %128, %128 : vector<2x32xf32>
      %cst_72 = arith.constant dense<0.000000e+00> : vector<2xf32>
      %130 = vector.multi_reduction <add>, %129, %cst_72 [1] : vector<2x32xf32> to vector<2xf32>
      %131 = vector.shape_cast %130 : vector<2xf32> to vector<2x1xf32>
      %cst_73 = arith.constant 3.200000e+01 : f32
      %132 = vector.broadcast %cst_73 : f32 to vector<2x1xf32>
      %133 = arith.divf %131, %132 : vector<2x1xf32>
      %134 = vector.broadcast %126 : vector<2x1xf32> to vector<2x32xf32>
      %135 = arith.subf %122, %134 : vector<2x32xf32>
      %cst_74 = arith.constant 9.99999974E-6 : f32
      %136 = vector.broadcast %cst_74 : f32 to vector<2x1xf32>
      %137 = arith.addf %133, %136 : vector<2x1xf32>
      %138 = math.rsqrt %137 : vector<2x1xf32>
      %139 = vector.broadcast %138 : vector<2x1xf32> to vector<2x32xf32>
      %140 = arith.mulf %135, %139 : vector<2x32xf32>
      %141 = vector.broadcast %9 : vector<1x32xf32> to vector<2x32xf32>
      %142 = arith.mulf %140, %141 : vector<2x32xf32>
      %143 = vector.broadcast %11 : vector<1x32xf32> to vector<2x32xf32>
      %144 = arith.addf %142, %143 : vector<2x32xf32>
      %145 = arith.truncf %144 : vector<2x32xf32> to vector<2x32xbf16>
      %c0_75 = arith.constant 0 : index
      %c0_76 = arith.constant 0 : index
      %146 = vector.load %arg13[%c0_75, %c0_76] : memref<32x128xbf16, #tpu.memory_space<vmem>>, vector<32x128xbf16>
      %cst_77 = arith.constant dense<0.000000e+00> : vector<2x128xf32>
      %147 = tpu.matmul %145, %146, %cst_77 {dimension_numbers = #tpu.dot_dimension_numbers<[1], [0], [0], [1], [0, 0, 1, 1], [], []>} : vector<2x32xbf16>, vector<32x128xbf16>, vector<2x128xf32> -> vector<2x128xf32>
      %c0_78 = arith.constant 0 : index
      %c0_79 = arith.constant 0 : index
      %148 = vector.load %arg14[%c0_78, %c0_79] : memref<1x128xf32, #tpu.memory_space<vmem>>, vector<1x128xf32>
      %149 = vector.broadcast %148 : vector<1x128xf32> to vector<2x128xf32>
      %150 = arith.addf %147, %149 : vector<2x128xf32>
      %c0_80 = arith.constant 0 : index
      %c0_81 = arith.constant 0 : index
      %c0_82 = arith.constant 0 : index
      %151 = vector.load %arg15[%c0_80, %c0_81, %c0_82] : memref<1x2x128xf32, #tpu.memory_space<vmem>>, vector<1x2x128xf32>
      %152 = vector.shape_cast %151 : vector<1x2x128xf32> to vector<2x128xf32>
      %153 = vector.shape_cast %150 : vector<2x128xf32> to vector<1x2x128xf32>
      tpu.vector_store %arg15[%c0_80, %c0_81, %c0_82], %153 {strides = array<i32>} : memref<1x2x128xf32, #tpu.memory_space<vmem>>, vector<1x2x128xf32>,
    } else {
    }
    return
  }
  func.func @transform_0(%arg0: i32, %arg1: i32) -> (i32, i32, i32) {
    %c0_i32 = arith.constant 0 : i32
    %c0_i32_0 = arith.constant 0 : i32
    %c0_i32_1 = arith.constant 0 : i32
    return %arg0, %c0_i32, %c0_i32_0 : i32, i32, i32
  }
  func.func @transform_1(%arg0: i32, %arg1: i32) -> (i32, i32, i32) {
    %c0_i32 = arith.constant 0 : i32
    %c0_i32_0 = arith.constant 0 : i32
    %c0_i32_1 = arith.constant 0 : i32
    return %arg0, %c0_i32, %c0_i32_0 : i32, i32, i32
  }
  func.func @transform_2(%arg0: i32, %arg1: i32) -> (i32, i32) {
    %c0_i32 = arith.constant 0 : i32
    %c0_i32_0 = arith.constant 0 : i32
    %c0_i32_1 = arith.constant 0 : i32
    return %c0_i32, %c0_i32_0 : i32, i32
  }
  func.func @transform_3(%arg0: i32, %arg1: i32) -> (i32, i32) {
    %c0_i32 = arith.constant 0 : i32
    %c0_i32_0 = arith.constant 0 : i32
    %c0_i32_1 = arith.constant 0 : i32
    return %c0_i32, %c0_i32_0 : i32, i32
  }
  func.func @transform_4(%arg0: i32, %arg1: i32) -> (i32, i32, i32, i32) {
    %c0_i32 = arith.constant 0 : i32
    %c0_i32_0 = arith.constant 0 : i32
    %c0_i32_1 = arith.constant 0 : i32
    %c0_i32_2 = arith.constant 0 : i32
    return %arg1, %c0_i32, %c0_i32_0, %c0_i32_1 : i32, i32, i32, i32
  }
  func.func @transform_5(%arg0: i32, %arg1: i32) -> (i32, i32, i32) {
    %c0_i32 = arith.constant 0 : i32
    %c0_i32_0 = arith.constant 0 : i32
    %c0_i32_1 = arith.constant 0 : i32
    return %arg1, %c0_i32, %c0_i32_0 : i32, i32, i32
  }
  func.func @transform_6(%arg0: i32, %arg1: i32) -> (i32, i32, i32) {
    %c0_i32 = arith.constant 0 : i32
    %c0_i32_0 = arith.constant 0 : i32
    %c0_i32_1 = arith.constant 0 : i32
    return %arg1, %c0_i32, %c0_i32_0 : i32, i32, i32
  }
  func.func @transform_7(%arg0: i32, %arg1: i32) -> (i32, i32, i32) {
    %c0_i32 = arith.constant 0 : i32
    %c0_i32_0 = arith.constant 0 : i32
    %c0_i32_1 = arith.constant 0 : i32
    return %arg1, %c0_i32, %c0_i32_0 : i32, i32, i32
  }
  func.func @transform_8(%arg0: i32, %arg1: i32) -> (i32, i32, i32) {
    %c0_i32 = arith.constant 0 : i32
    %c0_i32_0 = arith.constant 0 : i32
    %c0_i32_1 = arith.constant 0 : i32
    return %arg1, %c0_i32, %c0_i32_0 : i32, i32, i32
  }
  func.func @transform_9(%arg0: i32, %arg1: i32) -> (i32, i32, i32) {
    %c0_i32 = arith.constant 0 : i32
    %c0_i32_0 = arith.constant 0 : i32
    %c0_i32_1 = arith.constant 0 : i32
    return %arg1, %c0_i32, %c0_i32_0 : i32, i32, i32
  }
  func.func @transform_10(%arg0: i32, %arg1: i32) -> (i32, i32, i32) {
    %c0_i32 = arith.constant 0 : i32
    %c0_i32_0 = arith.constant 0 : i32
    %c0_i32_1 = arith.constant 0 : i32
    return %arg1, %c0_i32, %c0_i32_0 : i32, i32, i32
  }
  func.func @transform_11(%arg0: i32, %arg1: i32) -> (i32, i32) {
    %c0_i32 = arith.constant 0 : i32
    %c0_i32_0 = arith.constant 0 : i32
    %c0_i32_1 = arith.constant 0 : i32
    return %c0_i32, %c0_i32_0 : i32, i32
  }
  func.func @transform_12(%arg0: i32, %arg1: i32) -> (i32, i32) {
    %c0_i32 = arith.constant 0 : i32
    %c0_i32_0 = arith.constant 0 : i32
    %c0_i32_1 = arith.constant 0 : i32
    return %c0_i32, %c0_i32_0 : i32, i32
  }
  func.func @transform_13(%arg0: i32, %arg1: i32) -> (i32, i32, i32) {
    %c0_i32 = arith.constant 0 : i32
    %c0_i32_0 = arith.constant 0 : i32
    %c0_i32_1 = arith.constant 0 : i32
    return %arg0, %c0_i32, %c0_i32_0 : i32, i32, i32
  }
}

</mosaic_0001>

<llo_original>
// kernel: _lambda_.1
$region0: #{_lambda_.1}
  #allocation0 [shape = 'u32[]', space=smem, size = 0x4, offset = 0x4, fixed_abs, tag = 'smem constant byte address 0x4 - core index']
  #allocation1 [shape = 'u32[144,128]{1,0:T(1,128)}', space=vmem, size = 0x12000, scoped, tag = 'internal scratch']
  #allocation2 [shape = 'f32[16,32]{1,0:T(8,128)}', space=vmem, size = 0x2000, scoped, tag = 'scratch operand']
  %s0 = inlined_call_operand.vmem [shape: f32[2,8,9], index: 0, kind: input, shape index: {}]
  %s1 = inlined_call_operand.vmem [shape: f32[2,8,32], index: 1, kind: input, shape index: {}]
  %s2 = inlined_call_operand.vmem [shape: bf16[9,32], index: 2, kind: input, shape index: {}]
  %s3 = inlined_call_operand.vmem [shape: f32[1,32], index: 3, kind: input, shape index: {}]
  %s4 = inlined_call_operand.vmem [shape: bf16[2,3,32,32], index: 4, kind: input, shape index: {}]
  %s5 = inlined_call_operand.vmem [shape: f32[2,3,32], index: 5, kind: input, shape index: {}]
  %s6 = inlined_call_operand.vmem [shape: bf16[2,32,32], index: 6, kind: input, shape index: {}]
  %s7 = inlined_call_operand.vmem [shape: bf16[2,32,2048], index: 7, kind: input, shape index: {}]
  %s8 = inlined_call_operand.vmem [shape: f32[2,1,2048], index: 8, kind: input, shape index: {}]
  %s9 = inlined_call_operand.hbm [shape: bf16[2,2048,32], index: 9, kind: input, shape index: {}]
  %s10 = inlined_call_operand.vmem [shape: f32[2,6,32], index: 10, kind: input, shape index: {}]
  %s11 = inlined_call_operand.vmem [shape: bf16[32,128], index: 11, kind: input, shape index: {}]
  %s12 = inlined_call_operand.vmem [shape: f32[1,128], index: 12, kind: input, shape index: {}]
  %s13 = inlined_call_operand.hbm [shape: f32[1,2,128], index: 13, kind: output, shape index: {}]
  %s14 = sld [smem:[#allocation0]]
  $region101: #{_lambda_.1} parent=0
    _
  %s16 = ssub.s32 1, %s14
  %s17 = scalar_select 0, %s16, %s14
  $region1: #{_lambda_.1} parent=0
    #allocation3 [shape = 'u8[1048576]{0}', space=vmem, size = 0x100000, scoped, tag = 'input window, operand 9']
    #allocation4 [shape = 's32[2]{0}', space=sflag, size = 0x8, scoped, tag = 'scoped memory for _lambda_.1']
    #allocation5 [shape = 's32[2]{0}', space=sflag, size = 0x8, scoped, tag = 'scoped memory for _lambda_.1']
    #allocation6 [shape = 'u8[1024]{0}', space=vmem, size = 0x400, scoped, tag = 'output window, operand 0, single buffered']
    %18 = vsyncpa [#allocation4], 0
    %s19 = scalar_lea.sflag [#allocation4], 1
    %20 = vsyncpa %s19, 0
    %21 = vsyncpa [#allocation5], 0
    loop: start=0, step=1, limit=4
    $region2: #{_lambda_.1} parent=1 // loop_pre_header
      _
    $region3: #{_lambda_.1} parent=1 // loop_header
      %s23 = sphi 0, %s27
      %p24 = scmp.ge.s32.totalorder %s23, 4
      %s30 = sphi 0, %s42
      %s31 = sphi 0, %s38
      %s32 = sphi 0, %s30
      %s33 = sphi 0, %s31
      %s34 = sphi 0, %s32
      %s35 = sphi 0, %s33
      %s45 = sphi 0, %s47
      %s48 = sphi 0, %s45
      %s49 = sphi 0, %s48
      %s65 = sphi 0, %s49
      %s71 = sphi 0, %s73
      %s74 = sphi 0, %s71
      %s75 = sphi 0, %s74
      %s91 = sphi 0, %s75
      %s95 = sphi 0, %s95
      %s97 = sphi 0, %s95
      %s98 = sphi 0, %s97
      %s112 = sphi 0, %s98
      %s116 = sphi 0, %s116
      %s118 = sphi 0, %s116
      %s119 = sphi 0, %s118
      %s133 = sphi 0, %s119
      %s139 = sphi 0, %s141
      %s142 = sphi 0, %s139
      %s143 = sphi 0, %s142
      %s159 = sphi 0, %s143
      %s165 = sphi 0, %s167
      %s168 = sphi 0, %s165
      %s169 = sphi 0, %s168
      %s185 = sphi 0, %s169
      %s191 = sphi 0, %s193
      %s194 = sphi 0, %s191
      %s195 = sphi 0, %s194
      %s211 = sphi 0, %s195
      %s217 = sphi 0, %s219
      %s220 = sphi 0, %s217
      %s221 = sphi 0, %s220
      %s237 = sphi 0, %s221
      %s243 = sphi 0, %s245
      %s246 = sphi 0, %s243
      %s247 = sphi 0, %s246
      %s263 = sphi 0, %s247
      %s269 = sphi 0, %s271
      %s272 = sphi 0, %s269
      %s273 = sphi 0, %s272
      %s289 = sphi 0, %s273
      %s295 = sphi 0, %s297
      %s298 = sphi 0, %s295
      %s299 = sphi 0, %s298
      %s315 = sphi 0, %s299
      %s319 = sphi 0, %s319
      %s321 = sphi 0, %s319
      %s322 = sphi 0, %s321
      %s336 = sphi 0, %s322
      %s340 = sphi 0, %s340
      %s342 = sphi 0, %s340
      %s343 = sphi 0, %s342
      %s357 = sphi 0, %s343
      %s363 = sphi 0, %s365
      %s366 = sphi 0, %s363
      %s367 = sphi 0, %s366
      %s383 = sphi 0, %s367
    $region4: #{_lambda_.1} parent=1 // loop_header_branch
      %26 = sbr.rel (%p24) target = $region8
    $region5: #{_lambda_.1} parent=1 // loop_body
      %s28 = ssub.s32 %s23, 1
      %s29 = ssub.s32 %s23, 2
      %s36 = sadd.s32 1, %s31
      %p37 = scmp.ge.s32.totalorder %s36, 2
      %s38 = scalar_select %p37, 0, %s36
      %s39 = sadd.s32 1, %s30
      %s40 = scalar_select %p37, %s39, %s30
      %p41 = scmp.ge.s32.totalorder %s40, 1
      %s42 = scalar_select %p41, 0, %s40
      %s43 = ssub.s32 %s30, %s42
      %p44 = scmp.eq.s32.totalorder %s43, 0
      %s46 = sadd.s32 %s45, 1
      %s47 = scalar_select %p44, %s45, %s46
      %p50 = pneg %p44
      %p51 = scmp.eq.s32.totalorder %s23, 1
      %p52 = por %p50, %p51
      %p53 = scmp.ne.s32.totalorder %s45, %s48
      %p54 = scmp.eq.s32.totalorder %s23, 0
      %p55 = por %p53, %p54
      %p56 = scmp.ne.s32.totalorder %s45, %s48
      %p57 = scmp.eq.s32.totalorder %s28, 1
      %p58 = por %p56, %p57
      %p59 = scmp.ne.s32.totalorder %s48, %s49
      %p60 = scmp.eq.s32.totalorder %s28, 0
      %p61 = por %p59, %p60
      %p62 = scmp.ne.s32.totalorder %s48, %s49
      %p63 = scmp.eq.s32.totalorder %s29, 1
      %p64 = por %p62, %p63
      %p66 = scmp.ne.s32.totalorder %s49, %s65
      %p67 = scmp.eq.s32.totalorder %s29, 0
      %p68 = por %p66, %p67
      %s69 = ssub.s32 %s30, %s42
      %p70 = scmp.eq.s32.totalorder %s69, 0
      %s72 = sadd.s32 %s71, 1
      %s73 = scalar_select %p70, %s71, %s72
      %p76 = pneg %p70
      %p77 = scmp.eq.s32.totalorder %s23, 1
      %p78 = por %p76, %p77
      %p79 = scmp.ne.s32.totalorder %s71, %s74
      %p80 = scmp.eq.s32.totalorder %s23, 0
      %p81 = por %p79, %p80
      %p82 = scmp.ne.s32.totalorder %s71, %s74
      %p83 = scmp.eq.s32.totalorder %s28, 1
      %p84 = por %p82, %p83
      %p85 = scmp.ne.s32.totalorder %s74, %s75
      %p86 = scmp.eq.s32.totalorder %s28, 0
      %p87 = por %p85, %p86
      %p88 = scmp.ne.s32.totalorder %s74, %s75
      %p89 = scmp.eq.s32.totalorder %s29, 1
      %p90 = por %p88, %p89
      %p92 = scmp.ne.s32.totalorder %s75, %s91
      %p93 = scmp.eq.s32.totalorder %s29, 0
      %p94 = por %p92, %p93
      %s96 = sadd.s32 %s95, 1
      %p99 = scmp.eq.s32.totalorder %s23, 1
      %p100 = scmp.ne.s32.totalorder %s95, %s97
      %p101 = scmp.eq.s32.totalorder %s23, 0
      %p102 = por %p100, %p101
      %p103 = scmp.ne.s32.totalorder %s95, %s97
      %p104 = scmp.eq.s32.totalorder %s28, 1
      %p105 = por %p103, %p104
      %p106 = scmp.ne.s32.totalorder %s97, %s98
      %p107 = scmp.eq.s32.totalorder %s28, 0
      %p108 = por %p106, %p107
      %p109 = scmp.ne.s32.totalorder %s97, %s98
      %p110 = scmp.eq.s32.totalorder %s29, 1
      %p111 = por %p109, %p110
      %p113 = scmp.ne.s32.totalorder %s98, %s112
      %p114 = scmp.eq.s32.totalorder %s29, 0
      %p115 = por %p113, %p114
      %s117 = sadd.s32 %s116, 1
      %p120 = scmp.eq.s32.totalorder %s23, 1
      %p121 = scmp.ne.s32.totalorder %s116, %s118
      %p122 = scmp.eq.s32.totalorder %s23, 0
      %p123 = por %p121, %p122
      %p124 = scmp.ne.s32.totalorder %s116, %s118
      %p125 = scmp.eq.s32.totalorder %s28, 1
      %p126 = por %p124, %p125
      %p127 = scmp.ne.s32.totalorder %s118, %s119
      %p128 = scmp.eq.s32.totalorder %s28, 0
      %p129 = por %p127, %p128
      %p130 = scmp.ne.s32.totalorder %s118, %s119
      %p131 = scmp.eq.s32.totalorder %s29, 1
      %p132 = por %p130, %p131
      %p134 = scmp.ne.s32.totalorder %s119, %s133
      %p135 = scmp.eq.s32.totalorder %s29, 0
      %p136 = por %p134, %p135
      %s137 = ssub.s32 %s31, %s38
      %p138 = scmp.eq.s32.totalorder %s137, 0
      %s140 = sadd.s32 %s139, 1
      %s141 = scalar_select %p138, %s139, %s140
      %p144 = pneg %p138
      %p145 = scmp.eq.s32.totalorder %s23, 1
      %p146 = por %p144, %p145
      %p147 = scmp.ne.s32.totalorder %s139, %s142
      %p148 = scmp.eq.s32.totalorder %s23, 0
      %p149 = por %p147, %p148
      %p150 = scmp.ne.s32.totalorder %s139, %s142
      %p151 = scmp.eq.s32.totalorder %s28, 1
      %p152 = por %p150, %p151
      %p153 = scmp.ne.s32.totalorder %s142, %s143
      %p154 = scmp.eq.s32.totalorder %s28, 0
      %p155 = por %p153, %p154
      %p156 = scmp.ne.s32.totalorder %s142, %s143
      %p157 = scmp.eq.s32.totalorder %s29, 1
      %p158 = por %p156, %p157
      %p160 = scmp.ne.s32.totalorder %s143, %s159
      %p161 = scmp.eq.s32.totalorder %s29, 0
      %p162 = por %p160, %p161
      %s163 = ssub.s32 %s31, %s38
      %p164 = scmp.eq.s32.totalorder %s163, 0
      %s166 = sadd.s32 %s165, 1
      %s167 = scalar_select %p164, %s165, %s166
      %p170 = pneg %p164
      %p171 = scmp.eq.s32.totalorder %s23, 1
      %p172 = por %p170, %p171
      %p173 = scmp.ne.s32.totalorder %s165, %s168
      %p174 = scmp.eq.s32.totalorder %s23, 0
      %p175 = por %p173, %p174
      %p176 = scmp.ne.s32.totalorder %s165, %s168
      %p177 = scmp.eq.s32.totalorder %s28, 1
      %p178 = por %p176, %p177
      %p179 = scmp.ne.s32.totalorder %s168, %s169
      %p180 = scmp.eq.s32.totalorder %s28, 0
      %p181 = por %p179, %p180
      %p182 = scmp.ne.s32.totalorder %s168, %s169
      %p183 = scmp.eq.s32.totalorder %s29, 1
      %p184 = por %p182, %p183
      %p186 = scmp.ne.s32.totalorder %s169, %s185
      %p187 = scmp.eq.s32.totalorder %s29, 0
      %p188 = por %p186, %p187
      %s189 = ssub.s32 %s31, %s38
      %p190 = scmp.eq.s32.totalorder %s189, 0
      %s192 = sadd.s32 %s191, 1
      %s193 = scalar_select %p190, %s191, %s192
      %p196 = pneg %p190
      %p197 = scmp.eq.s32.totalorder %s23, 1
      %p198 = por %p196, %p197
      %p199 = scmp.ne.s32.totalorder %s191, %s194
      %p200 = scmp.eq.s32.totalorder %s23, 0
      %p201 = por %p199, %p200
      %p202 = scmp.ne.s32.totalorder %s191, %s194
      %p203 = scmp.eq.s32.totalorder %s28, 1
      %p204 = por %p202, %p203
      %p205 = scmp.ne.s32.totalorder %s194, %s195
      %p206 = scmp.eq.s32.totalorder %s28, 0
      %p207 = por %p205, %p206
      %p208 = scmp.ne.s32.totalorder %s194, %s195
      %p209 = scmp.eq.s32.totalorder %s29, 1
      %p210 = por %p208, %p209
      %p212 = scmp.ne.s32.totalorder %s195, %s211
      %p213 = scmp.eq.s32.totalorder %s29, 0
      %p214 = por %p212, %p213
      %s215 = ssub.s32 %s31, %s38
      %p216 = scmp.eq.s32.totalorder %s215, 0
      %s218 = sadd.s32 %s217, 1
      %s219 = scalar_select %p216, %s217, %s218
      %p222 = pneg %p216
      %p223 = scmp.eq.s32.totalorder %s23, 1
      %p224 = por %p222, %p223
      %p225 = scmp.ne.s32.totalorder %s217, %s220
      %p226 = scmp.eq.s32.totalorder %s23, 0
      %p227 = por %p225, %p226
      %p228 = scmp.ne.s32.totalorder %s217, %s220
      %p229 = scmp.eq.s32.totalorder %s28, 1
      %p230 = por %p228, %p229
      %p231 = scmp.ne.s32.totalorder %s220, %s221
      %p232 = scmp.eq.s32.totalorder %s28, 0
      %p233 = por %p231, %p232
      %p234 = scmp.ne.s32.totalorder %s220, %s221
      %p235 = scmp.eq.s32.totalorder %s29, 1
      %p236 = por %p234, %p235
      %p238 = scmp.ne.s32.totalorder %s221, %s237
      %p239 = scmp.eq.s32.totalorder %s29, 0
      %p240 = por %p238, %p239
      %s241 = ssub.s32 %s31, %s38
      %p242 = scmp.eq.s32.totalorder %s241, 0
      %s244 = sadd.s32 %s243, 1
      %s245 = scalar_select %p242, %s243, %s244
      %p248 = pneg %p242
      %p249 = scmp.eq.s32.totalorder %s23, 1
      %p250 = por %p248, %p249
      %p251 = scmp.ne.s32.totalorder %s243, %s246
      %p252 = scmp.eq.s32.totalorder %s23, 0
      %p253 = por %p251, %p252
      %p254 = scmp.ne.s32.totalorder %s243, %s246
      %p255 = scmp.eq.s32.totalorder %s28, 1
      %p256 = por %p254, %p255
      %p257 = scmp.ne.s32.totalorder %s246, %s247
      %p258 = scmp.eq.s32.totalorder %s28, 0
      %p259 = por %p257, %p258
      %p260 = scmp.ne.s32.totalorder %s246, %s247
      %p261 = scmp.eq.s32.totalorder %s29, 1
      %p262 = por %p260, %p261
      %p264 = scmp.ne.s32.totalorder %s247, %s263
      %p265 = scmp.eq.s32.totalorder %s29, 0
      %p266 = por %p264, %p265
      %s267 = ssub.s32 %s31, %s38
      %p268 = scmp.eq.s32.totalorder %s267, 0
      %s270 = sadd.s32 %s269, 1
      %s271 = scalar_select %p268, %s269, %s270
      %p274 = pneg %p268
      %p275 = scmp.eq.s32.totalorder %s23, 1
      %p276 = por %p274, %p275
      %p277 = scmp.ne.s32.totalorder %s269, %s272
      %p278 = scmp.eq.s32.totalorder %s23, 0
      %p279 = por %p277, %p278
      %p280 = scmp.ne.s32.totalorder %s269, %s272
      %p281 = scmp.eq.s32.totalorder %s28, 1
      %p282 = por %p280, %p281
      %p283 = scmp.ne.s32.totalorder %s272, %s273
      %p284 = scmp.eq.s32.totalorder %s28, 0
      %p285 = por %p283, %p284
      %p286 = scmp.ne.s32.totalorder %s272, %s273
      %p287 = scmp.eq.s32.totalorder %s29, 1
      %p288 = por %p286, %p287
      %p290 = scmp.ne.s32.totalorder %s273, %s289
      %p291 = scmp.eq.s32.totalorder %s29, 0
      %p292 = por %p290, %p291
      %s293 = ssub.s32 %s31, %s38
      %p294 = scmp.eq.s32.totalorder %s293, 0
      %s296 = sadd.s32 %s295, 1
      %s297 = scalar_select %p294, %s295, %s296
      %p300 = pneg %p294
      %p301 = scmp.eq.s32.totalorder %s23, 1
      %p302 = por %p300, %p301
      %p303 = scmp.ne.s32.totalorder %s295, %s298
      %p304 = scmp.eq.s32.totalorder %s23, 0
      %p305 = por %p303, %p304
      %p306 = scmp.ne.s32.totalorder %s295, %s298
      %p307 = scmp.eq.s32.totalorder %s28, 1
      %p308 = por %p306, %p307
      %p309 = scmp.ne.s32.totalorder %s298, %s299
      %p310 = scmp.eq.s32.totalorder %s28, 0
      %p311 = por %p309, %p310
      %p312 = scmp.ne.s32.totalorder %s298, %s299
      %p313 = scmp.eq.s32.totalorder %s29, 1
      %p314 = por %p312, %p313
      %p316 = scmp.ne.s32.totalorder %s299, %s315
      %p317 = scmp.eq.s32.totalorder %s29, 0
      %p318 = por %p316, %p317
      %s320 = sadd.s32 %s319, 1
      %p323 = scmp.eq.s32.totalorder %s23, 1
      %p324 = scmp.ne.s32.totalorder %s319, %s321
      %p325 = scmp.eq.s32.totalorder %s23, 0
      %p326 = por %p324, %p325
      %p327 = scmp.ne.s32.totalorder %s319, %s321
      %p328 = scmp.eq.s32.totalorder %s28, 1
      %p329 = por %p327, %p328
      %p330 = scmp.ne.s32.totalorder %s321, %s322
      %p331 = scmp.eq.s32.totalorder %s28, 0
      %p332 = por %p330, %p331
      %p333 = scmp.ne.s32.totalorder %s321, %s322
      %p334 = scmp.eq.s32.totalorder %s29, 1
      %p335 = por %p333, %p334
      %p337 = scmp.ne.s32.totalorder %s322, %s336
      %p338 = scmp.eq.s32.totalorder %s29, 0
      %p339 = por %p337, %p338
      %s341 = sadd.s32 %s340, 1
      %p344 = scmp.eq.s32.totalorder %s23, 1
      %p345 = scmp.ne.s32.totalorder %s340, %s342
      %p346 = scmp.eq.s32.totalorder %s23, 0
      %p347 = por %p345, %p346
      %p348 = scmp.ne.s32.totalorder %s340, %s342
      %p349 = scmp.eq.s32.totalorder %s28, 1
      %p350 = por %p348, %p349
      %p351 = scmp.ne.s32.totalorder %s342, %s343
      %p352 = scmp.eq.s32.totalorder %s28, 0
      %p353 = por %p351, %p352
      %p354 = scmp.ne.s32.totalorder %s342, %s343
      %p355 = scmp.eq.s32.totalorder %s29, 1
      %p356 = por %p354, %p355
      %p358 = scmp.ne.s32.totalorder %s343, %s357
      %p359 = scmp.eq.s32.totalorder %s29, 0
      %p360 = por %p358, %p359
      %s361 = ssub.s32 %s30, %s42
      %p362 = scmp.eq.s32.totalorder %s361, 0
      %s364 = sadd.s32 %s363, 1
      %s365 = scalar_select %p362, %s363, %s364
      %p368 = pneg %p362
      %p369 = scmp.eq.s32.totalorder %s23, 1
      %p370 = por %p368, %p369
      %p371 = scmp.ne.s32.totalorder %s363, %s366
      %p372 = scmp.eq.s32.totalorder %s23, 0
      %p373 = por %p371, %p372
      %p374 = scmp.ne.s32.totalorder %s363, %s366
      %p375 = scmp.eq.s32.totalorder %s28, 1
      %p376 = por %p374, %p375
      %p377 = scmp.ne.s32.totalorder %s366, %s367
      %p378 = scmp.eq.s32.totalorder %s28, 0
      %p379 = por %p377, %p378
      %p380 = scmp.ne.s32.totalorder %s366, %s367
      %p381 = scmp.eq.s32.totalorder %s29, 1
      %p382 = por %p380, %p381
      %p384 = scmp.ne.s32.totalorder %s367, %s383
      %p385 = scmp.eq.s32.totalorder %s29, 0
      %p386 = por %p384, %p385
      %p387 = scmp.le.s32.totalorder 1, %s23
      %p388 = scmp.lt.s32.totalorder %s23, 3
      %p389 = pnand %p387, %p388
      %p390 = pneg %p389
      // Predicated region
      $region9: #{_lambda_.1} parent=5 // pred_check
        _
      $region10: #{_lambda_.1} parent=5 // pred_check_branch
        %392 = sbr.rel (%p389) target = $region12
      $region11: #{_lambda_.1} parent=5 // pred_region
        %s393 = ssub.s32 %s23, 1
        // Predicated region
        $region13: #{_lambda_.1} parent=11 // pred_check
          %p394 = pneg %p61
        $region14: #{_lambda_.1} parent=11 // pred_check_branch
          %396 = sbr.rel (%p394) target = $region16
        $region15: #{_lambda_.1} parent=11 // pred_region
          %s397 = smul.u32 2, %s32
          %p398 = scmp.lt.s32.totalorder %s397, 1
          %s399 = scalar_select %p398, %s397, 1
          %s400 = smul.addr %s399, 8
          %s401 = scalar_lea.vmem %s0, %s400
          %s402 = smul.u32 2, %s32
        $region16: #{_lambda_.1} parent=11 // pred_fallthru
          _
        // Predicated region
        $region17: #{_lambda_.1} parent=11 // pred_check
          %p403 = pneg %p87
        $region18: #{_lambda_.1} parent=11 // pred_check_branch
          %405 = sbr.rel (%p403) target = $region20
        $region19: #{_lambda_.1} parent=11 // pred_region
          %s406 = smul.u32 2, %s32
          %p407 = scmp.lt.s32.totalorder %s406, 1
          %s408 = scalar_select %p407, %s406, 1
          %s409 = smul.addr %s408, 8
          %s410 = scalar_lea.vmem %s1, %s409
          %s411 = smul.u32 2, %s32
        $region20: #{_lambda_.1} parent=11 // pred_fallthru
          _
        // Predicated region
        $region21: #{_lambda_.1} parent=11 // pred_check
          %p412 = pneg %p108
        $region22: #{_lambda_.1} parent=11 // pred_check_branch
          %414 = sbr.rel (%p412) target = $region24
        $region23: #{_lambda_.1} parent=11 // pred_region
          _
        $region24: #{_lambda_.1} parent=11 // pred_fallthru
          _
        // Predicated region
        $region25: #{_lambda_.1} parent=11 // pred_check
          %p415 = pneg %p129
        $region26: #{_lambda_.1} parent=11 // pred_check_branch
          %417 = sbr.rel (%p415) target = $region28
        $region27: #{_lambda_.1} parent=11 // pred_region
          _
        $region28: #{_lambda_.1} parent=11 // pred_fallthru
          _
        // Predicated region
        $region29: #{_lambda_.1} parent=11 // pred_check
          %p418 = pneg %p332
        $region30: #{_lambda_.1} parent=11 // pred_check_branch
          %420 = sbr.rel (%p418) target = $region32
        $region31: #{_lambda_.1} parent=11 // pred_region
          _
        $region32: #{_lambda_.1} parent=11 // pred_fallthru
          _
        // Predicated region
        $region33: #{_lambda_.1} parent=11 // pred_check
          %p421 = pneg %p353
        $region34: #{_lambda_.1} parent=11 // pred_check_branch
          %423 = sbr.rel (%p421) target = $region36
        $region35: #{_lambda_.1} parent=11 // pred_region
          _
        $region36: #{_lambda_.1} parent=11 // pred_fallthru
          _
      $region12: #{_lambda_.1} parent=5 // pred_fallthru
        _
      %p424 = scmp.lt.s32.totalorder %s23, 2
      // Predicated region
      $region37: #{_lambda_.1} parent=5 // pred_check
        %p425 = pneg %p424
      $region38: #{_lambda_.1} parent=5 // pred_check_branch
        %427 = sbr.rel (%p425) target = $region40
      $region39: #{_lambda_.1} parent=5 // pred_region
        // Predicated region
        $region41: #{_lambda_.1} parent=39 // pred_check
          %p428 = pneg %p149
        $region42: #{_lambda_.1} parent=39 // pred_check_branch
          %430 = sbr.rel (%p428) target = $region44
        $region43: #{_lambda_.1} parent=39 // pred_region
          %p431 = scmp.lt.s32.totalorder %s31, 1
          %s432 = scalar_select %p431, %s31, 1
          %s433 = smul.addr %s432, 12
          %s434 = smul.addr %s433, 4
          %s435 = scalar_lea.vmem %s4, %s434
        $region44: #{_lambda_.1} parent=39 // pred_fallthru
          _
        // Predicated region
        $region45: #{_lambda_.1} parent=39 // pred_check
          %p436 = pneg %p175
        $region46: #{_lambda_.1} parent=39 // pred_check_branch
          %438 = sbr.rel (%p436) target = $region48
        $region47: #{_lambda_.1} parent=39 // pred_region
          %p439 = scmp.lt.s32.totalorder %s31, 1
          %s440 = scalar_select %p439, %s31, 1
          %s441 = smul.addr %s440, 4
          %s442 = scalar_lea.vmem %s5, %s441
        $region48: #{_lambda_.1} parent=39 // pred_fallthru
          _
        // Predicated region
        $region49: #{_lambda_.1} parent=39 // pred_check
          %p443 = pneg %p201
        $region50: #{_lambda_.1} parent=39 // pred_check_branch
          %445 = sbr.rel (%p443) target = $region52
        $region51: #{_lambda_.1} parent=39 // pred_region
          %p446 = scmp.lt.s32.totalorder %s31, 1
          %s447 = scalar_select %p446, %s31, 1
          %s448 = smul.addr %s447, 4
          %s449 = smul.addr %s448, 4
          %s450 = scalar_lea.vmem %s6, %s449
        $region52: #{_lambda_.1} parent=39 // pred_fallthru
          _
        // Predicated region
        $region53: #{_lambda_.1} parent=39 // pred_check
          %p451 = pneg %p227
        $region54: #{_lambda_.1} parent=39 // pred_check_branch
          %453 = sbr.rel (%p451) target = $region56
        $region55: #{_lambda_.1} parent=39 // pred_region
          %p454 = scmp.lt.s32.totalorder %s31, 1
          %s455 = scalar_select %p454, %s31, 1
          %s456 = smul.addr %s455, 64
          %s457 = smul.addr %s456, 4
          %s458 = scalar_lea.vmem %s7, %s457
        $region56: #{_lambda_.1} parent=39 // pred_fallthru
          _
        // Predicated region
        $region57: #{_lambda_.1} parent=39 // pred_check
          %p459 = pneg %p253
        $region58: #{_lambda_.1} parent=39 // pred_check_branch
          %461 = sbr.rel (%p459) target = $region60
        $region59: #{_lambda_.1} parent=39 // pred_region
          %p462 = scmp.lt.s32.totalorder %s31, 1
          %s463 = scalar_select %p462, %s31, 1
          %s464 = smul.addr %s463, 16
          %s465 = scalar_lea.vmem %s8, %s464
        $region60: #{_lambda_.1} parent=39 // pred_fallthru
          _
        // Predicated region
        $region61: #{_lambda_.1} parent=39 // pred_check
          %p466 = pneg %p279
        $region62: #{_lambda_.1} parent=39 // pred_check_branch
          %468 = sbr.rel (%p466) target = $region64
        $region63: #{_lambda_.1} parent=39 // pred_region
          %s469 = sand.u32 %s269, 1
          %s470 = scalar_lea.sflag [#allocation4], %s469
          %s471 = sand.u32 %s269, 1
          %s472 = smul.addr %s471, 1024
          %s473 = scalar_lea.vmem [#allocation3], %s472
          %s475 = ssub.s32 16384, 16384
          %476 = vsyncadd %s470, %s475
          %s477 = smul.addr %s31, 256
          %s478 = smul.addr %s477, 64
          %s479 = scalar_lea.hbm %s9, %s478
          %s480 = sshll.u32 %s473, 4
          %s481 = int_to_ptr.vmem [resolvable:$true] %s480
          %486 = dma.hbm_to_vmem [thread:$0]  %s479, 16384, %s481, %s470, 64, 64, 4
        $region64: #{_lambda_.1} parent=39 // pred_fallthru
          _
        // Predicated region
        $region65: #{_lambda_.1} parent=39 // pred_check
          %p487 = pneg %p305
        $region66: #{_lambda_.1} parent=39 // pred_check_branch
          %489 = sbr.rel (%p487) target = $region68
        $region67: #{_lambda_.1} parent=39 // pred_region
          %p490 = scmp.lt.s32.totalorder %s31, 1
          %s491 = scalar_select %p490, %s31, 1
          %s492 = smul.addr %s491, 8
          %s493 = scalar_lea.vmem %s10, %s492
        $region68: #{_lambda_.1} parent=39 // pred_fallthru
          _
      $region40: #{_lambda_.1} parent=5 // pred_fallthru
        _
      %p494 = scmp.le.s32.totalorder 1, %s23
      %p495 = scmp.lt.s32.totalorder %s23, 3
      %p496 = pnand %p494, %p495
      %p497 = pneg %p496
      // Predicated region
      $region69: #{_lambda_.1} parent=5 // pred_check
        _
      $region70: #{_lambda_.1} parent=5 // pred_check_branch
        %499 = sbr.rel (%p496) target = $region72
      $region71: #{_lambda_.1} parent=5 // pred_region
        %s500 = ssub.s32 %s23, 1
        %s501 = sand.u32 %s272, 1
        %s502 = scalar_lea.sflag [#allocation4], %s501
        %s503 = sand.u32 %s272, 1
        %s504 = smul.addr %s503, 1024
        %s505 = scalar_lea.vmem [#allocation3], %s504
        // Predicated region
        $region73: #{_lambda_.1} parent=71 // pred_check
          %p506 = pneg %p285
        $region74: #{_lambda_.1} parent=71 // pred_check_branch
          %508 = sbr.rel (%p506) target = $region76
        $region75: #{_lambda_.1} parent=71 // pred_region
          %509 = dma.done %s502, 16384
        $region76: #{_lambda_.1} parent=71 // pred_fallthru
          _
        %s510 = smul.u32 2, %s32
        %p511 = scmp.lt.s32.totalorder %s510, 1
        %s512 = scalar_select %p511, %s510, 1
        %s513 = smul.addr %s512, 8
        %s514 = scalar_lea.vmem %s0, %s513
        %p515 = pneg %p61
        %p516 = pneg %p58
        %s517 = smul.u32 2, %s32
        %p518 = scmp.lt.s32.totalorder %s517, 1
        %s519 = scalar_select %p518, %s517, 1
        %s520 = smul.addr %s519, 8
        %s521 = scalar_lea.vmem %s1, %s520
        %p522 = pneg %p87
        %p523 = pneg %p84
        %p524 = pneg %p108
        %p525 = pneg %p105
        %p526 = pneg %p129
        %p527 = pneg %p126
        %p528 = scmp.lt.s32.totalorder %s33, 1
        %s529 = scalar_select %p528, %s33, 1
        %s530 = smul.addr %s529, 12
        %s531 = smul.addr %s530, 4
        %s532 = scalar_lea.vmem %s4, %s531
        %p533 = pneg %p155
        %p534 = pneg %p152
        %p535 = scmp.lt.s32.totalorder %s33, 1
        %s536 = scalar_select %p535, %s33, 1
        %s537 = smul.addr %s536, 4
        %s538 = scalar_lea.vmem %s5, %s537
        %p539 = pneg %p181
        %p540 = pneg %p178
        %p541 = scmp.lt.s32.totalorder %s33, 1
        %s542 = scalar_select %p541, %s33, 1
        %s543 = smul.addr %s542, 4
        %s544 = smul.addr %s543, 4
        %s545 = scalar_lea.vmem %s6, %s544
        %p546 = pneg %p207
        %p547 = pneg %p204
        %p548 = scmp.lt.s32.totalorder %s33, 1
        %s549 = scalar_select %p548, %s33, 1
        %s550 = smul.addr %s549, 64
        %s551 = smul.addr %s550, 4
        %s552 = scalar_lea.vmem %s7, %s551
        %p553 = pneg %p233
        %p554 = pneg %p230
        %p555 = scmp.lt.s32.totalorder %s33, 1
        %s556 = scalar_select %p555, %s33, 1
        %s557 = smul.addr %s556, 16
        %s558 = scalar_lea.vmem %s8, %s557
        %p559 = pneg %p259
        %p560 = pneg %p256
        %s561 = sand.u32 %s272, 1
        %s562 = scalar_lea.sflag [#allocation4], %s561
        %s563 = sand.u32 %s272, 1
        %s564 = smul.addr %s563, 1024
        %s565 = scalar_lea.vmem [#allocation3], %s564
        %p566 = pneg %p285
        %p567 = pneg %p282
        %p568 = scmp.lt.s32.totalorder %s33, 1
        %s569 = scalar_select %p568, %s33, 1
        %s570 = smul.addr %s569, 8
        %s571 = scalar_lea.vmem %s10, %s570
        %p572 = pneg %p311
        %p573 = pneg %p308
        %p574 = pneg %p332
        %p575 = pneg %p329
        %p576 = pneg %p353
        %p577 = pneg %p350
        %p578 = pneg %p379
        %p579 = pneg %p376
        %s580 = smul.u32 2, %s32
        %p581 = scmp.lt.s32.totalorder %s580, 1
        %s582 = scalar_select %p581, %s580, 1
        %s583 = smul.addr %s582, 8
        %s584 = scalar_lea.vmem %s0, %s583
        %s585 = smul.u32 2, %s32
        %s586 = smul.u32 2, %s32
        %p587 = scmp.lt.s32.totalorder %s586, 1
        %s588 = scalar_select %p587, %s586, 1
        %s589 = smul.addr %s588, 8
        %s590 = scalar_lea.vmem %s1, %s589
        %s591 = smul.u32 2, %s32
        %p592 = scmp.lt.s32.totalorder %s33, 1
        %s593 = scalar_select %p592, %s33, 1
        %s594 = smul.addr %s593, 12
        %s595 = smul.addr %s594, 4
        %s596 = scalar_lea.vmem %s4, %s595
        %p597 = scmp.lt.s32.totalorder %s33, 1
        %s598 = scalar_select %p597, %s33, 1
        %s599 = smul.addr %s598, 4
        %s600 = scalar_lea.vmem %s5, %s599
        %p601 = scmp.lt.s32.totalorder %s33, 1
        %s602 = scalar_select %p601, %s33, 1
        %s603 = smul.addr %s602, 4
        %s604 = smul.addr %s603, 4
        %s605 = scalar_lea.vmem %s6, %s604
        %p606 = scmp.lt.s32.totalorder %s33, 1
        %s607 = scalar_select %p606, %s33, 1
        %s608 = smul.addr %s607, 64
        %s609 = smul.addr %s608, 4
        %s610 = scalar_lea.vmem %s7, %s609
        %p611 = scmp.lt.s32.totalorder %s33, 1
        %s612 = scalar_select %p611, %s33, 1
        %s613 = smul.addr %s612, 16
        %s614 = scalar_lea.vmem %s8, %s613
        %p615 = scmp.lt.s32.totalorder %s33, 1
        %s616 = scalar_select %p615, %s33, 1
        %s617 = smul.addr %s616, 8
        %s618 = scalar_lea.vmem %s10, %s617
        %v620 = vld [vmem:[%s618] sm:$0x1]
        %v621 = vld [vmem:[%s618 + $0x1] sm:$0x1]
        %v622 = vld [vmem:[%s618 + $0x2] sm:$0x1]
        %v623 = vld [vmem:[%s618 + $0x3] sm:$0x1]
        %v624 = vld [vmem:[%s618 + $0x4] sm:$0x1]
        %v625 = vld [vmem:[%s618 + $0x5] sm:$0x1]
        %p626 = scmp.eq.s32.totalorder %s33, 0
        // Predicated region
        $region77: #{_lambda_.1} parent=71 // pred_check
          %p627 = pneg %p626
        $region78: #{_lambda_.1} parent=71 // pred_check_branch
          %629 = sbr.rel (%p627) target = $region80
        $region79: #{_lambda_.1} parent=71 // pred_region
          %v630 = vld [vmem:[%s584] sm:$0xff]
          %v631 = vld [vmem:[%s584 + $0x8] sm:$0xff]
          %v632 = vpack.c.bf16 %v631, %v630
          %v633 = vld [vmem:[%s2] sm:$0xf]
          %v634 = vld [vmem:[%s2 + $0x4] sm:$0x1]
          %v635 = vld [vmem:[%s3] sm:$0x1]
          %v637 = vlaneseq
          %v638 = vshrl.u32 %v637, 7
          %v639 = vsub.s32 0, %v638
          %v640 = vrot.slane %v635, %v639
          %v644 = vunpack.c.l.b16 %v633
          %v645 = vunpack.c.l.b16 %v634
          %v646 = vpack.c.b16 %v645, %v644
          %vm647 = vcmask 72704
          %v649 = vsel %vm647, %v632, 0
          %vm651 = vcmask 1043456
          %vm652 = vcmask 1044480
          %v653 = vsel %vm651, 4294967295, 65535
          %v654 = vsel %vm652, %v653, 0
          %v656 = vand.u32 %v646, %v654
          %658 = vmatprep.subr.bf16.mxu0 0
          %659 = vmatpush1.bf16.msra.mxu0 %v656
          %660 = vmatprep.subr.bf16.mxu0 0
          %661 = vmatpush1.bf16.msra.mxu0 0
          %662 = vmatprep.subr.bf16.mxu0 0
          %663 = vmatpush1.bf16.msra.mxu0 0
          %664 = vmatprep.subr.bf16.mxu0 0
          %665 = vmatpush1.bf16.msra.mxu0 0
          %666 = vmatprep.subr.bf16.mxu0 0
          %667 = vmatpush1.bf16.msra.mxu0 0
          %668 = vmatprep.subr.bf16.mxu0 0
          %669 = vmatpush1.bf16.msra.mxu0 0
          %670 = vmatprep.subr.bf16.mxu0 0
          %671 = vmatpush1.bf16.msra.mxu0 0
          %672 = vmatprep.subr.bf16.mxu0 0
          %673 = vmatpush1.bf16.msra.mxu0 0
          %674 = vmatprep.subr.bf16.mxu0 0
          %675 = vmatpush1.bf16.msra.mxu0 0
          %676 = vmatprep.subr.bf16.mxu0 0
          %677 = vmatpush1.bf16.msra.mxu0 0
          %678 = vmatprep.subr.bf16.mxu0 0
          %679 = vmatpush1.bf16.msra.mxu0 0
          %680 = vmatprep.subr.bf16.mxu0 0
          %681 = vmatpush1.bf16.msra.mxu0 0
          %682 = vmatprep.subr.bf16.mxu0 0
          %683 = vmatpush1.bf16.msra.mxu0 0
          %684 = vmatprep.subr.bf16.mxu0 0
          %685 = vmatpush1.bf16.msra.mxu0 0
          %686 = vmatprep.subr.bf16.mxu0 0
          %687 = vmatpush1.bf16.msra.mxu0 0
          %688 = vmatprep.subr.bf16.mxu0 0
          %689 = vmatpush1.bf16.msra.mxu0 0
          %690 = vmatprep.mubr.bf16.mxu0 0
          %691 = vmatmul.mubr.bf16.gmra.mrb[0].mxu0 %v649
          %v692 = vpop.f32.mrb[0].mxu0
          %v693 = vadd.f32 %v640, %v692
          %v694 = vpop.f32.mrb[0].mxu0
          %v695 = vpop.f32.mrb[0].mxu0
          %v696 = vadd.f32 %v640, %v695
          %v697 = vpop.f32.mrb[0].mxu0
          %698 = vdwg.mxu0
          %v699 = vtanh.pop %v693
          %v700 = vtanh.pop %v696
          %v701 = vld [vmem:[%s590] sm:$0xff]
          %v702 = vld [vmem:[%s590 + $0x8] sm:$0xff]
          %v703 = vadd.f32 %v699, %v701
          %v704 = vadd.f32 %v700, %v702
          %vm705 = vcmask 261120
          %706 = vst.msk [vmem:[#allocation2] sm:$0xff] %vm705, %v703
          %707 = vst.msk [vmem:[#allocation2 + $0x8] sm:$0xff] %vm705, %v704
        $region80: #{_lambda_.1} parent=71 // pred_fallthru
          _
        %v708 = vld [vmem:[#allocation2] sm:$0xff]
        %v709 = vld [vmem:[#allocation2 + $0x8] sm:$0xff]
        %v710 = vpack.c.bf16 %v709, %v708
        %v711 = vld [vmem:[%s596] sm:$0xf]
        %v712 = vld [vmem:[%s596 + $0x4] sm:$0xf]
        %v713 = vld [vmem:[%s596 + $0x8] sm:$0xf]
        %v714 = vld [vmem:[%s596 + $0xc] sm:$0xf]
        %v715 = vld [vmem:[%s600] sm:$0x1]
        %v716 = vlaneseq
        %v717 = vshrl.u32 %v716, 7
        %v718 = vsub.s32 0, %v717
        %v719 = vrot.slane %v715, %v718
        %v724 = vunpack.c.l.b16 %v711
        %v725 = vunpack.c.l.b16 %v712
        %v726 = vunpack.c.l.b16 %v713
        %v727 = vunpack.c.l.b16 %v714
        %v728 = vpack.c.b16 %v725, %v724
        %v729 = vpack.c.b16 %v727, %v726
        %vm732 = vcmask 261120
        %v734 = vsel %vm732, %v710, 0
        %736 = vmatprep.subr.bf16.mxu0 0
        %737 = vmatpush1.bf16.msra.mxu0 %v728
        %738 = vmatprep.subr.bf16.mxu0 0
        %739 = vmatpush1.bf16.msra.mxu0 %v729
        %740 = vmatprep.subr.bf16.mxu0 0
        %741 = vmatpush1.bf16.msra.mxu0 0
        %742 = vmatprep.subr.bf16.mxu0 0
        %743 = vmatpush1.bf16.msra.mxu0 0
        %744 = vmatprep.subr.bf16.mxu0 0
        %745 = vmatpush1.bf16.msra.mxu0 0
        %746 = vmatprep.subr.bf16.mxu0 0
        %747 = vmatpush1.bf16.msra.mxu0 0
        %748 = vmatprep.subr.bf16.mxu0 0
        %749 = vmatpush1.bf16.msra.mxu0 0
        %750 = vmatprep.subr.bf16.mxu0 0
        %751 = vmatpush1.bf16.msra.mxu0 0
        %752 = vmatprep.subr.bf16.mxu0 0
        %753 = vmatpush1.bf16.msra.mxu0 0
        %754 = vmatprep.subr.bf16.mxu0 0
        %755 = vmatpush1.bf16.msra.mxu0 0
        %756 = vmatprep.subr.bf16.mxu0 0
        %757 = vmatpush1.bf16.msra.mxu0 0
        %758 = vmatprep.subr.bf16.mxu0 0
        %759 = vmatpush1.bf16.msra.mxu0 0
        %760 = vmatprep.subr.bf16.mxu0 0
        %761 = vmatpush1.bf16.msra.mxu0 0
        %762 = vmatprep.subr.bf16.mxu0 0
        %763 = vmatpush1.bf16.msra.mxu0 0
        %764 = vmatprep.subr.bf16.mxu0 0
        %765 = vmatpush1.bf16.msra.mxu0 0
        %766 = vmatprep.subr.bf16.mxu0 0
        %767 = vmatpush1.bf16.msra.mxu0 0
        %768 = vmatprep.mubr.bf16.mxu0 0
        %769 = vmatmul.mubr.bf16.gmra.mrb[0].mxu0 %v734
        %v770 = vpop.f32.mrb[0].mxu0
        %v771 = vadd.f32 %v719, %v770
        %v772 = vpop.f32.mrb[0].mxu0
        %v773 = vpop.f32.mrb[0].mxu0
        %v774 = vadd.f32 %v719, %v773
        %v775 = vpop.f32.mrb[0].mxu0
        %776 = vdwg.mxu0
        %s777 = scalar_lea.vmem %s596, 16
        %v778 = vld [vmem:[%s777] sm:$0xf]
        %v779 = vld [vmem:[%s777 + $0x4] sm:$0xf]
        %v780 = vld [vmem:[%s777 + $0x8] sm:$0xf]
        %v781 = vld [vmem:[%s777 + $0xc] sm:$0xf]
        %v782 = vld [vmem:[%s600 + $0x1] sm:$0x1]
        %v783 = vlaneseq
        %v784 = vshrl.u32 %v783, 7
        %v785 = vsub.s32 0, %v784
        %v786 = vrot.slane %v782, %v785
        %v791 = vunpack.c.l.b16 %v778
        %v792 = vunpack.c.l.b16 %v779
        %v793 = vunpack.c.l.b16 %v780
        %v794 = vunpack.c.l.b16 %v781
        %v795 = vpack.c.b16 %v792, %v791
        %v796 = vpack.c.b16 %v794, %v793
        %799 = vmatprep.subr.bf16.mxu0 0
        %800 = vmatpush1.bf16.msra.mxu0 %v795
        %801 = vmatprep.subr.bf16.mxu0 0
        %802 = vmatpush1.bf16.msra.mxu0 %v796
        %803 = vmatprep.subr.bf16.mxu0 0
        %804 = vmatpush1.bf16.msra.mxu0 0
        %805 = vmatprep.subr.bf16.mxu0 0
        %806 = vmatpush1.bf16.msra.mxu0 0
        %807 = vmatprep.subr.bf16.mxu0 0
        %808 = vmatpush1.bf16.msra.mxu0 0
        %809 = vmatprep.subr.bf16.mxu0 0
        %810 = vmatpush1.bf16.msra.mxu0 0
        %811 = vmatprep.subr.bf16.mxu0 0
        %812 = vmatpush1.bf16.msra.mxu0 0
        %813 = vmatprep.subr.bf16.mxu0 0
        %814 = vmatpush1.bf16.msra.mxu0 0
        %815 = vmatprep.subr.bf16.mxu0 0
        %816 = vmatpush1.bf16.msra.mxu0 0
        %817 = vmatprep.subr.bf16.mxu0 0
        %818 = vmatpush1.bf16.msra.mxu0 0
        %819 = vmatprep.subr.bf16.mxu0 0
        %820 = vmatpush1.bf16.msra.mxu0 0
        %821 = vmatprep.subr.bf16.mxu0 0
        %822 = vmatpush1.bf16.msra.mxu0 0
        %823 = vmatprep.subr.bf16.mxu0 0
        %824 = vmatpush1.bf16.msra.mxu0 0
        %825 = vmatprep.subr.bf16.mxu0 0
        %826 = vmatpush1.bf16.msra.mxu0 0
        %827 = vmatprep.subr.bf16.mxu0 0
        %828 = vmatpush1.bf16.msra.mxu0 0
        %829 = vmatprep.subr.bf16.mxu0 0
        %830 = vmatpush1.bf16.msra.mxu0 0
        %831 = vmatprep.mubr.bf16.mxu0 0
        %832 = vmatmul.mubr.bf16.gmra.mrb[0].mxu0 %v734
        %v833 = vpop.f32.mrb[0].mxu0
        %v834 = vadd.f32 %v786, %v833
        %v835 = vpop.f32.mrb[0].mxu0
        %v836 = vpop.f32.mrb[0].mxu0
        %v837 = vadd.f32 %v786, %v836
        %v838 = vpop.f32.mrb[0].mxu0
        %839 = vdwg.mxu0
        %s840 = scalar_lea.vmem %s596, 32
        %v841 = vld [vmem:[%s840] sm:$0xf]
        %v842 = vld [vmem:[%s840 + $0x4] sm:$0xf]
        %v843 = vld [vmem:[%s840 + $0x8] sm:$0xf]
        %v844 = vld [vmem:[%s840 + $0xc] sm:$0xf]
        %v845 = vld [vmem:[%s600 + $0x2] sm:$0x1]
        %v846 = vlaneseq
        %v847 = vshrl.u32 %v846, 7
        %v848 = vsub.s32 0, %v847
        %v849 = vrot.slane %v845, %v848
        %v854 = vunpack.c.l.b16 %v841
        %v855 = vunpack.c.l.b16 %v842
        %v856 = vunpack.c.l.b16 %v843
        %v857 = vunpack.c.l.b16 %v844
        %v858 = vpack.c.b16 %v855, %v854
        %v859 = vpack.c.b16 %v857, %v856
        %862 = vmatprep.subr.bf16.mxu0 0
        %863 = vmatpush1.bf16.msra.mxu0 %v858
        %864 = vmatprep.subr.bf16.mxu0 0
        %865 = vmatpush1.bf16.msra.mxu0 %v859
        %866 = vmatprep.subr.bf16.mxu0 0
        %867 = vmatpush1.bf16.msra.mxu0 0
        %868 = vmatprep.subr.bf16.mxu0 0
        %869 = vmatpush1.bf16.msra.mxu0 0
        %870 = vmatprep.subr.bf16.mxu0 0
        %871 = vmatpush1.bf16.msra.mxu0 0
        %872 = vmatprep.subr.bf16.mxu0 0
        %873 = vmatpush1.bf16.msra.mxu0 0
        %874 = vmatprep.subr.bf16.mxu0 0
        %875 = vmatpush1.bf16.msra.mxu0 0
        %876 = vmatprep.subr.bf16.mxu0 0
        %877 = vmatpush1.bf16.msra.mxu0 0
        %878 = vmatprep.subr.bf16.mxu0 0
        %879 = vmatpush1.bf16.msra.mxu0 0
        %880 = vmatprep.subr.bf16.mxu0 0
        %881 = vmatpush1.bf16.msra.mxu0 0
        %882 = vmatprep.subr.bf16.mxu0 0
        %883 = vmatpush1.bf16.msra.mxu0 0
        %884 = vmatprep.subr.bf16.mxu0 0
        %885 = vmatpush1.bf16.msra.mxu0 0
        %886 = vmatprep.subr.bf16.mxu0 0
        %887 = vmatpush1.bf16.msra.mxu0 0
        %888 = vmatprep.subr.bf16.mxu0 0
        %889 = vmatpush1.bf16.msra.mxu0 0
        %890 = vmatprep.subr.bf16.mxu0 0
        %891 = vmatpush1.bf16.msra.mxu0 0
        %892 = vmatprep.subr.bf16.mxu0 0
        %893 = vmatpush1.bf16.msra.mxu0 0
        %894 = vmatprep.mubr.bf16.mxu0 0
        %895 = vmatmul.mubr.bf16.gmra.mrb[0].mxu0 %v734
        %v896 = vpop.f32.mrb[0].mxu0
        %v897 = vadd.f32 %v849, %v896
        %v898 = vpop.f32.mrb[0].mxu0
        %v899 = vpop.f32.mrb[0].mxu0
        %v900 = vadd.f32 %v849, %v899
        %v901 = vpop.f32.mrb[0].mxu0
        %902 = vdwg.mxu0
        %v903 = vpack.c.bf16 %v771, %v771
        %v904 = vpack.c.bf16 %v774, %v774
        %v905 = vpack.c.bf16 %v834, %v834
        %v906 = vpack.c.bf16 %v837, %v837
        %v908 = vsel %vm732, %v903, 0
        %v911 = vsel %vm732, %v905, 0
        %913 = vmatprep.subr.bf16.mxu0 0
        %914 = vmatpush1.bf16.xpose.msra.mxu0 %v911
        %915 = vmatprep.subr.bf16.mxu0 0
        %916 = vmatpush1.bf16.xpose.msra.mxu0 0
        %917 = vmatprep.subr.bf16.mxu0 0
        %918 = vmatpush1.bf16.xpose.msra.mxu0 0
        %919 = vmatprep.subr.bf16.mxu0 0
        %920 = vmatpush1.bf16.xpose.msra.mxu0 0
        %921 = vmatprep.subr.bf16.mxu0 0
        %922 = vmatpush1.bf16.xpose.msra.mxu0 0
        %923 = vmatprep.subr.bf16.mxu0 0
        %924 = vmatpush1.bf16.xpose.msra.mxu0 0
        %925 = vmatprep.subr.bf16.mxu0 0
        %926 = vmatpush1.bf16.xpose.msra.mxu0 0
        %927 = vmatprep.subr.bf16.mxu0 0
        %928 = vmatpush1.bf16.xpose.msra.mxu0 0
        %929 = vmatprep.subr.bf16.mxu0 0
        %930 = vmatpush1.bf16.xpose.msra.mxu0 0
        %931 = vmatprep.subr.bf16.mxu0 0
        %932 = vmatpush1.bf16.xpose.msra.mxu0 0
        %933 = vmatprep.subr.bf16.mxu0 0
        %934 = vmatpush1.bf16.xpose.msra.mxu0 0
        %935 = vmatprep.subr.bf16.mxu0 0
        %936 = vmatpush1.bf16.xpose.msra.mxu0 0
        %937 = vmatprep.subr.bf16.mxu0 0
        %938 = vmatpush1.bf16.xpose.msra.mxu0 0
        %939 = vmatprep.subr.bf16.mxu0 0
        %940 = vmatpush1.bf16.xpose.msra.mxu0 0
        %941 = vmatprep.subr.bf16.mxu0 0
        %942 = vmatpush1.bf16.xpose.msra.mxu0 0
        %943 = vmatprep.subr.bf16.mxu0 0
        %944 = vmatpush1.bf16.xpose.msra.mxu0 0
        %945 = vmatprep.mubr.bf16.mxu0 0
        %946 = vmatmul.mubr.bf16.gmra.mrb[0].mxu0 %v908
        %v947 = vpop.f32.mrb[0].mxu0
        %v948 = vadd.f32 0.0, %v947
        %v949 = vpop.f32.mrb[0].mxu0
        %v950 = vpop.f32.mrb[0].mxu0
        %v951 = vpop.f32.mrb[0].mxu0
        %952 = vdwg.mxu0
        %v954 = vsel %vm732, %v904, 0
        %v957 = vsel %vm732, %v906, 0
        %959 = vmatprep.subr.bf16.mxu0 0
        %960 = vmatpush1.bf16.xpose.msra.mxu0 %v957
        %961 = vmatprep.subr.bf16.mxu0 0
        %962 = vmatpush1.bf16.xpose.msra.mxu0 0
        %963 = vmatprep.subr.bf16.mxu0 0
        %964 = vmatpush1.bf16.xpose.msra.mxu0 0
        %965 = vmatprep.subr.bf16.mxu0 0
        %966 = vmatpush1.bf16.xpose.msra.mxu0 0
        %967 = vmatprep.subr.bf16.mxu0 0
        %968 = vmatpush1.bf16.xpose.msra.mxu0 0
        %969 = vmatprep.subr.bf16.mxu0 0
        %970 = vmatpush1.bf16.xpose.msra.mxu0 0
        %971 = vmatprep.subr.bf16.mxu0 0
        %972 = vmatpush1.bf16.xpose.msra.mxu0 0
        %973 = vmatprep.subr.bf16.mxu0 0
        %974 = vmatpush1.bf16.xpose.msra.mxu0 0
        %975 = vmatprep.subr.bf16.mxu0 0
        %976 = vmatpush1.bf16.xpose.msra.mxu0 0
        %977 = vmatprep.subr.bf16.mxu0 0
        %978 = vmatpush1.bf16.xpose.msra.mxu0 0
        %979 = vmatprep.subr.bf16.mxu0 0
        %980 = vmatpush1.bf16.xpose.msra.mxu0 0
        %981 = vmatprep.subr.bf16.mxu0 0
        %982 = vmatpush1.bf16.xpose.msra.mxu0 0
        %983 = vmatprep.subr.bf16.mxu0 0
        %984 = vmatpush1.bf16.xpose.msra.mxu0 0
        %985 = vmatprep.subr.bf16.mxu0 0
        %986 = vmatpush1.bf16.xpose.msra.mxu0 0
        %987 = vmatprep.subr.bf16.mxu0 0
        %988 = vmatpush1.bf16.xpose.msra.mxu0 0
        %989 = vmatprep.subr.bf16.mxu0 0
        %990 = vmatpush1.bf16.xpose.msra.mxu0 0
        %991 = vmatprep.mubr.bf16.mxu0 0
        %992 = vmatmul.mubr.bf16.gmra.mrb[0].mxu0 %v954
        %v993 = vpop.f32.mrb[0].mxu0
        %v994 = vadd.f32 0.0, %v993
        %v995 = vpop.f32.mrb[0].mxu0
        %v996 = vpop.f32.mrb[0].mxu0
        %v997 = vpop.f32.mrb[0].mxu0
        %998 = vdwg.mxu0
        %v999 = vmul.f32 %v948, 0.17677669
        %v1000 = vmul.f32 %v994, 0.17677669
        %vm1001 = vcmask 64512
        %v1002 = vsel %vm1001, %v999, -inf
        %1003 = vmax.xlane.f32.xlu0 %v1002
        %v1004 = vpop.xlane.xlu0 %1003
        %v1005 = vsel %vm1001, %v1000, -inf
        %1006 = vmax.xlane.f32.xlu0 %v1005
        %v1007 = vpop.xlane.xlu0 %1006
        %v1008 = vsub.f32 %v999, %v1004
        %v1009 = vsub.f32 %v1000, %v1007
        %v1010 = vmul.f32 %v1008, 1.442695
        %v1011 = vpow.pop %v1010
        %v1012 = vmul.f32 %v1009, 1.442695
        %v1013 = vpow.pop %v1012
        %v1014 = vsel %vm1001, %v1011, 0.0
        %1015 = vadd.xlane.f32.xlu0 %v1014
        %v1016 = vpop.xlane.xlu0 %1015
        %v1017 = vsel %vm1001, %v1013, 0.0
        %1018 = vadd.xlane.f32.xlu0 %v1017
        %v1019 = vpop.xlane.xlu0 %1018
        %v1020 = vrcp.pop %v1016
        %v1021 = vrcp.pop %v1019
        %v1022 = vmul.f32 %v1011, %v1020
        %v1023 = vmul.f32 %v1013, %v1021
        %v1024 = vpack.c.bf16 %v1022, %v1022
        %v1025 = vpack.c.bf16 %v1023, %v1023
        %v1026 = vpack.c.bf16 %v897, %v897
        %v1027 = vpack.c.bf16 %v900, %v900
        %v1029 = vsel %vm1001, %v1024, 0
        %vm1031 = vcmask 1043456
        %v1033 = vsel %vm1031, %v1026, 0
        %1035 = vmatprep.subr.bf16.mxu0 0
        %1036 = vmatpush1.bf16.msra.mxu0 %v1033
        %1037 = vmatprep.subr.bf16.mxu0 0
        %1038 = vmatpush1.bf16.msra.mxu0 0
        %1039 = vmatprep.subr.bf16.mxu0 0
        %1040 = vmatpush1.bf16.msra.mxu0 0
        %1041 = vmatprep.subr.bf16.mxu0 0
        %1042 = vmatpush1.bf16.msra.mxu0 0
        %1043 = vmatprep.subr.bf16.mxu0 0
        %1044 = vmatpush1.bf16.msra.mxu0 0
        %1045 = vmatprep.subr.bf16.mxu0 0
        %1046 = vmatpush1.bf16.msra.mxu0 0
        %1047 = vmatprep.subr.bf16.mxu0 0
        %1048 = vmatpush1.bf16.msra.mxu0 0
        %1049 = vmatprep.subr.bf16.mxu0 0
        %1050 = vmatpush1.bf16.msra.mxu0 0
        %1051 = vmatprep.subr.bf16.mxu0 0
        %1052 = vmatpush1.bf16.msra.mxu0 0
        %1053 = vmatprep.subr.bf16.mxu0 0
        %1054 = vmatpush1.bf16.msra.mxu0 0
        %1055 = vmatprep.subr.bf16.mxu0 0
        %1056 = vmatpush1.bf16.msra.mxu0 0
        %1057 = vmatprep.subr.bf16.mxu0 0
        %1058 = vmatpush1.bf16.msra.mxu0 0
        %1059 = vmatprep.subr.bf16.mxu0 0
        %1060 = vmatpush1.bf16.msra.mxu0 0
        %1061 = vmatprep.subr.bf16.mxu0 0
        %1062 = vmatpush1.bf16.msra.mxu0 0
        %1063 = vmatprep.subr.bf16.mxu0 0
        %1064 = vmatpush1.bf16.msra.mxu0 0
        %1065 = vmatprep.subr.bf16.mxu0 0
        %1066 = vmatpush1.bf16.msra.mxu0 0
        %1067 = vmatprep.mubr.bf16.mxu0 0
        %1068 = vmatmul.mubr.bf16.gmra.mrb[0].mxu0 %v1029
        %v1069 = vpop.f32.mrb[0].mxu0
        %v1070 = vadd.f32 0.0, %v1069
        %v1071 = vpop.f32.mrb[0].mxu0
        %v1072 = vpop.f32.mrb[0].mxu0
        %v1073 = vpop.f32.mrb[0].mxu0
        %1074 = vdwg.mxu0
        %v1076 = vsel %vm1001, %v1025, 0
        %v1079 = vsel %vm1031, %v1027, 0
        %1081 = vmatprep.subr.bf16.mxu0 0
        %1082 = vmatpush1.bf16.msra.mxu0 %v1079
        %1083 = vmatprep.subr.bf16.mxu0 0
        %1084 = vmatpush1.bf16.msra.mxu0 0
        %1085 = vmatprep.subr.bf16.mxu0 0
        %1086 = vmatpush1.bf16.msra.mxu0 0
        %1087 = vmatprep.subr.bf16.mxu0 0
        %1088 = vmatpush1.bf16.msra.mxu0 0
        %1089 = vmatprep.subr.bf16.mxu0 0
        %1090 = vmatpush1.bf16.msra.mxu0 0
        %1091 = vmatprep.subr.bf16.mxu0 0
        %1092 = vmatpush1.bf16.msra.mxu0 0
        %1093 = vmatprep.subr.bf16.mxu0 0
        %1094 = vmatpush1.bf16.msra.mxu0 0
        %1095 = vmatprep.subr.bf16.mxu0 0
        %1096 = vmatpush1.bf16.msra.mxu0 0
        %1097 = vmatprep.subr.bf16.mxu0 0
        %1098 = vmatpush1.bf16.msra.mxu0 0
        %1099 = vmatprep.subr.bf16.mxu0 0
        %1100 = vmatpush1.bf16.msra.mxu0 0
        %1101 = vmatprep.subr.bf16.mxu0 0
        %1102 = vmatpush1.bf16.msra.mxu0 0
        %1103 = vmatprep.subr.bf16.mxu0 0
        %1104 = vmatpush1.bf16.msra.mxu0 0
        %1105 = vmatprep.subr.bf16.mxu0 0
        %1106 = vmatpush1.bf16.msra.mxu0 0
        %1107 = vmatprep.subr.bf16.mxu0 0
        %1108 = vmatpush1.bf16.msra.mxu0 0
        %1109 = vmatprep.subr.bf16.mxu0 0
        %1110 = vmatpush1.bf16.msra.mxu0 0
        %1111 = vmatprep.subr.bf16.mxu0 0
        %1112 = vmatpush1.bf16.msra.mxu0 0
        %1113 = vmatprep.mubr.bf16.mxu0 0
        %1114 = vmatmul.mubr.bf16.gmra.mrb[0].mxu0 %v1076
        %v1115 = vpop.f32.mrb[0].mxu0
        %v1116 = vadd.f32 0.0, %v1115
        %v1117 = vpop.f32.mrb[0].mxu0
        %v1118 = vpop.f32.mrb[0].mxu0
        %v1119 = vpop.f32.mrb[0].mxu0
        %1120 = vdwg.mxu0
        %v1121 = vpack.c.bf16 %v1116, %v1070
        %v1122 = vld [vmem:[%s605] sm:$0xf]
        %v1123 = vld [vmem:[%s605 + $0x4] sm:$0xf]
        %v1124 = vld [vmem:[%s605 + $0x8] sm:$0xf]
        %v1125 = vld [vmem:[%s605 + $0xc] sm:$0xf]
        %v1126 = vlaneseq
        %v1127 = vshrl.u32 %v1126, 7
        %v1128 = vsub.s32 0, %v1127
        %v1129 = vrot.slane %v620, %v1128
        %v1134 = vunpack.c.l.b16 %v1122
        %v1135 = vunpack.c.l.b16 %v1123
        %v1136 = vunpack.c.l.b16 %v1124
        %v1137 = vunpack.c.l.b16 %v1125
        %v1138 = vpack.c.b16 %v1135, %v1134
        %v1139 = vpack.c.b16 %v1137, %v1136
        %v1143 = vsel %vm732, %v1121, 0
        %1145 = vmatprep.subr.bf16.mxu0 0
        %1146 = vmatpush1.bf16.msra.mxu0 %v1138
        %1147 = vmatprep.subr.bf16.mxu0 0
        %1148 = vmatpush1.bf16.msra.mxu0 %v1139
        %1149 = vmatprep.subr.bf16.mxu0 0
        %1150 = vmatpush1.bf16.msra.mxu0 0
        %1151 = vmatprep.subr.bf16.mxu0 0
        %1152 = vmatpush1.bf16.msra.mxu0 0
        %1153 = vmatprep.subr.bf16.mxu0 0
        %1154 = vmatpush1.bf16.msra.mxu0 0
        %1155 = vmatprep.subr.bf16.mxu0 0
        %1156 = vmatpush1.bf16.msra.mxu0 0
        %1157 = vmatprep.subr.bf16.mxu0 0
        %1158 = vmatpush1.bf16.msra.mxu0 0
        %1159 = vmatprep.subr.bf16.mxu0 0
        %1160 = vmatpush1.bf16.msra.mxu0 0
        %1161 = vmatprep.subr.bf16.mxu0 0
        %1162 = vmatpush1.bf16.msra.mxu0 0
        %1163 = vmatprep.subr.bf16.mxu0 0
        %1164 = vmatpush1.bf16.msra.mxu0 0
        %1165 = vmatprep.subr.bf16.mxu0 0
        %1166 = vmatpush1.bf16.msra.mxu0 0
        %1167 = vmatprep.subr.bf16.mxu0 0
        %1168 = vmatpush1.bf16.msra.mxu0 0
        %1169 = vmatprep.subr.bf16.mxu0 0
        %1170 = vmatpush1.bf16.msra.mxu0 0
        %1171 = vmatprep.subr.bf16.mxu0 0
        %1172 = vmatpush1.bf16.msra.mxu0 0
        %1173 = vmatprep.subr.bf16.mxu0 0
        %1174 = vmatpush1.bf16.msra.mxu0 0
        %1175 = vmatprep.subr.bf16.mxu0 0
        %1176 = vmatpush1.bf16.msra.mxu0 0
        %1177 = vmatprep.mubr.bf16.mxu0 0
        %1178 = vmatmul.mubr.bf16.gmra.mrb[0].mxu0 %v1143
        %v1179 = vpop.f32.mrb[0].mxu0
        %v1180 = vadd.f32 %v1129, %v1179
        %v1181 = vpop.f32.mrb[0].mxu0
        %v1182 = vpop.f32.mrb[0].mxu0
        %v1183 = vadd.f32 %v1129, %v1182
        %v1184 = vpop.f32.mrb[0].mxu0
        %1185 = vdwg.mxu0
        %v1186 = vadd.f32 %v708, %v1180
        %v1187 = vadd.f32 %v709, %v1183
        %v1188 = vsel %vm732, %v1186, 0.0
        %1189 = vadd.xlane.f32.xlu0 %v1188
        %v1190 = vpop.xlane.xlu0 %1189
        %v1191 = vsel %vm732, %v1187, 0.0
        %1192 = vadd.xlane.f32.xlu0 %v1191
        %v1193 = vpop.xlane.xlu0 %1192
        %v1194 = vrcp.pop 32.0
        %v1195 = vmul.f32 %v1190, %v1194
        %v1196 = vmul.f32 %v1193, %v1194
        %v1197 = vsub.f32 %v1186, %v1195
        %v1198 = vsub.f32 %v1187, %v1196
        %v1199 = vmul.f32 %v1197, %v1197
        %v1200 = vmul.f32 %v1198, %v1198
        %v1201 = vsel %vm732, %v1199, 0.0
        %1202 = vadd.xlane.f32.xlu0 %v1201
        %v1203 = vpop.xlane.xlu0 %1202
        %v1204 = vsel %vm732, %v1200, 0.0
        %1205 = vadd.xlane.f32.xlu0 %v1204
        %v1206 = vpop.xlane.xlu0 %1205
        %v1207 = vmul.f32 %v1203, %v1194
        %v1208 = vmul.f32 %v1206, %v1194
        %v1209 = vadd.f32 %v1207, 1e-05
        %v1210 = vadd.f32 %v1208, 1e-05
        %v1211 = vrsqrt.pop %v1209
        %v1212 = vrsqrt.pop %v1210
        %v1213 = vmul.f32 %v1197, %v1211
        %v1214 = vmul.f32 %v1198, %v1212
        %v1215 = vlaneseq
        %v1216 = vshrl.u32 %v1215, 7
        %v1217 = vsub.s32 0, %v1216
        %v1218 = vrot.slane %v621, %v1217
        %v1219 = vmul.f32 %v1213, %v1218
        %v1220 = vmul.f32 %v1214, %v1218
        %v1221 = vlaneseq
        %v1222 = vshrl.u32 %v1221, 7
        %v1223 = vsub.s32 0, %v1222
        %v1224 = vrot.slane %v622, %v1223
        %v1225 = vadd.f32 %v1219, %v1224
        %v1226 = vadd.f32 %v1220, %v1224
        %p1227 = scmp.lt.s32.totalorder %s33, 1
        // Predicated region
        $region81: #{_lambda_.1} parent=71 // pred_check
          %p1228 = pneg %p1227
        $region82: #{_lambda_.1} parent=71 // pred_check_branch
          %1230 = sbr.rel (%p1228) target = $region84
        $region83: #{_lambda_.1} parent=71 // pred_region
          %v1231 = vpack.c.bf16 %v1226, %v1225
          %v1232 = vld [vmem:[%s610] sm:$0xff]
          %v1233 = vld [vmem:[%s610 + $0x8] sm:$0xff]
          %v1234 = vld [vmem:[%s610 + $0x10] sm:$0xff]
          %v1235 = vld [vmem:[%s610 + $0x18] sm:$0xff]
          %v1236 = vld [vmem:[%s610 + $0x20] sm:$0xff]
          %v1237 = vld [vmem:[%s610 + $0x28] sm:$0xff]
          %v1238 = vld [vmem:[%s610 + $0x30] sm:$0xff]
          %v1239 = vld [vmem:[%s610 + $0x38] sm:$0xff]
          %v1240 = vld [vmem:[%s610 + $0x40] sm:$0xff]
          %v1241 = vld [vmem:[%s610 + $0x48] sm:$0xff]
          %v1242 = vld [vmem:[%s610 + $0x50] sm:$0xff]
          %v1243 = vld [vmem:[%s610 + $0x58] sm:$0xff]
          %v1244 = vld [vmem:[%s610 + $0x60] sm:$0xff]
          %v1245 = vld [vmem:[%s610 + $0x68] sm:$0xff]
          %v1246 = vld [vmem:[%s610 + $0x70] sm:$0xff]
          %v1247 = vld [vmem:[%s610 + $0x78] sm:$0xff]
          %v1248 = vld [vmem:[%s610 + $0x80] sm:$0xff]
          %v1249 = vld [vmem:[%s610 + $0x88] sm:$0xff]
          %v1250 = vld [vmem:[%s610 + $0x90] sm:$0xff]
          %v1251 = vld [vmem:[%s610 + $0x98] sm:$0xff]
          %v1252 = vld [vmem:[%s610 + $0xa0] sm:$0xff]
          %v1253 = vld [vmem:[%s610 + $0xa8] sm:$0xff]
          %v1254 = vld [vmem:[%s610 + $0xb0] sm:$0xff]
          %v1255 = vld [vmem:[%s610 + $0xb8] sm:$0xff]
          %v1256 = vld [vmem:[%s610 + $0xc0] sm:$0xff]
          %v1257 = vld [vmem:[%s610 + $0xc8] sm:$0xff]
          %v1258 = vld [vmem:[%s610 + $0xd0] sm:$0xff]
          %v1259 = vld [vmem:[%s610 + $0xd8] sm:$0xff]
          %v1260 = vld [vmem:[%s610 + $0xe0] sm:$0xff]
          %v1261 = vld [vmem:[%s610 + $0xe8] sm:$0xff]
          %v1262 = vld [vmem:[%s610 + $0xf0] sm:$0xff]
          %v1263 = vld [vmem:[%s610 + $0xf8] sm:$0xff]
          %v1264 = vld [vmem:[%s614] sm:$0xff]
          %v1265 = vld [vmem:[%s614 + $0x8] sm:$0xff]
          %v1268 = vlaneseq
          %v1269 = vshrl.u32 %v1268, 7
          %v1270 = vsub.s32 0, %v1269
          %v1271 = vrot.slane %v1264, %v1270
          %v1272 = vlaneseq
          %v1273 = vshrl.u32 %v1272, 7
          %v1274 = vsub.s32 1, %v1273
          %v1275 = vrot.slane %v1264, %v1274
          %v1276 = vlaneseq
          %v1277 = vshrl.u32 %v1276, 7
          %v1278 = vsub.s32 2, %v1277
          %v1279 = vrot.slane %v1264, %v1278
          %v1280 = vlaneseq
          %v1281 = vshrl.u32 %v1280, 7
          %v1282 = vsub.s32 3, %v1281
          %v1283 = vrot.slane %v1264, %v1282
          %v1284 = vlaneseq
          %v1285 = vshrl.u32 %v1284, 7
          %v1286 = vsub.s32 4, %v1285
          %v1287 = vrot.slane %v1264, %v1286
          %v1288 = vlaneseq
          %v1289 = vshrl.u32 %v1288, 7
          %v1290 = vsub.s32 5, %v1289
          %v1291 = vrot.slane %v1264, %v1290
          %v1292 = vlaneseq
          %v1293 = vshrl.u32 %v1292, 7
          %v1294 = vsub.s32 6, %v1293
          %v1295 = vrot.slane %v1264, %v1294
          %v1296 = vlaneseq
          %v1297 = vshrl.u32 %v1296, 7
          %v1298 = vsub.s32 7, %v1297
          %v1299 = vrot.slane %v1264, %v1298
          %v1300 = vlaneseq
          %v1301 = vshrl.u32 %v1300, 7
          %v1302 = vsub.s32 0, %v1301
          %v1303 = vrot.slane %v1265, %v1302
          %v1304 = vlaneseq
          %v1305 = vshrl.u32 %v1304, 7
          %v1306 = vsub.s32 1, %v1305
          %v1307 = vrot.slane %v1265, %v1306
          %v1308 = vlaneseq
          %v1309 = vshrl.u32 %v1308, 7
          %v1310 = vsub.s32 2, %v1309
          %v1311 = vrot.slane %v1265, %v1310
          %v1312 = vlaneseq
          %v1313 = vshrl.u32 %v1312, 7
          %v1314 = vsub.s32 3, %v1313
          %v1315 = vrot.slane %v1265, %v1314
          %v1316 = vlaneseq
          %v1317 = vshrl.u32 %v1316, 7
          %v1318 = vsub.s32 4, %v1317
          %v1319 = vrot.slane %v1265, %v1318
          %v1320 = vlaneseq
          %v1321 = vshrl.u32 %v1320, 7
          %v1322 = vsub.s32 5, %v1321
          %v1323 = vrot.slane %v1265, %v1322
          %v1324 = vlaneseq
          %v1325 = vshrl.u32 %v1324, 7
          %v1326 = vsub.s32 6, %v1325
          %v1327 = vrot.slane %v1265, %v1326
          %v1328 = vlaneseq
          %v1329 = vshrl.u32 %v1328, 7
          %v1330 = vsub.s32 7, %v1329
          %v1331 = vrot.slane %v1265, %v1330
          %v1380 = vunpack.c.l.b16 %v1232
          %v1381 = vunpack.c.h.b16 %v1232
          %v1382 = vunpack.c.l.b16 %v1233
          %v1383 = vunpack.c.h.b16 %v1233
          %v1384 = vunpack.c.l.b16 %v1234
          %v1385 = vunpack.c.h.b16 %v1234
          %v1386 = vunpack.c.l.b16 %v1235
          %v1387 = vunpack.c.h.b16 %v1235
          %v1388 = vunpack.c.l.b16 %v1236
          %v1389 = vunpack.c.h.b16 %v1236
          %v1390 = vunpack.c.l.b16 %v1237
          %v1391 = vunpack.c.h.b16 %v1237
          %v1392 = vunpack.c.l.b16 %v1238
          %v1393 = vunpack.c.h.b16 %v1238
          %v1394 = vunpack.c.l.b16 %v1239
          %v1395 = vunpack.c.h.b16 %v1239
          %v1396 = vunpack.c.l.b16 %v1240
          %v1397 = vunpack.c.h.b16 %v1240
          %v1398 = vunpack.c.l.b16 %v1241
          %v1399 = vunpack.c.h.b16 %v1241
          %v1400 = vunpack.c.l.b16 %v1242
          %v1401 = vunpack.c.h.b16 %v1242
          %v1402 = vunpack.c.l.b16 %v1243
          %v1403 = vunpack.c.h.b16 %v1243
          %v1404 = vunpack.c.l.b16 %v1244
          %v1405 = vunpack.c.h.b16 %v1244
          %v1406 = vunpack.c.l.b16 %v1245
          %v1407 = vunpack.c.h.b16 %v1245
          %v1408 = vunpack.c.l.b16 %v1246
          %v1409 = vunpack.c.h.b16 %v1246
          %v1410 = vunpack.c.l.b16 %v1247
          %v1411 = vunpack.c.h.b16 %v1247
          %v1412 = vunpack.c.l.b16 %v1248
          %v1413 = vunpack.c.h.b16 %v1248
          %v1414 = vunpack.c.l.b16 %v1249
          %v1415 = vunpack.c.h.b16 %v1249
          %v1416 = vunpack.c.l.b16 %v1250
          %v1417 = vunpack.c.h.b16 %v1250
          %v1418 = vunpack.c.l.b16 %v1251
          %v1419 = vunpack.c.h.b16 %v1251
          %v1420 = vunpack.c.l.b16 %v1252
          %v1421 = vunpack.c.h.b16 %v1252
          %v1422 = vunpack.c.l.b16 %v1253
          %v1423 = vunpack.c.h.b16 %v1253
          %v1424 = vunpack.c.l.b16 %v1254
          %v1425 = vunpack.c.h.b16 %v1254
          %v1426 = vunpack.c.l.b16 %v1255
          %v1427 = vunpack.c.h.b16 %v1255
          %v1428 = vunpack.c.l.b16 %v1256
          %v1429 = vunpack.c.h.b16 %v1256
          %v1430 = vunpack.c.l.b16 %v1257
          %v1431 = vunpack.c.h.b16 %v1257
          %v1432 = vunpack.c.l.b16 %v1258
          %v1433 = vunpack.c.h.b16 %v1258
          %v1434 = vunpack.c.l.b16 %v1259
          %v1435 = vunpack.c.h.b16 %v1259
          %v1436 = vunpack.c.l.b16 %v1260
          %v1437 = vunpack.c.h.b16 %v1260
          %v1438 = vunpack.c.l.b16 %v1261
          %v1439 = vunpack.c.h.b16 %v1261
          %v1440 = vunpack.c.l.b16 %v1262
          %v1441 = vunpack.c.h.b16 %v1262
          %v1442 = vunpack.c.l.b16 %v1263
          %v1443 = vunpack.c.h.b16 %v1263
          %v1444 = vpack.c.b16 %v1396, %v1380
          %v1445 = vpack.c.b16 %v1397, %v1381
          %v1446 = vpack.c.b16 %v1398, %v1382
          %v1447 = vpack.c.b16 %v1399, %v1383
          %v1448 = vpack.c.b16 %v1400, %v1384
          %v1449 = vpack.c.b16 %v1401, %v1385
          %v1450 = vpack.c.b16 %v1402, %v1386
          %v1451 = vpack.c.b16 %v1403, %v1387
          %v1452 = vpack.c.b16 %v1404, %v1388
          %v1453 = vpack.c.b16 %v1405, %v1389
          %v1454 = vpack.c.b16 %v1406, %v1390
          %v1455 = vpack.c.b16 %v1407, %v1391
          %v1456 = vpack.c.b16 %v1408, %v1392
          %v1457 = vpack.c.b16 %v1409, %v1393
          %v1458 = vpack.c.b16 %v1410, %v1394
          %v1459 = vpack.c.b16 %v1411, %v1395
          %v1460 = vpack.c.b16 %v1428, %v1412
          %v1461 = vpack.c.b16 %v1429, %v1413
          %v1462 = vpack.c.b16 %v1430, %v1414
          %v1463 = vpack.c.b16 %v1431, %v1415
          %v1464 = vpack.c.b16 %v1432, %v1416
          %v1465 = vpack.c.b16 %v1433, %v1417
          %v1466 = vpack.c.b16 %v1434, %v1418
          %v1467 = vpack.c.b16 %v1435, %v1419
          %v1468 = vpack.c.b16 %v1436, %v1420
          %v1469 = vpack.c.b16 %v1437, %v1421
          %v1470 = vpack.c.b16 %v1438, %v1422
          %v1471 = vpack.c.b16 %v1439, %v1423
          %v1472 = vpack.c.b16 %v1440, %v1424
          %v1473 = vpack.c.b16 %v1441, %v1425
          %v1474 = vpack.c.b16 %v1442, %v1426
          %v1475 = vpack.c.b16 %v1443, %v1427
          %v1509 = vsel %vm732, %v1231, 0
          %1511 = vmatprep.subr.bf16.mxu0 %v1445
          %1512 = vmatpush1.bf16.msra.mxu0 %v1444
          %1513 = vmatprep.subr.bf16.mxu0 %v1461
          %1514 = vmatpush1.bf16.msra.mxu0 %v1460
          %1515 = vmatprep.subr.bf16.mxu0 0
          %1516 = vmatpush1.bf16.msra.mxu0 0
          %1517 = vmatprep.subr.bf16.mxu0 0
          %1518 = vmatpush1.bf16.msra.mxu0 0
          %1519 = vmatprep.subr.bf16.mxu0 0
          %1520 = vmatpush1.bf16.msra.mxu0 0
          %1521 = vmatprep.subr.bf16.mxu0 0
          %1522 = vmatpush1.bf16.msra.mxu0 0
          %1523 = vmatprep.subr.bf16.mxu0 0
          %1524 = vmatpush1.bf16.msra.mxu0 0
          %1525 = vmatprep.subr.bf16.mxu0 0
          %1526 = vmatpush1.bf16.msra.mxu0 0
          %1527 = vmatprep.subr.bf16.mxu0 0
          %1528 = vmatpush1.bf16.msra.mxu0 0
          %1529 = vmatprep.subr.bf16.mxu0 0
          %1530 = vmatpush1.bf16.msra.mxu0 0
          %1531 = vmatprep.subr.bf16.mxu0 0
          %1532 = vmatpush1.bf16.msra.mxu0 0
          %1533 = vmatprep.subr.bf16.mxu0 0
          %1534 = vmatpush1.bf16.msra.mxu0 0
          %1535 = vmatprep.subr.bf16.mxu0 0
          %1536 = vmatpush1.bf16.msra.mxu0 0
          %1537 = vmatprep.subr.bf16.mxu0 0
          %1538 = vmatpush1.bf16.msra.mxu0 0
          %1539 = vmatprep.subr.bf16.mxu0 0
          %1540 = vmatpush1.bf16.msra.mxu0 0
          %1541 = vmatprep.subr.bf16.mxu0 0
          %1542 = vmatpush1.bf16.msra.mxu0 0
          %1543 = vmatprep.mubr.bf16.mxu0 0
          %1544 = vmatmul.mubr.bf16.gmra.mrb[0].mxu0 %v1509
          %v1545 = vpop.f32.mrb[0].mxu0
          %v1546 = vadd.f32 %v1271, %v1545
          %v1547 = vpop.f32.mrb[0].mxu0
          %v1548 = vadd.f32 %v1275, %v1547
          %v1549 = vpop.f32.mrb[0].mxu0
          %v1550 = vadd.f32 %v1271, %v1549
          %v1551 = vpop.f32.mrb[0].mxu0
          %v1552 = vadd.f32 %v1275, %v1551
          %1553 = vdwg.mxu0
          %1554 = vmatprep.subr.bf16.mxu0 %v1447
          %1555 = vmatpush1.bf16.msra.mxu0 %v1446
          %1556 = vmatprep.subr.bf16.mxu0 %v1463
          %1557 = vmatpush1.bf16.msra.mxu0 %v1462
          %1558 = vmatprep.subr.bf16.mxu0 0
          %1559 = vmatpush1.bf16.msra.mxu0 0
          %1560 = vmatprep.subr.bf16.mxu0 0
          %1561 = vmatpush1.bf16.msra.mxu0 0
          %1562 = vmatprep.subr.bf16.mxu0 0
          %1563 = vmatpush1.bf16.msra.mxu0 0
          %1564 = vmatprep.subr.bf16.mxu0 0
          %1565 = vmatpush1.bf16.msra.mxu0 0
          %1566 = vmatprep.subr.bf16.mxu0 0
          %1567 = vmatpush1.bf16.msra.mxu0 0
          %1568 = vmatprep.subr.bf16.mxu0 0
          %1569 = vmatpush1.bf16.msra.mxu0 0
          %1570 = vmatprep.subr.bf16.mxu0 0
          %1571 = vmatpush1.bf16.msra.mxu0 0
          %1572 = vmatprep.subr.bf16.mxu0 0
          %1573 = vmatpush1.bf16.msra.mxu0 0
          %1574 = vmatprep.subr.bf16.mxu0 0
          %1575 = vmatpush1.bf16.msra.mxu0 0
          %1576 = vmatprep.subr.bf16.mxu0 0
          %1577 = vmatpush1.bf16.msra.mxu0 0
          %1578 = vmatprep.subr.bf16.mxu0 0
          %1579 = vmatpush1.bf16.msra.mxu0 0
          %1580 = vmatprep.subr.bf16.mxu0 0
          %1581 = vmatpush1.bf16.msra.mxu0 0
          %1582 = vmatprep.subr.bf16.mxu0 0
          %1583 = vmatpush1.bf16.msra.mxu0 0
          %1584 = vmatprep.subr.bf16.mxu0 0
          %1585 = vmatpush1.bf16.msra.mxu0 0
          %1586 = vmatprep.mubr.bf16.mxu0 0
          %1587 = vmatmul.mubr.bf16.gmra.mrb[0].mxu0 %v1509
          %v1588 = vpop.f32.mrb[0].mxu0
          %v1589 = vadd.f32 %v1279, %v1588
          %v1590 = vpop.f32.mrb[0].mxu0
          %v1591 = vadd.f32 %v1283, %v1590
          %v1592 = vpop.f32.mrb[0].mxu0
          %v1593 = vadd.f32 %v1279, %v1592
          %v1594 = vpop.f32.mrb[0].mxu0
          %v1595 = vadd.f32 %v1283, %v1594
          %1596 = vdwg.mxu0
          %1597 = vmatprep.subr.bf16.mxu0 %v1449
          %1598 = vmatpush1.bf16.msra.mxu0 %v1448
          %1599 = vmatprep.subr.bf16.mxu0 %v1465
          %1600 = vmatpush1.bf16.msra.mxu0 %v1464
          %1601 = vmatprep.subr.bf16.mxu0 0
          %1602 = vmatpush1.bf16.msra.mxu0 0
          %1603 = vmatprep.subr.bf16.mxu0 0
          %1604 = vmatpush1.bf16.msra.mxu0 0
          %1605 = vmatprep.subr.bf16.mxu0 0
          %1606 = vmatpush1.bf16.msra.mxu0 0
          %1607 = vmatprep.subr.bf16.mxu0 0
          %1608 = vmatpush1.bf16.msra.mxu0 0
          %1609 = vmatprep.subr.bf16.mxu0 0
          %1610 = vmatpush1.bf16.msra.mxu0 0
          %1611 = vmatprep.subr.bf16.mxu0 0
          %1612 = vmatpush1.bf16.msra.mxu0 0
          %1613 = vmatprep.subr.bf16.mxu0 0
          %1614 = vmatpush1.bf16.msra.mxu0 0
          %1615 = vmatprep.subr.bf16.mxu0 0
          %1616 = vmatpush1.bf16.msra.mxu0 0
          %1617 = vmatprep.subr.bf16.mxu0 0
          %1618 = vmatpush1.bf16.msra.mxu0 0
          %1619 = vmatprep.subr.bf16.mxu0 0
          %1620 = vmatpush1.bf16.msra.mxu0 0
          %1621 = vmatprep.subr.bf16.mxu0 0
          %1622 = vmatpush1.bf16.msra.mxu0 0
          %1623 = vmatprep.subr.bf16.mxu0 0
          %1624 = vmatpush1.bf16.msra.mxu0 0
          %1625 = vmatprep.subr.bf16.mxu0 0
          %1626 = vmatpush1.bf16.msra.mxu0 0
          %1627 = vmatprep.subr.bf16.mxu0 0
          %1628 = vmatpush1.bf16.msra.mxu0 0
          %1629 = vmatprep.mubr.bf16.mxu0 0
          %1630 = vmatmul.mubr.bf16.gmra.mrb[0].mxu0 %v1509
          %v1631 = vpop.f32.mrb[0].mxu0
          %v1632 = vadd.f32 %v1287, %v1631
          %v1633 = vpop.f32.mrb[0].mxu0
          %v1634 = vadd.f32 %v1291, %v1633
          %v1635 = vpop.f32.mrb[0].mxu0
          %v1636 = vadd.f32 %v1287, %v1635
          %v1637 = vpop.f32.mrb[0].mxu0
          %v1638 = vadd.f32 %v1291, %v1637
          %1639 = vdwg.mxu0
          %1640 = vmatprep.subr.bf16.mxu0 %v1451
          %1641 = vmatpush1.bf16.msra.mxu0 %v1450
          %1642 = vmatprep.subr.bf16.mxu0 %v1467
          %1643 = vmatpush1.bf16.msra.mxu0 %v1466
          %1644 = vmatprep.subr.bf16.mxu0 0
          %1645 = vmatpush1.bf16.msra.mxu0 0
          %1646 = vmatprep.subr.bf16.mxu0 0
          %1647 = vmatpush1.bf16.msra.mxu0 0
          %1648 = vmatprep.subr.bf16.mxu0 0
          %1649 = vmatpush1.bf16.msra.mxu0 0
          %1650 = vmatprep.subr.bf16.mxu0 0
          %1651 = vmatpush1.bf16.msra.mxu0 0
          %1652 = vmatprep.subr.bf16.mxu0 0
          %1653 = vmatpush1.bf16.msra.mxu0 0
          %1654 = vmatprep.subr.bf16.mxu0 0
          %1655 = vmatpush1.bf16.msra.mxu0 0
          %1656 = vmatprep.subr.bf16.mxu0 0
          %1657 = vmatpush1.bf16.msra.mxu0 0
          %1658 = vmatprep.subr.bf16.mxu0 0
          %1659 = vmatpush1.bf16.msra.mxu0 0
          %1660 = vmatprep.subr.bf16.mxu0 0
          %1661 = vmatpush1.bf16.msra.mxu0 0
          %1662 = vmatprep.subr.bf16.mxu0 0
          %1663 = vmatpush1.bf16.msra.mxu0 0
          %1664 = vmatprep.subr.bf16.mxu0 0
          %1665 = vmatpush1.bf16.msra.mxu0 0
          %1666 = vmatprep.subr.bf16.mxu0 0
          %1667 = vmatpush1.bf16.msra.mxu0 0
          %1668 = vmatprep.subr.bf16.mxu0 0
          %1669 = vmatpush1.bf16.msra.mxu0 0
          %1670 = vmatprep.subr.bf16.mxu0 0
          %1671 = vmatpush1.bf16.msra.mxu0 0
          %1672 = vmatprep.mubr.bf16.mxu0 0
          %1673 = vmatmul.mubr.bf16.gmra.mrb[0].mxu0 %v1509
          %v1674 = vpop.f32.mrb[0].mxu0
          %v1675 = vadd.f32 %v1295, %v1674
          %v1676 = vpop.f32.mrb[0].mxu0
          %v1677 = vadd.f32 %v1299, %v1676
          %v1678 = vpop.f32.mrb[0].mxu0
          %v1679 = vadd.f32 %v1295, %v1678
          %v1680 = vpop.f32.mrb[0].mxu0
          %v1681 = vadd.f32 %v1299, %v1680
          %1682 = vdwg.mxu0
          %1683 = vmatprep.subr.bf16.mxu0 %v1453
          %1684 = vmatpush1.bf16.msra.mxu0 %v1452
          %1685 = vmatprep.subr.bf16.mxu0 %v1469
          %1686 = vmatpush1.bf16.msra.mxu0 %v1468
          %1687 = vmatprep.subr.bf16.mxu0 0
          %1688 = vmatpush1.bf16.msra.mxu0 0
          %1689 = vmatprep.subr.bf16.mxu0 0
          %1690 = vmatpush1.bf16.msra.mxu0 0
          %1691 = vmatprep.subr.bf16.mxu0 0
          %1692 = vmatpush1.bf16.msra.mxu0 0
          %1693 = vmatprep.subr.bf16.mxu0 0
          %1694 = vmatpush1.bf16.msra.mxu0 0
          %1695 = vmatprep.subr.bf16.mxu0 0
          %1696 = vmatpush1.bf16.msra.mxu0 0
          %1697 = vmatprep.subr.bf16.mxu0 0
          %1698 = vmatpush1.bf16.msra.mxu0 0
          %1699 = vmatprep.subr.bf16.mxu0 0
          %1700 = vmatpush1.bf16.msra.mxu0 0
          %1701 = vmatprep.subr.bf16.mxu0 0
          %1702 = vmatpush1.bf16.msra.mxu0 0
          %1703 = vmatprep.subr.bf16.mxu0 0
          %1704 = vmatpush1.bf16.msra.mxu0 0
          %1705 = vmatprep.subr.bf16.mxu0 0
          %1706 = vmatpush1.bf16.msra.mxu0 0
          %1707 = vmatprep.subr.bf16.mxu0 0
          %1708 = vmatpush1.bf16.msra.mxu0 0
          %1709 = vmatprep.subr.bf16.mxu0 0
          %1710 = vmatpush1.bf16.msra.mxu0 0
          %1711 = vmatprep.subr.bf16.mxu0 0
          %1712 = vmatpush1.bf16.msra.mxu0 0
          %1713 = vmatprep.subr.bf16.mxu0 0
          %1714 = vmatpush1.bf16.msra.mxu0 0
          %1715 = vmatprep.mubr.bf16.mxu0 0
          %1716 = vmatmul.mubr.bf16.gmra.mrb[0].mxu0 %v1509
          %v1717 = vpop.f32.mrb[0].mxu0
          %v1718 = vadd.f32 %v1303, %v1717
          %v1719 = vpop.f32.mrb[0].mxu0
          %v1720 = vadd.f32 %v1307, %v1719
          %v1721 = vpop.f32.mrb[0].mxu0
          %v1722 = vadd.f32 %v1303, %v1721
          %v1723 = vpop.f32.mrb[0].mxu0
          %v1724 = vadd.f32 %v1307, %v1723
          %1725 = vdwg.mxu0
          %1726 = vmatprep.subr.bf16.mxu0 %v1455
          %1727 = vmatpush1.bf16.msra.mxu0 %v1454
          %1728 = vmatprep.subr.bf16.mxu0 %v1471
          %1729 = vmatpush1.bf16.msra.mxu0 %v1470
          %1730 = vmatprep.subr.bf16.mxu0 0
          %1731 = vmatpush1.bf16.msra.mxu0 0
          %1732 = vmatprep.subr.bf16.mxu0 0
          %1733 = vmatpush1.bf16.msra.mxu0 0
          %1734 = vmatprep.subr.bf16.mxu0 0
          %1735 = vmatpush1.bf16.msra.mxu0 0
          %1736 = vmatprep.subr.bf16.mxu0 0
          %1737 = vmatpush1.bf16.msra.mxu0 0
          %1738 = vmatprep.subr.bf16.mxu0 0
          %1739 = vmatpush1.bf16.msra.mxu0 0
          %1740 = vmatprep.subr.bf16.mxu0 0
          %1741 = vmatpush1.bf16.msra.mxu0 0
          %1742 = vmatprep.subr.bf16.mxu0 0
          %1743 = vmatpush1.bf16.msra.mxu0 0
          %1744 = vmatprep.subr.bf16.mxu0 0
          %1745 = vmatpush1.bf16.msra.mxu0 0
          %1746 = vmatprep.subr.bf16.mxu0 0
          %1747 = vmatpush1.bf16.msra.mxu0 0
          %1748 = vmatprep.subr.bf16.mxu0 0
          %1749 = vmatpush1.bf16.msra.mxu0 0
          %1750 = vmatprep.subr.bf16.mxu0 0
          %1751 = vmatpush1.bf16.msra.mxu0 0
          %1752 = vmatprep.subr.bf16.mxu0 0
          %1753 = vmatpush1.bf16.msra.mxu0 0
          %1754 = vmatprep.subr.bf16.mxu0 0
          %1755 = vmatpush1.bf16.msra.mxu0 0
          %1756 = vmatprep.subr.bf16.mxu0 0
          %1757 = vmatpush1.bf16.msra.mxu0 0
          %1758 = vmatprep.mubr.bf16.mxu0 0
          %1759 = vmatmul.mubr.bf16.gmra.mrb[0].mxu0 %v1509
          %v1760 = vpop.f32.mrb[0].mxu0
          %v1761 = vadd.f32 %v1311, %v1760
          %v1762 = vpop.f32.mrb[0].mxu0
          %v1763 = vadd.f32 %v1315, %v1762
          %v1764 = vpop.f32.mrb[0].mxu0
          %v1765 = vadd.f32 %v1311, %v1764
          %v1766 = vpop.f32.mrb[0].mxu0
          %v1767 = vadd.f32 %v1315, %v1766
          %1768 = vdwg.mxu0
          %1769 = vmatprep.subr.bf16.mxu0 %v1457
          %1770 = vmatpush1.bf16.msra.mxu0 %v1456
          %1771 = vmatprep.subr.bf16.mxu0 %v1473
          %1772 = vmatpush1.bf16.msra.mxu0 %v1472
          %1773 = vmatprep.subr.bf16.mxu0 0
          %1774 = vmatpush1.bf16.msra.mxu0 0
          %1775 = vmatprep.subr.bf16.mxu0 0
          %1776 = vmatpush1.bf16.msra.mxu0 0
          %1777 = vmatprep.subr.bf16.mxu0 0
          %1778 = vmatpush1.bf16.msra.mxu0 0
          %1779 = vmatprep.subr.bf16.mxu0 0
          %1780 = vmatpush1.bf16.msra.mxu0 0
          %1781 = vmatprep.subr.bf16.mxu0 0
          %1782 = vmatpush1.bf16.msra.mxu0 0
          %1783 = vmatprep.subr.bf16.mxu0 0
          %1784 = vmatpush1.bf16.msra.mxu0 0
          %1785 = vmatprep.subr.bf16.mxu0 0
          %1786 = vmatpush1.bf16.msra.mxu0 0
          %1787 = vmatprep.subr.bf16.mxu0 0
          %1788 = vmatpush1.bf16.msra.mxu0 0
          %1789 = vmatprep.subr.bf16.mxu0 0
          %1790 = vmatpush1.bf16.msra.mxu0 0
          %1791 = vmatprep.subr.bf16.mxu0 0
          %1792 = vmatpush1.bf16.msra.mxu0 0
          %1793 = vmatprep.subr.bf16.mxu0 0
          %1794 = vmatpush1.bf16.msra.mxu0 0
          %1795 = vmatprep.subr.bf16.mxu0 0
          %1796 = vmatpush1.bf16.msra.mxu0 0
          %1797 = vmatprep.subr.bf16.mxu0 0
          %1798 = vmatpush1.bf16.msra.mxu0 0
          %1799 = vmatprep.subr.bf16.mxu0 0
          %1800 = vmatpush1.bf16.msra.mxu0 0
          %1801 = vmatprep.mubr.bf16.mxu0 0
          %1802 = vmatmul.mubr.bf16.gmra.mrb[0].mxu0 %v1509
          %v1803 = vpop.f32.mrb[0].mxu0
          %v1804 = vadd.f32 %v1319, %v1803
          %v1805 = vpop.f32.mrb[0].mxu0
          %v1806 = vadd.f32 %v1323, %v1805
          %v1807 = vpop.f32.mrb[0].mxu0
          %v1808 = vadd.f32 %v1319, %v1807
          %v1809 = vpop.f32.mrb[0].mxu0
          %v1810 = vadd.f32 %v1323, %v1809
          %1811 = vdwg.mxu0
          %1812 = vmatprep.subr.bf16.mxu0 %v1459
          %1813 = vmatpush1.bf16.msra.mxu0 %v1458
          %1814 = vmatprep.subr.bf16.mxu0 %v1475
          %1815 = vmatpush1.bf16.msra.mxu0 %v1474
          %1816 = vmatprep.subr.bf16.mxu0 0
          %1817 = vmatpush1.bf16.msra.mxu0 0
          %1818 = vmatprep.subr.bf16.mxu0 0
          %1819 = vmatpush1.bf16.msra.mxu0 0
          %1820 = vmatprep.subr.bf16.mxu0 0
          %1821 = vmatpush1.bf16.msra.mxu0 0
          %1822 = vmatprep.subr.bf16.mxu0 0
          %1823 = vmatpush1.bf16.msra.mxu0 0
          %1824 = vmatprep.subr.bf16.mxu0 0
          %1825 = vmatpush1.bf16.msra.mxu0 0
          %1826 = vmatprep.subr.bf16.mxu0 0
          %1827 = vmatpush1.bf16.msra.mxu0 0
          %1828 = vmatprep.subr.bf16.mxu0 0
          %1829 = vmatpush1.bf16.msra.mxu0 0
          %1830 = vmatprep.subr.bf16.mxu0 0
          %1831 = vmatpush1.bf16.msra.mxu0 0
          %1832 = vmatprep.subr.bf16.mxu0 0
          %1833 = vmatpush1.bf16.msra.mxu0 0
          %1834 = vmatprep.subr.bf16.mxu0 0
          %1835 = vmatpush1.bf16.msra.mxu0 0
          %1836 = vmatprep.subr.bf16.mxu0 0
          %1837 = vmatpush1.bf16.msra.mxu0 0
          %1838 = vmatprep.subr.bf16.mxu0 0
          %1839 = vmatpush1.bf16.msra.mxu0 0
          %1840 = vmatprep.subr.bf16.mxu0 0
          %1841 = vmatpush1.bf16.msra.mxu0 0
          %1842 = vmatprep.subr.bf16.mxu0 0
          %1843 = vmatpush1.bf16.msra.mxu0 0
          %1844 = vmatprep.mubr.bf16.mxu0 0
          %1845 = vmatmul.mubr.bf16.gmra.mrb[0].mxu0 %v1509
          %v1846 = vpop.f32.mrb[0].mxu0
          %v1847 = vadd.f32 %v1327, %v1846
          %v1848 = vpop.f32.mrb[0].mxu0
          %v1849 = vadd.f32 %v1331, %v1848
          %v1850 = vpop.f32.mrb[0].mxu0
          %v1851 = vadd.f32 %v1327, %v1850
          %v1852 = vpop.f32.mrb[0].mxu0
          %v1853 = vadd.f32 %v1331, %v1852
          %1854 = vdwg.mxu0
          %v1855 = vmax.f32 %v1546, 0.0
          %v1856 = vmax.f32 %v1548, 0.0
          %v1857 = vmax.f32 %v1589, 0.0
          %v1858 = vmax.f32 %v1591, 0.0
          %v1859 = vmax.f32 %v1632, 0.0
          %v1860 = vmax.f32 %v1634, 0.0
          %v1861 = vmax.f32 %v1675, 0.0
          %v1862 = vmax.f32 %v1677, 0.0
          %v1863 = vmax.f32 %v1718, 0.0
          %v1864 = vmax.f32 %v1720, 0.0
          %v1865 = vmax.f32 %v1761, 0.0
          %v1866 = vmax.f32 %v1763, 0.0
          %v1867 = vmax.f32 %v1804, 0.0
          %v1868 = vmax.f32 %v1806, 0.0
          %v1869 = vmax.f32 %v1847, 0.0
          %v1870 = vmax.f32 %v1849, 0.0
          %v1871 = vmax.f32 %v1550, 0.0
          %v1872 = vmax.f32 %v1552, 0.0
          %v1873 = vmax.f32 %v1593, 0.0
          %v1874 = vmax.f32 %v1595, 0.0
          %v1875 = vmax.f32 %v1636, 0.0
          %v1876 = vmax.f32 %v1638, 0.0
          %v1877 = vmax.f32 %v1679, 0.0
          %v1878 = vmax.f32 %v1681, 0.0
          %v1879 = vmax.f32 %v1722, 0.0
          %v1880 = vmax.f32 %v1724, 0.0
          %v1881 = vmax.f32 %v1765, 0.0
          %v1882 = vmax.f32 %v1767, 0.0
          %v1883 = vmax.f32 %v1808, 0.0
          %v1884 = vmax.f32 %v1810, 0.0
          %v1885 = vmax.f32 %v1851, 0.0
          %v1886 = vmax.f32 %v1853, 0.0
          %v1887 = vpack.c.bf16 %v1871, %v1855
          %v1888 = vpack.c.bf16 %v1872, %v1856
          %v1889 = vpack.c.bf16 %v1873, %v1857
          %v1890 = vpack.c.bf16 %v1874, %v1858
          %v1891 = vpack.c.bf16 %v1875, %v1859
          %v1892 = vpack.c.bf16 %v1876, %v1860
          %v1893 = vpack.c.bf16 %v1877, %v1861
          %v1894 = vpack.c.bf16 %v1878, %v1862
          %v1895 = vpack.c.bf16 %v1879, %v1863
          %v1896 = vpack.c.bf16 %v1880, %v1864
          %v1897 = vpack.c.bf16 %v1881, %v1865
          %v1898 = vpack.c.bf16 %v1882, %v1866
          %v1899 = vpack.c.bf16 %v1883, %v1867
          %v1900 = vpack.c.bf16 %v1884, %v1868
          %v1901 = vpack.c.bf16 %v1885, %v1869
          %v1902 = vpack.c.bf16 %v1886, %v1870
          %v1903 = vld [vmem:[%s505] sm:$0xf]
          %v1904 = vld [vmem:[%s505 + $0x4] sm:$0xf]
          %v1905 = vld [vmem:[%s505 + $0x8] sm:$0xf]
          %v1906 = vld [vmem:[%s505 + $0xc] sm:$0xf]
          %v1907 = vld [vmem:[%s505 + $0x10] sm:$0xf]
          %v1908 = vld [vmem:[%s505 + $0x14] sm:$0xf]
          %v1909 = vld [vmem:[%s505 + $0x18] sm:$0xf]
          %v1910 = vld [vmem:[%s505 + $0x1c] sm:$0xf]
          %v1911 = vld [vmem:[%s505 + $0x20] sm:$0xf]
          %v1912 = vld [vmem:[%s505 + $0x24] sm:$0xf]
          %v1913 = vld [vmem:[%s505 + $0x28] sm:$0xf]
          %v1914 = vld [vmem:[%s505 + $0x2c] sm:$0xf]
          %v1915 = vld [vmem:[%s505 + $0x30] sm:$0xf]
          %v1916 = vld [vmem:[%s505 + $0x34] sm:$0xf]
          %v1917 = vld [vmem:[%s505 + $0x38] sm:$0xf]
          %v1918 = vld [vmem:[%s505 + $0x3c] sm:$0xf]
          %v1919 = vld [vmem:[%s505 + $0x40] sm:$0xf]
          %v1920 = vld [vmem:[%s505 + $0x44] sm:$0xf]
          %v1921 = vld [vmem:[%s505 + $0x48] sm:$0xf]
          %v1922 = vld [vmem:[%s505 + $0x4c] sm:$0xf]
          %v1923 = vld [vmem:[%s505 + $0x50] sm:$0xf]
          %v1924 = vld [vmem:[%s505 + $0x54] sm:$0xf]
          %v1925 = vld [vmem:[%s505 + $0x58] sm:$0xf]
          %v1926 = vld [vmem:[%s505 + $0x5c] sm:$0xf]
          %v1927 = vld [vmem:[%s505 + $0x60] sm:$0xf]
          %v1928 = vld [vmem:[%s505 + $0x64] sm:$0xf]
          %v1929 = vld [vmem:[%s505 + $0x68] sm:$0xf]
          %v1930 = vld [vmem:[%s505 + $0x6c] sm:$0xf]
          %v1931 = vld [vmem:[%s505 + $0x70] sm:$0xf]
          %v1932 = vld [vmem:[%s505 + $0x74] sm:$0xf]
          %v1933 = vld [vmem:[%s505 + $0x78] sm:$0xf]
          %v1934 = vld [vmem:[%s505 + $0x7c] sm:$0xf]
          %v1935 = vld [vmem:[%s505 + $0x80] sm:$0xf]
          %v1936 = vld [vmem:[%s505 + $0x84] sm:$0xf]
          %v1937 = vld [vmem:[%s505 + $0x88] sm:$0xf]
          %v1938 = vld [vmem:[%s505 + $0x8c] sm:$0xf]
          %v1939 = vld [vmem:[%s505 + $0x90] sm:$0xf]
          %v1940 = vld [vmem:[%s505 + $0x94] sm:$0xf]
          %v1941 = vld [vmem:[%s505 + $0x98] sm:$0xf]
          %v1942 = vld [vmem:[%s505 + $0x9c] sm:$0xf]
          %v1943 = vld [vmem:[%s505 + $0xa0] sm:$0xf]
          %v1944 = vld [vmem:[%s505 + $0xa4] sm:$0xf]
          %v1945 = vld [vmem:[%s505 + $0xa8] sm:$0xf]
          %v1946 = vld [vmem:[%s505 + $0xac] sm:$0xf]
          %v1947 = vld [vmem:[%s505 + $0xb0] sm:$0xf]
          %v1948 = vld [vmem:[%s505 + $0xb4] sm:$0xf]
          %v1949 = vld [vmem:[%s505 + $0xb8] sm:$0xf]
          %v1950 = vld [vmem:[%s505 + $0xbc] sm:$0xf]
          %v1951 = vld [vmem:[%s505 + $0xc0] sm:$0xf]
          %v1952 = vld [vmem:[%s505 + $0xc4] sm:$0xf]
          %v1953 = vld [vmem:[%s505 + $0xc8] sm:$0xf]
          %v1954 = vld [vmem:[%s505 + $0xcc] sm:$0xf]
          %v1955 = vld [vmem:[%s505 + $0xd0] sm:$0xf]
          %v1956 = vld [vmem:[%s505 + $0xd4] sm:$0xf]
          %v1957 = vld [vmem:[%s505 + $0xd8] sm:$0xf]
          %v1958 = vld [vmem:[%s505 + $0xdc] sm:$0xf]
          %v1959 = vld [vmem:[%s505 + $0xe0] sm:$0xf]
          %v1960 = vld [vmem:[%s505 + $0xe4] sm:$0xf]
          %v1961 = vld [vmem:[%s505 + $0xe8] sm:$0xf]
          %v1962 = vld [vmem:[%s505 + $0xec] sm:$0xf]
          %v1963 = vld [vmem:[%s505 + $0xf0] sm:$0xf]
          %v1964 = vld [vmem:[%s505 + $0xf4] sm:$0xf]
          %v1965 = vld [vmem:[%s505 + $0xf8] sm:$0xf]
          %v1966 = vld [vmem:[%s505 + $0xfc] sm:$0xf]
          %v1967 = vld [vmem:[%s505 + $0x100] sm:$0xf]
          %v1968 = vld [vmem:[%s505 + $0x104] sm:$0xf]
          %v1969 = vld [vmem:[%s505 + $0x108] sm:$0xf]
          %v1970 = vld [vmem:[%s505 + $0x10c] sm:$0xf]
          %v1971 = vld [vmem:[%s505 + $0x110] sm:$0xf]
          %v1972 = vld [vmem:[%s505 + $0x114] sm:$0xf]
          %v1973 = vld [vmem:[%s505 + $0x118] sm:$0xf]
          %v1974 = vld [vmem:[%s505 + $0x11c] sm:$0xf]
          %v1975 = vld [vmem:[%s505 + $0x120] sm:$0xf]
          %v1976 = vld [vmem:[%s505 + $0x124] sm:$0xf]
          %v1977 = vld [vmem:[%s505 + $0x128] sm:$0xf]
          %v1978 = vld [vmem:[%s505 + $0x12c] sm:$0xf]
          %v1979 = vld [vmem:[%s505 + $0x130] sm:$0xf]
          %v1980 = vld [vmem:[%s505 + $0x134] sm:$0xf]
          %v1981 = vld [vmem:[%s505 + $0x138] sm:$0xf]
          %v1982 = vld [vmem:[%s505 + $0x13c] sm:$0xf]
          %v1983 = vld [vmem:[%s505 + $0x140] sm:$0xf]
          %v1984 = vld [vmem:[%s505 + $0x144] sm:$0xf]
          %v1985 = vld [vmem:[%s505 + $0x148] sm:$0xf]
          %v1986 = vld [vmem:[%s505 + $0x14c] sm:$0xf]
          %v1987 = vld [vmem:[%s505 + $0x150] sm:$0xf]
          %v1988 = vld [vmem:[%s505 + $0x154] sm:$0xf]
          %v1989 = vld [vmem:[%s505 + $0x158] sm:$0xf]
          %v1990 = vld [vmem:[%s505 + $0x15c] sm:$0xf]
          %v1991 = vld [vmem:[%s505 + $0x160] sm:$0xf]
          %v1992 = vld [vmem:[%s505 + $0x164] sm:$0xf]
          %v1993 = vld [vmem:[%s505 + $0x168] sm:$0xf]
          %v1994 = vld [vmem:[%s505 + $0x16c] sm:$0xf]
          %v1995 = vld [vmem:[%s505 + $0x170] sm:$0xf]
          %v1996 = vld [vmem:[%s505 + $0x174] sm:$0xf]
          %v1997 = vld [vmem:[%s505 + $0x178] sm:$0xf]
          %v1998 = vld [vmem:[%s505 + $0x17c] sm:$0xf]
          %v1999 = vld [vmem:[%s505 + $0x180] sm:$0xf]
          %v2000 = vld [vmem:[%s505 + $0x184] sm:$0xf]
          %v2001 = vld [vmem:[%s505 + $0x188] sm:$0xf]
          %v2002 = vld [vmem:[%s505 + $0x18c] sm:$0xf]
          %v2003 = vld [vmem:[%s505 + $0x190] sm:$0xf]
          %v2004 = vld [vmem:[%s505 + $0x194] sm:$0xf]
          %v2005 = vld [vmem:[%s505 + $0x198] sm:$0xf]
          %v2006 = vld [vmem:[%s505 + $0x19c] sm:$0xf]
          %v2007 = vld [vmem:[%s505 + $0x1a0] sm:$0xf]
          %v2008 = vld [vmem:[%s505 + $0x1a4] sm:$0xf]
          %v2009 = vld [vmem:[%s505 + $0x1a8] sm:$0xf]
          %v2010 = vld [vmem:[%s505 + $0x1ac] sm:$0xf]
          %v2011 = vld [vmem:[%s505 + $0x1b0] sm:$0xf]
          %v2012 = vld [vmem:[%s505 + $0x1b4] sm:$0xf]
          %v2013 = vld [vmem:[%s505 + $0x1b8] sm:$0xf]
          %v2014 = vld [vmem:[%s505 + $0x1bc] sm:$0xf]
          %v2015 = vld [vmem:[%s505 + $0x1c0] sm:$0xf]
          %v2016 = vld [vmem:[%s505 + $0x1c4] sm:$0xf]
          %v2017 = vld [vmem:[%s505 + $0x1c8] sm:$0xf]
          %v2018 = vld [vmem:[%s505 + $0x1cc] sm:$0xf]
          %v2019 = vld [vmem:[%s505 + $0x1d0] sm:$0xf]
          %v2020 = vld [vmem:[%s505 + $0x1d4] sm:$0xf]
          %v2021 = vld [vmem:[%s505 + $0x1d8] sm:$0xf]
          %v2022 = vld [vmem:[%s505 + $0x1dc] sm:$0xf]
          %v2023 = vld [vmem:[%s505 + $0x1e0] sm:$0xf]
          %v2024 = vld [vmem:[%s505 + $0x1e4] sm:$0xf]
          %v2025 = vld [vmem:[%s505 + $0x1e8] sm:$0xf]
          %v2026 = vld [vmem:[%s505 + $0x1ec] sm:$0xf]
          %v2027 = vld [vmem:[%s505 + $0x1f0] sm:$0xf]
          %v2028 = vld [vmem:[%s505 + $0x1f4] sm:$0xf]
          %v2029 = vld [vmem:[%s505 + $0x1f8] sm:$0xf]
          %v2030 = vld [vmem:[%s505 + $0x1fc] sm:$0xf]
          %v2031 = vld [vmem:[%s505 + $0x200] sm:$0xf]
          %v2032 = vld [vmem:[%s505 + $0x204] sm:$0xf]
          %v2033 = vld [vmem:[%s505 + $0x208] sm:$0xf]
          %v2034 = vld [vmem:[%s505 + $0x20c] sm:$0xf]
          %v2035 = vld [vmem:[%s505 + $0x210] sm:$0xf]
          %v2036 = vld [vmem:[%s505 + $0x214] sm:$0xf]
          %v2037 = vld [vmem:[%s505 + $0x218] sm:$0xf]
          %v2038 = vld [vmem:[%s505 + $0x21c] sm:$0xf]
          %v2039 = vld [vmem:[%s505 + $0x220] sm:$0xf]
          %v2040 = vld [vmem:[%s505 + $0x224] sm:$0xf]
          %v2041 = vld [vmem:[%s505 + $0x228] sm:$0xf]
          %v2042 = vld [vmem:[%s505 + $0x22c] sm:$0xf]
          %v2043 = vld [vmem:[%s505 + $0x230] sm:$0xf]
          %v2044 = vld [vmem:[%s505 + $0x234] sm:$0xf]
          %v2045 = vld [vmem:[%s505 + $0x238] sm:$0xf]
          %v2046 = vld [vmem:[%s505 + $0x23c] sm:$0xf]
          %v2047 = vld [vmem:[%s505 + $0x240] sm:$0xf]
          %v2048 = vld [vmem:[%s505 + $0x244] sm:$0xf]
          %v2049 = vld [vmem:[%s505 + $0x248] sm:$0xf]
          %v2050 = vld [vmem:[%s505 + $0x24c] sm:$0xf]
          %v2051 = vld [vmem:[%s505 + $0x250] sm:$0xf]
          %v2052 = vld [vmem:[%s505 + $0x254] sm:$0xf]
          %v2053 = vld [vmem:[%s505 + $0x258] sm:$0xf]
          %v2054 = vld [vmem:[%s505 + $0x25c] sm:$0xf]
          %v2055 = vld [vmem:[%s505 + $0x260] sm:$0xf]
          %v2056 = vld [vmem:[%s505 + $0x264] sm:$0xf]
          %v2057 = vld [vmem:[%s505 + $0x268] sm:$0xf]
          %v2058 = vld [vmem:[%s505 + $0x26c] sm:$0xf]
          %v2059 = vld [vmem:[%s505 + $0x270] sm:$0xf]
          %v2060 = vld [vmem:[%s505 + $0x274] sm:$0xf]
          %v2061 = vld [vmem:[%s505 + $0x278] sm:$0xf]
          %v2062 = vld [vmem:[%s505 + $0x27c] sm:$0xf]
          %v2063 = vld [vmem:[%s505 + $0x280] sm:$0xf]
          %v2064 = vld [vmem:[%s505 + $0x284] sm:$0xf]
          %v2065 = vld [vmem:[%s505 + $0x288] sm:$0xf]
          %v2066 = vld [vmem:[%s505 + $0x28c] sm:$0xf]
          %v2067 = vld [vmem:[%s505 + $0x290] sm:$0xf]
          %v2068 = vld [vmem:[%s505 + $0x294] sm:$0xf]
          %v2069 = vld [vmem:[%s505 + $0x298] sm:$0xf]
          %v2070 = vld [vmem:[%s505 + $0x29c] sm:$0xf]
          %v2071 = vld [vmem:[%s505 + $0x2a0] sm:$0xf]
          %v2072 = vld [vmem:[%s505 + $0x2a4] sm:$0xf]
          %v2073 = vld [vmem:[%s505 + $0x2a8] sm:$0xf]
          %v2074 = vld [vmem:[%s505 + $0x2ac] sm:$0xf]
          %v2075 = vld [vmem:[%s505 + $0x2b0] sm:$0xf]
          %v2076 = vld [vmem:[%s505 + $0x2b4] sm:$0xf]
          %v2077 = vld [vmem:[%s505 + $0x2b8] sm:$0xf]
          %v2078 = vld [vmem:[%s505 + $0x2bc] sm:$0xf]
          %v2079 = vld [vmem:[%s505 + $0x2c0] sm:$0xf]
          %v2080 = vld [vmem:[%s505 + $0x2c4] sm:$0xf]
          %v2081 = vld [vmem:[%s505 + $0x2c8] sm:$0xf]
          %v2082 = vld [vmem:[%s505 + $0x2cc] sm:$0xf]
          %v2083 = vld [vmem:[%s505 + $0x2d0] sm:$0xf]
          %v2084 = vld [vmem:[%s505 + $0x2d4] sm:$0xf]
          %v2085 = vld [vmem:[%s505 + $0x2d8] sm:$0xf]
          %v2086 = vld [vmem:[%s505 + $0x2dc] sm:$0xf]
          %v2087 = vld [vmem:[%s505 + $0x2e0] sm:$0xf]
          %v2088 = vld [vmem:[%s505 + $0x2e4] sm:$0xf]
          %v2089 = vld [vmem:[%s505 + $0x2e8] sm:$0xf]
          %v2090 = vld [vmem:[%s505 + $0x2ec] sm:$0xf]
          %v2091 = vld [vmem:[%s505 + $0x2f0] sm:$0xf]
          %v2092 = vld [vmem:[%s505 + $0x2f4] sm:$0xf]
          %v2093 = vld [vmem:[%s505 + $0x2f8] sm:$0xf]
          %v2094 = vld [vmem:[%s505 + $0x2fc] sm:$0xf]
          %v2095 = vld [vmem:[%s505 + $0x300] sm:$0xf]
          %v2096 = vld [vmem:[%s505 + $0x304] sm:$0xf]
          %v2097 = vld [vmem:[%s505 + $0x308] sm:$0xf]
          %v2098 = vld [vmem:[%s505 + $0x30c] sm:$0xf]
          %v2099 = vld [vmem:[%s505 + $0x310] sm:$0xf]
          %v2100 = vld [vmem:[%s505 + $0x314] sm:$0xf]
          %v2101 = vld [vmem:[%s505 + $0x318] sm:$0xf]
          %v2102 = vld [vmem:[%s505 + $0x31c] sm:$0xf]
          %v2103 = vld [vmem:[%s505 + $0x320] sm:$0xf]
          %v2104 = vld [vmem:[%s505 + $0x324] sm:$0xf]
          %v2105 = vld [vmem:[%s505 + $0x328] sm:$0xf]
          %v2106 = vld [vmem:[%s505 + $0x32c] sm:$0xf]
          %v2107 = vld [vmem:[%s505 + $0x330] sm:$0xf]
          %v2108 = vld [vmem:[%s505 + $0x334] sm:$0xf]
          %v2109 = vld [vmem:[%s505 + $0x338] sm:$0xf]
          %v2110 = vld [vmem:[%s505 + $0x33c] sm:$0xf]
          %v2111 = vld [vmem:[%s505 + $0x340] sm:$0xf]
          %v2112 = vld [vmem:[%s505 + $0x344] sm:$0xf]
          %v2113 = vld [vmem:[%s505 + $0x348] sm:$0xf]
          %v2114 = vld [vmem:[%s505 + $0x34c] sm:$0xf]
          %v2115 = vld [vmem:[%s505 + $0x350] sm:$0xf]
          %v2116 = vld [vmem:[%s505 + $0x354] sm:$0xf]
          %v2117 = vld [vmem:[%s505 + $0x358] sm:$0xf]
          %v2118 = vld [vmem:[%s505 + $0x35c] sm:$0xf]
          %v2119 = vld [vmem:[%s505 + $0x360] sm:$0xf]
          %v2120 = vld [vmem:[%s505 + $0x364] sm:$0xf]
          %v2121 = vld [vmem:[%s505 + $0x368] sm:$0xf]
          %v2122 = vld [vmem:[%s505 + $0x36c] sm:$0xf]
          %v2123 = vld [vmem:[%s505 + $0x370] sm:$0xf]
          %v2124 = vld [vmem:[%s505 + $0x374] sm:$0xf]
          %v2125 = vld [vmem:[%s505 + $0x378] sm:$0xf]
          %v2126 = vld [vmem:[%s505 + $0x37c] sm:$0xf]
          %v2127 = vld [vmem:[%s505 + $0x380] sm:$0xf]
          %v2128 = vld [vmem:[%s505 + $0x384] sm:$0xf]
          %v2129 = vld [vmem:[%s505 + $0x388] sm:$0xf]
          %v2130 = vld [vmem:[%s505 + $0x38c] sm:$0xf]
          %v2131 = vld [vmem:[%s505 + $0x390] sm:$0xf]
          %v2132 = vld [vmem:[%s505 + $0x394] sm:$0xf]
          %v2133 = vld [vmem:[%s505 + $0x398] sm:$0xf]
          %v2134 = vld [vmem:[%s505 + $0x39c] sm:$0xf]
          %v2135 = vld [vmem:[%s505 + $0x3a0] sm:$0xf]
          %v2136 = vld [vmem:[%s505 + $0x3a4] sm:$0xf]
          %v2137 = vld [vmem:[%s505 + $0x3a8] sm:$0xf]
          %v2138 = vld [vmem:[%s505 + $0x3ac] sm:$0xf]
          %v2139 = vld [vmem:[%s505 + $0x3b0] sm:$0xf]
          %v2140 = vld [vmem:[%s505 + $0x3b4] sm:$0xf]
          %v2141 = vld [vmem:[%s505 + $0x3b8] sm:$0xf]
          %v2142 = vld [vmem:[%s505 + $0x3bc] sm:$0xf]
          %v2143 = vld [vmem:[%s505 + $0x3c0] sm:$0xf]
          %v2144 = vld [vmem:[%s505 + $0x3c4] sm:$0xf]
          %v2145 = vld [vmem:[%s505 + $0x3c8] sm:$0xf]
          %v2146 = vld [vmem:[%s505 + $0x3cc] sm:$0xf]
          %v2147 = vld [vmem:[%s505 + $0x3d0] sm:$0xf]
          %v2148 = vld [vmem:[%s505 + $0x3d4] sm:$0xf]
          %v2149 = vld [vmem:[%s505 + $0x3d8] sm:$0xf]
          %v2150 = vld [vmem:[%s505 + $0x3dc] sm:$0xf]
          %v2151 = vld [vmem:[%s505 + $0x3e0] sm:$0xf]
          %v2152 = vld [vmem:[%s505 + $0x3e4] sm:$0xf]
          %v2153 = vld [vmem:[%s505 + $0x3e8] sm:$0xf]
          %v2154 = vld [vmem:[%s505 + $0x3ec] sm:$0xf]
          %v2155 = vld [vmem:[%s505 + $0x3f0] sm:$0xf]
          %v2156 = vld [vmem:[%s505 + $0x3f4] sm:$0xf]
          %v2157 = vld [vmem:[%s505 + $0x3f8] sm:$0xf]
          %v2158 = vld [vmem:[%s505 + $0x3fc] sm:$0xf]
          %v2159 = vlaneseq
          %v2160 = vshrl.u32 %v2159, 7
          %v2161 = vsub.s32 0, %v2160
          %v2162 = vrot.slane %v623, %v2161
          %v2419 = vunpack.c.l.b16 %v1903
          %v2420 = vunpack.c.l.b16 %v1904
          %v2421 = vunpack.c.l.b16 %v1905
          %v2422 = vunpack.c.l.b16 %v1906
          %v2423 = vunpack.c.l.b16 %v1907
          %v2424 = vunpack.c.l.b16 %v1908
          %v2425 = vunpack.c.l.b16 %v1909
          %v2426 = vunpack.c.l.b16 %v1910
          %v2427 = vunpack.c.l.b16 %v1911
          %v2428 = vunpack.c.l.b16 %v1912
          %v2429 = vunpack.c.l.b16 %v1913
          %v2430 = vunpack.c.l.b16 %v1914
          %v2431 = vunpack.c.l.b16 %v1915
          %v2432 = vunpack.c.l.b16 %v1916
          %v2433 = vunpack.c.l.b16 %v1917
          %v2434 = vunpack.c.l.b16 %v1918
          %v2435 = vunpack.c.l.b16 %v1919
          %v2436 = vunpack.c.l.b16 %v1920
          %v2437 = vunpack.c.l.b16 %v1921
          %v2438 = vunpack.c.l.b16 %v1922
          %v2439 = vunpack.c.l.b16 %v1923
          %v2440 = vunpack.c.l.b16 %v1924
          %v2441 = vunpack.c.l.b16 %v1925
          %v2442 = vunpack.c.l.b16 %v1926
          %v2443 = vunpack.c.l.b16 %v1927
          %v2444 = vunpack.c.l.b16 %v1928
          %v2445 = vunpack.c.l.b16 %v1929
          %v2446 = vunpack.c.l.b16 %v1930
          %v2447 = vunpack.c.l.b16 %v1931
          %v2448 = vunpack.c.l.b16 %v1932
          %v2449 = vunpack.c.l.b16 %v1933
          %v2450 = vunpack.c.l.b16 %v1934
          %v2451 = vunpack.c.l.b16 %v1935
          %v2452 = vunpack.c.l.b16 %v1936
          %v2453 = vunpack.c.l.b16 %v1937
          %v2454 = vunpack.c.l.b16 %v1938
          %v2455 = vunpack.c.l.b16 %v1939
          %v2456 = vunpack.c.l.b16 %v1940
          %v2457 = vunpack.c.l.b16 %v1941
          %v2458 = vunpack.c.l.b16 %v1942
          %v2459 = vunpack.c.l.b16 %v1943
          %v2460 = vunpack.c.l.b16 %v1944
          %v2461 = vunpack.c.l.b16 %v1945
          %v2462 = vunpack.c.l.b16 %v1946
          %v2463 = vunpack.c.l.b16 %v1947
          %v2464 = vunpack.c.l.b16 %v1948
          %v2465 = vunpack.c.l.b16 %v1949
          %v2466 = vunpack.c.l.b16 %v1950
          %v2467 = vunpack.c.l.b16 %v1951
          %v2468 = vunpack.c.l.b16 %v1952
          %v2469 = vunpack.c.l.b16 %v1953
          %v2470 = vunpack.c.l.b16 %v1954
          %v2471 = vunpack.c.l.b16 %v1955
          %v2472 = vunpack.c.l.b16 %v1956
          %v2473 = vunpack.c.l.b16 %v1957
          %v2474 = vunpack.c.l.b16 %v1958
          %v2475 = vunpack.c.l.b16 %v1959
          %v2476 = vunpack.c.l.b16 %v1960
          %v2477 = vunpack.c.l.b16 %v1961
          %v2478 = vunpack.c.l.b16 %v1962
          %v2479 = vunpack.c.l.b16 %v1963
          %v2480 = vunpack.c.l.b16 %v1964
          %v2481 = vunpack.c.l.b16 %v1965
          %v2482 = vunpack.c.l.b16 %v1966
          %v2483 = vunpack.c.l.b16 %v1967
          %v2484 = vunpack.c.l.b16 %v1968
          %v2485 = vunpack.c.l.b16 %v1969
          %v2486 = vunpack.c.l.b16 %v1970
          %v2487 = vunpack.c.l.b16 %v1971
          %v2488 = vunpack.c.l.b16 %v1972
          %v2489 = vunpack.c.l.b16 %v1973
          %v2490 = vunpack.c.l.b16 %v1974
          %v2491 = vunpack.c.l.b16 %v1975
          %v2492 = vunpack.c.l.b16 %v1976
          %v2493 = vunpack.c.l.b16 %v1977
          %v2494 = vunpack.c.l.b16 %v1978
          %v2495 = vunpack.c.l.b16 %v1979
          %v2496 = vunpack.c.l.b16 %v1980
          %v2497 = vunpack.c.l.b16 %v1981
          %v2498 = vunpack.c.l.b16 %v1982
          %v2499 = vunpack.c.l.b16 %v1983
          %v2500 = vunpack.c.l.b16 %v1984
          %v2501 = vunpack.c.l.b16 %v1985
          %v2502 = vunpack.c.l.b16 %v1986
          %v2503 = vunpack.c.l.b16 %v1987
          %v2504 = vunpack.c.l.b16 %v1988
          %v2505 = vunpack.c.l.b16 %v1989
          %v2506 = vunpack.c.l.b16 %v1990
          %v2507 = vunpack.c.l.b16 %v1991
          %v2508 = vunpack.c.l.b16 %v1992
          %v2509 = vunpack.c.l.b16 %v1993
          %v2510 = vunpack.c.l.b16 %v1994
          %v2511 = vunpack.c.l.b16 %v1995
          %v2512 = vunpack.c.l.b16 %v1996
          %v2513 = vunpack.c.l.b16 %v1997
          %v2514 = vunpack.c.l.b16 %v1998
          %v2515 = vunpack.c.l.b16 %v1999
          %v2516 = vunpack.c.l.b16 %v2000
          %v2517 = vunpack.c.l.b16 %v2001
          %v2518 = vunpack.c.l.b16 %v2002
          %v2519 = vunpack.c.l.b16 %v2003
          %v2520 = vunpack.c.l.b16 %v2004
          %v2521 = vunpack.c.l.b16 %v2005
          %v2522 = vunpack.c.l.b16 %v2006
          %v2523 = vunpack.c.l.b16 %v2007
          %v2524 = vunpack.c.l.b16 %v2008
          %v2525 = vunpack.c.l.b16 %v2009
          %v2526 = vunpack.c.l.b16 %v2010
          %v2527 = vunpack.c.l.b16 %v2011
          %v2528 = vunpack.c.l.b16 %v2012
          %v2529 = vunpack.c.l.b16 %v2013
          %v2530 = vunpack.c.l.b16 %v2014
          %v2531 = vunpack.c.l.b16 %v2015
          %v2532 = vunpack.c.l.b16 %v2016
          %v2533 = vunpack.c.l.b16 %v2017
          %v2534 = vunpack.c.l.b16 %v2018
          %v2535 = vunpack.c.l.b16 %v2019
          %v2536 = vunpack.c.l.b16 %v2020
          %v2537 = vunpack.c.l.b16 %v2021
          %v2538 = vunpack.c.l.b16 %v2022
          %v2539 = vunpack.c.l.b16 %v2023
          %v2540 = vunpack.c.l.b16 %v2024
          %v2541 = vunpack.c.l.b16 %v2025
          %v2542 = vunpack.c.l.b16 %v2026
          %v2543 = vunpack.c.l.b16 %v2027
          %v2544 = vunpack.c.l.b16 %v2028
          %v2545 = vunpack.c.l.b16 %v2029
          %v2546 = vunpack.c.l.b16 %v2030
          %v2547 = vunpack.c.l.b16 %v2031
          %v2548 = vunpack.c.l.b16 %v2032
          %v2549 = vunpack.c.l.b16 %v2033
          %v2550 = vunpack.c.l.b16 %v2034
          %v2551 = vunpack.c.l.b16 %v2035
          %v2552 = vunpack.c.l.b16 %v2036
          %v2553 = vunpack.c.l.b16 %v2037
          %v2554 = vunpack.c.l.b16 %v2038
          %v2555 = vunpack.c.l.b16 %v2039
          %v2556 = vunpack.c.l.b16 %v2040
          %v2557 = vunpack.c.l.b16 %v2041
          %v2558 = vunpack.c.l.b16 %v2042
          %v2559 = vunpack.c.l.b16 %v2043
          %v2560 = vunpack.c.l.b16 %v2044
          %v2561 = vunpack.c.l.b16 %v2045
          %v2562 = vunpack.c.l.b16 %v2046
          %v2563 = vunpack.c.l.b16 %v2047
          %v2564 = vunpack.c.l.b16 %v2048
          %v2565 = vunpack.c.l.b16 %v2049
          %v2566 = vunpack.c.l.b16 %v2050
          %v2567 = vunpack.c.l.b16 %v2051
          %v2568 = vunpack.c.l.b16 %v2052
          %v2569 = vunpack.c.l.b16 %v2053
          %v2570 = vunpack.c.l.b16 %v2054
          %v2571 = vunpack.c.l.b16 %v2055
          %v2572 = vunpack.c.l.b16 %v2056
          %v2573 = vunpack.c.l.b16 %v2057
          %v2574 = vunpack.c.l.b16 %v2058
          %v2575 = vunpack.c.l.b16 %v2059
          %v2576 = vunpack.c.l.b16 %v2060
          %v2577 = vunpack.c.l.b16 %v2061
          %v2578 = vunpack.c.l.b16 %v2062
          %v2579 = vunpack.c.l.b16 %v2063
          %v2580 = vunpack.c.l.b16 %v2064
          %v2581 = vunpack.c.l.b16 %v2065
          %v2582 = vunpack.c.l.b16 %v2066
          %v2583 = vunpack.c.l.b16 %v2067
          %v2584 = vunpack.c.l.b16 %v2068
          %v2585 = vunpack.c.l.b16 %v2069
          %v2586 = vunpack.c.l.b16 %v2070
          %v2587 = vunpack.c.l.b16 %v2071
          %v2588 = vunpack.c.l.b16 %v2072
          %v2589 = vunpack.c.l.b16 %v2073
          %v2590 = vunpack.c.l.b16 %v2074
          %v2591 = vunpack.c.l.b16 %v2075
          %v2592 = vunpack.c.l.b16 %v2076
          %v2593 = vunpack.c.l.b16 %v2077
          %v2594 = vunpack.c.l.b16 %v2078
          %v2595 = vunpack.c.l.b16 %v2079
          %v2596 = vunpack.c.l.b16 %v2080
          %v2597 = vunpack.c.l.b16 %v2081
          %v2598 = vunpack.c.l.b16 %v2082
          %v2599 = vunpack.c.l.b16 %v2083
          %v2600 = vunpack.c.l.b16 %v2084
          %v2601 = vunpack.c.l.b16 %v2085
          %v2602 = vunpack.c.l.b16 %v2086
          %v2603 = vunpack.c.l.b16 %v2087
          %v2604 = vunpack.c.l.b16 %v2088
          %v2605 = vunpack.c.l.b16 %v2089
          %v2606 = vunpack.c.l.b16 %v2090
          %v2607 = vunpack.c.l.b16 %v2091
          %v2608 = vunpack.c.l.b16 %v2092
          %v2609 = vunpack.c.l.b16 %v2093
          %v2610 = vunpack.c.l.b16 %v2094
          %v2611 = vunpack.c.l.b16 %v2095
          %v2612 = vunpack.c.l.b16 %v2096
          %v2613 = vunpack.c.l.b16 %v2097
          %v2614 = vunpack.c.l.b16 %v2098
          %v2615 = vunpack.c.l.b16 %v2099
          %v2616 = vunpack.c.l.b16 %v2100
          %v2617 = vunpack.c.l.b16 %v2101
          %v2618 = vunpack.c.l.b16 %v2102
          %v2619 = vunpack.c.l.b16 %v2103
          %v2620 = vunpack.c.l.b16 %v2104
          %v2621 = vunpack.c.l.b16 %v2105
          %v2622 = vunpack.c.l.b16 %v2106
          %v2623 = vunpack.c.l.b16 %v2107
          %v2624 = vunpack.c.l.b16 %v2108
          %v2625 = vunpack.c.l.b16 %v2109
          %v2626 = vunpack.c.l.b16 %v2110
          %v2627 = vunpack.c.l.b16 %v2111
          %v2628 = vunpack.c.l.b16 %v2112
          %v2629 = vunpack.c.l.b16 %v2113
          %v2630 = vunpack.c.l.b16 %v2114
          %v2631 = vunpack.c.l.b16 %v2115
          %v2632 = vunpack.c.l.b16 %v2116
          %v2633 = vunpack.c.l.b16 %v2117
          %v2634 = vunpack.c.l.b16 %v2118
          %v2635 = vunpack.c.l.b16 %v2119
          %v2636 = vunpack.c.l.b16 %v2120
          %v2637 = vunpack.c.l.b16 %v2121
          %v2638 = vunpack.c.l.b16 %v2122
          %v2639 = vunpack.c.l.b16 %v2123
          %v2640 = vunpack.c.l.b16 %v2124
          %v2641 = vunpack.c.l.b16 %v2125
          %v2642 = vunpack.c.l.b16 %v2126
          %v2643 = vunpack.c.l.b16 %v2127
          %v2644 = vunpack.c.l.b16 %v2128
          %v2645 = vunpack.c.l.b16 %v2129
          %v2646 = vunpack.c.l.b16 %v2130
          %v2647 = vunpack.c.l.b16 %v2131
          %v2648 = vunpack.c.l.b16 %v2132
          %v2649 = vunpack.c.l.b16 %v2133
          %v2650 = vunpack.c.l.b16 %v2134
          %v2651 = vunpack.c.l.b16 %v2135
          %v2652 = vunpack.c.l.b16 %v2136
          %v2653 = vunpack.c.l.b16 %v2137
          %v2654 = vunpack.c.l.b16 %v2138
          %v2655 = vunpack.c.l.b16 %v2139
          %v2656 = vunpack.c.l.b16 %v2140
          %v2657 = vunpack.c.l.b16 %v2141
          %v2658 = vunpack.c.l.b16 %v2142
          %v2659 = vunpack.c.l.b16 %v2143
          %v2660 = vunpack.c.l.b16 %v2144
          %v2661 = vunpack.c.l.b16 %v2145
          %v2662 = vunpack.c.l.b16 %v2146
          %v2663 = vunpack.c.l.b16 %v2147
          %v2664 = vunpack.c.l.b16 %v2148
          %v2665 = vunpack.c.l.b16 %v2149
          %v2666 = vunpack.c.l.b16 %v2150
          %v2667 = vunpack.c.l.b16 %v2151
          %v2668 = vunpack.c.l.b16 %v2152
          %v2669 = vunpack.c.l.b16 %v2153
          %v2670 = vunpack.c.l.b16 %v2154
          %v2671 = vunpack.c.l.b16 %v2155
          %v2672 = vunpack.c.l.b16 %v2156
          %v2673 = vunpack.c.l.b16 %v2157
          %v2674 = vunpack.c.l.b16 %v2158
          %v2675 = vpack.c.b16 %v2420, %v2419
          %v2676 = vpack.c.b16 %v2422, %v2421
          %v2677 = vpack.c.b16 %v2424, %v2423
          %v2678 = vpack.c.b16 %v2426, %v2425
          %v2679 = vpack.c.b16 %v2428, %v2427
          %v2680 = vpack.c.b16 %v2430, %v2429
          %v2681 = vpack.c.b16 %v2432, %v2431
          %v2682 = vpack.c.b16 %v2434, %v2433
          %v2683 = vpack.c.b16 %v2436, %v2435
          %v2684 = vpack.c.b16 %v2438, %v2437
          %v2685 = vpack.c.b16 %v2440, %v2439
          %v2686 = vpack.c.b16 %v2442, %v2441
          %v2687 = vpack.c.b16 %v2444, %v2443
          %v2688 = vpack.c.b16 %v2446, %v2445
          %v2689 = vpack.c.b16 %v2448, %v2447
          %v2690 = vpack.c.b16 %v2450, %v2449
          %v2691 = vpack.c.b16 %v2452, %v2451
          %v2692 = vpack.c.b16 %v2454, %v2453
          %v2693 = vpack.c.b16 %v2456, %v2455
          %v2694 = vpack.c.b16 %v2458, %v2457
          %v2695 = vpack.c.b16 %v2460, %v2459
          %v2696 = vpack.c.b16 %v2462, %v2461
          %v2697 = vpack.c.b16 %v2464, %v2463
          %v2698 = vpack.c.b16 %v2466, %v2465
          %v2699 = vpack.c.b16 %v2468, %v2467
          %v2700 = vpack.c.b16 %v2470, %v2469
          %v2701 = vpack.c.b16 %v2472, %v2471
          %v2702 = vpack.c.b16 %v2474, %v2473
          %v2703 = vpack.c.b16 %v2476, %v2475
          %v2704 = vpack.c.b16 %v2478, %v2477
          %v2705 = vpack.c.b16 %v2480, %v2479
          %v2706 = vpack.c.b16 %v2482, %v2481
          %v2707 = vpack.c.b16 %v2484, %v2483
          %v2708 = vpack.c.b16 %v2486, %v2485
          %v2709 = vpack.c.b16 %v2488, %v2487
          %v2710 = vpack.c.b16 %v2490, %v2489
          %v2711 = vpack.c.b16 %v2492, %v2491
          %v2712 = vpack.c.b16 %v2494, %v2493
          %v2713 = vpack.c.b16 %v2496, %v2495
          %v2714 = vpack.c.b16 %v2498, %v2497
          %v2715 = vpack.c.b16 %v2500, %v2499
          %v2716 = vpack.c.b16 %v2502, %v2501
          %v2717 = vpack.c.b16 %v2504, %v2503
          %v2718 = vpack.c.b16 %v2506, %v2505
          %v2719 = vpack.c.b16 %v2508, %v2507
          %v2720 = vpack.c.b16 %v2510, %v2509
          %v2721 = vpack.c.b16 %v2512, %v2511
          %v2722 = vpack.c.b16 %v2514, %v2513
          %v2723 = vpack.c.b16 %v2516, %v2515
          %v2724 = vpack.c.b16 %v2518, %v2517
          %v2725 = vpack.c.b16 %v2520, %v2519
          %v2726 = vpack.c.b16 %v2522, %v2521
          %v2727 = vpack.c.b16 %v2524, %v2523
          %v2728 = vpack.c.b16 %v2526, %v2525
          %v2729 = vpack.c.b16 %v2528, %v2527
          %v2730 = vpack.c.b16 %v2530, %v2529
          %v2731 = vpack.c.b16 %v2532, %v2531
          %v2732 = vpack.c.b16 %v2534, %v2533
          %v2733 = vpack.c.b16 %v2536, %v2535
          %v2734 = vpack.c.b16 %v2538, %v2537
          %v2735 = vpack.c.b16 %v2540, %v2539
          %v2736 = vpack.c.b16 %v2542, %v2541
          %v2737 = vpack.c.b16 %v2544, %v2543
          %v2738 = vpack.c.b16 %v2546, %v2545
          %v2739 = vpack.c.b16 %v2548, %v2547
          %v2740 = vpack.c.b16 %v2550, %v2549
          %v2741 = vpack.c.b16 %v2552, %v2551
          %v2742 = vpack.c.b16 %v2554, %v2553
          %v2743 = vpack.c.b16 %v2556, %v2555
          %v2744 = vpack.c.b16 %v2558, %v2557
          %v2745 = vpack.c.b16 %v2560, %v2559
          %v2746 = vpack.c.b16 %v2562, %v2561
          %v2747 = vpack.c.b16 %v2564, %v2563
          %v2748 = vpack.c.b16 %v2566, %v2565
          %v2749 = vpack.c.b16 %v2568, %v2567
          %v2750 = vpack.c.b16 %v2570, %v2569
          %v2751 = vpack.c.b16 %v2572, %v2571
          %v2752 = vpack.c.b16 %v2574, %v2573
          %v2753 = vpack.c.b16 %v2576, %v2575
          %v2754 = vpack.c.b16 %v2578, %v2577
          %v2755 = vpack.c.b16 %v2580, %v2579
          %v2756 = vpack.c.b16 %v2582, %v2581
          %v2757 = vpack.c.b16 %v2584, %v2583
          %v2758 = vpack.c.b16 %v2586, %v2585
          %v2759 = vpack.c.b16 %v2588, %v2587
          %v2760 = vpack.c.b16 %v2590, %v2589
          %v2761 = vpack.c.b16 %v2592, %v2591
          %v2762 = vpack.c.b16 %v2594, %v2593
          %v2763 = vpack.c.b16 %v2596, %v2595
          %v2764 = vpack.c.b16 %v2598, %v2597
          %v2765 = vpack.c.b16 %v2600, %v2599
          %v2766 = vpack.c.b16 %v2602, %v2601
          %v2767 = vpack.c.b16 %v2604, %v2603
          %v2768 = vpack.c.b16 %v2606, %v2605
          %v2769 = vpack.c.b16 %v2608, %v2607
          %v2770 = vpack.c.b16 %v2610, %v2609
          %v2771 = vpack.c.b16 %v2612, %v2611
          %v2772 = vpack.c.b16 %v2614, %v2613
          %v2773 = vpack.c.b16 %v2616, %v2615
          %v2774 = vpack.c.b16 %v2618, %v2617
          %v2775 = vpack.c.b16 %v2620, %v2619
          %v2776 = vpack.c.b16 %v2622, %v2621
          %v2777 = vpack.c.b16 %v2624, %v2623
          %v2778 = vpack.c.b16 %v2626, %v2625
          %v2779 = vpack.c.b16 %v2628, %v2627
          %v2780 = vpack.c.b16 %v2630, %v2629
          %v2781 = vpack.c.b16 %v2632, %v2631
          %v2782 = vpack.c.b16 %v2634, %v2633
          %v2783 = vpack.c.b16 %v2636, %v2635
          %v2784 = vpack.c.b16 %v2638, %v2637
          %v2785 = vpack.c.b16 %v2640, %v2639
          %v2786 = vpack.c.b16 %v2642, %v2641
          %v2787 = vpack.c.b16 %v2644, %v2643
          %v2788 = vpack.c.b16 %v2646, %v2645
          %v2789 = vpack.c.b16 %v2648, %v2647
          %v2790 = vpack.c.b16 %v2650, %v2649
          %v2791 = vpack.c.b16 %v2652, %v2651
          %v2792 = vpack.c.b16 %v2654, %v2653
          %v2793 = vpack.c.b16 %v2656, %v2655
          %v2794 = vpack.c.b16 %v2658, %v2657
          %v2795 = vpack.c.b16 %v2660, %v2659
          %v2796 = vpack.c.b16 %v2662, %v2661
          %v2797 = vpack.c.b16 %v2664, %v2663
          %v2798 = vpack.c.b16 %v2666, %v2665
          %v2799 = vpack.c.b16 %v2668, %v2667
          %v2800 = vpack.c.b16 %v2670, %v2669
          %v2801 = vpack.c.b16 %v2672, %v2671
          %v2802 = vpack.c.b16 %v2674, %v2673
          %2931 = vmatprep.subr.bf16.mxu0 0
          %2932 = vmatpush1.bf16.msra.mxu0 %v2675
          %2933 = vmatprep.subr.bf16.mxu0 0
          %2934 = vmatpush1.bf16.msra.mxu0 %v2676
          %2935 = vmatprep.subr.bf16.mxu0 0
          %2936 = vmatpush1.bf16.msra.mxu0 %v2677
          %2937 = vmatprep.subr.bf16.mxu0 0
          %2938 = vmatpush1.bf16.msra.mxu0 %v2678
          %2939 = vmatprep.subr.bf16.mxu0 0
          %2940 = vmatpush1.bf16.msra.mxu0 %v2679
          %2941 = vmatprep.subr.bf16.mxu0 0
          %2942 = vmatpush1.bf16.msra.mxu0 %v2680
          %2943 = vmatprep.subr.bf16.mxu0 0
          %2944 = vmatpush1.bf16.msra.mxu0 %v2681
          %2945 = vmatprep.subr.bf16.mxu0 0
          %2946 = vmatpush1.bf16.msra.mxu0 %v2682
          %2947 = vmatprep.subr.bf16.mxu0 0
          %2948 = vmatpush1.bf16.msra.mxu0 %v2683
          %2949 = vmatprep.subr.bf16.mxu0 0
          %2950 = vmatpush1.bf16.msra.mxu0 %v2684
          %2951 = vmatprep.subr.bf16.mxu0 0
          %2952 = vmatpush1.bf16.msra.mxu0 %v2685
          %2953 = vmatprep.subr.bf16.mxu0 0
          %2954 = vmatpush1.bf16.msra.mxu0 %v2686
          %2955 = vmatprep.subr.bf16.mxu0 0
          %2956 = vmatpush1.bf16.msra.mxu0 %v2687
          %2957 = vmatprep.subr.bf16.mxu0 0
          %2958 = vmatpush1.bf16.msra.mxu0 %v2688
          %2959 = vmatprep.subr.bf16.mxu0 0
          %2960 = vmatpush1.bf16.msra.mxu0 %v2689
          %2961 = vmatprep.subr.bf16.mxu0 0
          %2962 = vmatpush1.bf16.msra.mxu0 %v2690
          %2963 = vmatprep.mubr.bf16.mxu0 %v1888
          %2964 = vmatmul.mubr.bf16.gmra.mrb[0].mxu0 %v1887
          %v2965 = vpop.f32.mrb[0].mxu0
          %v2966 = vadd.f32 %v2162, %v2965
          %v2967 = vpop.f32.mrb[0].mxu0
          %v2968 = vpop.f32.mrb[0].mxu0
          %v2969 = vadd.f32 %v2162, %v2968
          %v2970 = vpop.f32.mrb[0].mxu0
          %2971 = vdwg.mxu0
          %2972 = vmatprep.subr.bf16.mxu0 0
          %2973 = vmatpush1.bf16.msra.mxu0 %v2691
          %2974 = vmatprep.subr.bf16.mxu0 0
          %2975 = vmatpush1.bf16.msra.mxu0 %v2692
          %2976 = vmatprep.subr.bf16.mxu0 0
          %2977 = vmatpush1.bf16.msra.mxu0 %v2693
          %2978 = vmatprep.subr.bf16.mxu0 0
          %2979 = vmatpush1.bf16.msra.mxu0 %v2694
          %2980 = vmatprep.subr.bf16.mxu0 0
          %2981 = vmatpush1.bf16.msra.mxu0 %v2695
          %2982 = vmatprep.subr.bf16.mxu0 0
          %2983 = vmatpush1.bf16.msra.mxu0 %v2696
          %2984 = vmatprep.subr.bf16.mxu0 0
          %2985 = vmatpush1.bf16.msra.mxu0 %v2697
          %2986 = vmatprep.subr.bf16.mxu0 0
          %2987 = vmatpush1.bf16.msra.mxu0 %v2698
          %2988 = vmatprep.subr.bf16.mxu0 0
          %2989 = vmatpush1.bf16.msra.mxu0 %v2699
          %2990 = vmatprep.subr.bf16.mxu0 0
          %2991 = vmatpush1.bf16.msra.mxu0 %v2700
          %2992 = vmatprep.subr.bf16.mxu0 0
          %2993 = vmatpush1.bf16.msra.mxu0 %v2701
          %2994 = vmatprep.subr.bf16.mxu0 0
          %2995 = vmatpush1.bf16.msra.mxu0 %v2702
          %2996 = vmatprep.subr.bf16.mxu0 0
          %2997 = vmatpush1.bf16.msra.mxu0 %v2703
          %2998 = vmatprep.subr.bf16.mxu0 0
          %2999 = vmatpush1.bf16.msra.mxu0 %v2704
          %3000 = vmatprep.subr.bf16.mxu0 0
          %3001 = vmatpush1.bf16.msra.mxu0 %v2705
          %3002 = vmatprep.subr.bf16.mxu0 0
          %3003 = vmatpush1.bf16.msra.mxu0 %v2706
          %3004 = vmatprep.mubr.bf16.mxu0 %v1890
          %3005 = vmatmul.mubr.bf16.gmra.mrb[0].mxu0 %v1889
          %v3006 = vpop.f32.mrb[0].mxu0
          %v3007 = vadd.f32 %v2966, %v3006
          %v3008 = vpop.f32.mrb[0].mxu0
          %v3009 = vpop.f32.mrb[0].mxu0
          %v3010 = vadd.f32 %v2969, %v3009
          %v3011 = vpop.f32.mrb[0].mxu0
          %3012 = vdwg.mxu0
          %3013 = vmatprep.subr.bf16.mxu0 0
          %3014 = vmatpush1.bf16.msra.mxu0 %v2707
          %3015 = vmatprep.subr.bf16.mxu0 0
          %3016 = vmatpush1.bf16.msra.mxu0 %v2708
          %3017 = vmatprep.subr.bf16.mxu0 0
          %3018 = vmatpush1.bf16.msra.mxu0 %v2709
          %3019 = vmatprep.subr.bf16.mxu0 0
          %3020 = vmatpush1.bf16.msra.mxu0 %v2710
          %3021 = vmatprep.subr.bf16.mxu0 0
          %3022 = vmatpush1.bf16.msra.mxu0 %v2711
          %3023 = vmatprep.subr.bf16.mxu0 0
          %3024 = vmatpush1.bf16.msra.mxu0 %v2712
          %3025 = vmatprep.subr.bf16.mxu0 0
          %3026 = vmatpush1.bf16.msra.mxu0 %v2713
          %3027 = vmatprep.subr.bf16.mxu0 0
          %3028 = vmatpush1.bf16.msra.mxu0 %v2714
          %3029 = vmatprep.subr.bf16.mxu0 0
          %3030 = vmatpush1.bf16.msra.mxu0 %v2715
          %3031 = vmatprep.subr.bf16.mxu0 0
          %3032 = vmatpush1.bf16.msra.mxu0 %v2716
          %3033 = vmatprep.subr.bf16.mxu0 0
          %3034 = vmatpush1.bf16.msra.mxu0 %v2717
          %3035 = vmatprep.subr.bf16.mxu0 0
          %3036 = vmatpush1.bf16.msra.mxu0 %v2718
          %3037 = vmatprep.subr.bf16.mxu0 0
          %3038 = vmatpush1.bf16.msra.mxu0 %v2719
          %3039 = vmatprep.subr.bf16.mxu0 0
          %3040 = vmatpush1.bf16.msra.mxu0 %v2720
          %3041 = vmatprep.subr.bf16.mxu0 0
          %3042 = vmatpush1.bf16.msra.mxu0 %v2721
          %3043 = vmatprep.subr.bf16.mxu0 0
          %3044 = vmatpush1.bf16.msra.mxu0 %v2722
          %3045 = vmatprep.mubr.bf16.mxu0 %v1892
          %3046 = vmatmul.mubr.bf16.gmra.mrb[0].mxu0 %v1891
          %v3047 = vpop.f32.mrb[0].mxu0
          %v3048 = vadd.f32 %v3007, %v3047
          %v3049 = vpop.f32.mrb[0].mxu0
          %v3050 = vpop.f32.mrb[0].mxu0
          %v3051 = vadd.f32 %v3010, %v3050
          %v3052 = vpop.f32.mrb[0].mxu0
          %3053 = vdwg.mxu0
          %3054 = vmatprep.subr.bf16.mxu0 0
          %3055 = vmatpush1.bf16.msra.mxu0 %v2723
          %3056 = vmatprep.subr.bf16.mxu0 0
          %3057 = vmatpush1.bf16.msra.mxu0 %v2724
          %3058 = vmatprep.subr.bf16.mxu0 0
          %3059 = vmatpush1.bf16.msra.mxu0 %v2725
          %3060 = vmatprep.subr.bf16.mxu0 0
          %3061 = vmatpush1.bf16.msra.mxu0 %v2726
          %3062 = vmatprep.subr.bf16.mxu0 0
          %3063 = vmatpush1.bf16.msra.mxu0 %v2727
          %3064 = vmatprep.subr.bf16.mxu0 0
          %3065 = vmatpush1.bf16.msra.mxu0 %v2728
          %3066 = vmatprep.subr.bf16.mxu0 0
          %3067 = vmatpush1.bf16.msra.mxu0 %v2729
          %3068 = vmatprep.subr.bf16.mxu0 0
          %3069 = vmatpush1.bf16.msra.mxu0 %v2730
          %3070 = vmatprep.subr.bf16.mxu0 0
          %3071 = vmatpush1.bf16.msra.mxu0 %v2731
          %3072 = vmatprep.subr.bf16.mxu0 0
          %3073 = vmatpush1.bf16.msra.mxu0 %v2732
          %3074 = vmatprep.subr.bf16.mxu0 0
          %3075 = vmatpush1.bf16.msra.mxu0 %v2733
          %3076 = vmatprep.subr.bf16.mxu0 0
          %3077 = vmatpush1.bf16.msra.mxu0 %v2734
          %3078 = vmatprep.subr.bf16.mxu0 0
          %3079 = vmatpush1.bf16.msra.mxu0 %v2735
          %3080 = vmatprep.subr.bf16.mxu0 0
          %3081 = vmatpush1.bf16.msra.mxu0 %v2736
          %3082 = vmatprep.subr.bf16.mxu0 0
          %3083 = vmatpush1.bf16.msra.mxu0 %v2737
          %3084 = vmatprep.subr.bf16.mxu0 0
          %3085 = vmatpush1.bf16.msra.mxu0 %v2738
          %3086 = vmatprep.mubr.bf16.mxu0 %v1894
          %3087 = vmatmul.mubr.bf16.gmra.mrb[0].mxu0 %v1893
          %v3088 = vpop.f32.mrb[0].mxu0
          %v3089 = vadd.f32 %v3048, %v3088
          %v3090 = vpop.f32.mrb[0].mxu0
          %v3091 = vpop.f32.mrb[0].mxu0
          %v3092 = vadd.f32 %v3051, %v3091
          %v3093 = vpop.f32.mrb[0].mxu0
          %3094 = vdwg.mxu0
          %3095 = vmatprep.subr.bf16.mxu0 0
          %3096 = vmatpush1.bf16.msra.mxu0 %v2739
          %3097 = vmatprep.subr.bf16.mxu0 0
          %3098 = vmatpush1.bf16.msra.mxu0 %v2740
          %3099 = vmatprep.subr.bf16.mxu0 0
          %3100 = vmatpush1.bf16.msra.mxu0 %v2741
          %3101 = vmatprep.subr.bf16.mxu0 0
          %3102 = vmatpush1.bf16.msra.mxu0 %v2742
          %3103 = vmatprep.subr.bf16.mxu0 0
          %3104 = vmatpush1.bf16.msra.mxu0 %v2743
          %3105 = vmatprep.subr.bf16.mxu0 0
          %3106 = vmatpush1.bf16.msra.mxu0 %v2744
          %3107 = vmatprep.subr.bf16.mxu0 0
          %3108 = vmatpush1.bf16.msra.mxu0 %v2745
          %3109 = vmatprep.subr.bf16.mxu0 0
          %3110 = vmatpush1.bf16.msra.mxu0 %v2746
          %3111 = vmatprep.subr.bf16.mxu0 0
          %3112 = vmatpush1.bf16.msra.mxu0 %v2747
          %3113 = vmatprep.subr.bf16.mxu0 0
          %3114 = vmatpush1.bf16.msra.mxu0 %v2748
          %3115 = vmatprep.subr.bf16.mxu0 0
          %3116 = vmatpush1.bf16.msra.mxu0 %v2749
          %3117 = vmatprep.subr.bf16.mxu0 0
          %3118 = vmatpush1.bf16.msra.mxu0 %v2750
          %3119 = vmatprep.subr.bf16.mxu0 0
          %3120 = vmatpush1.bf16.msra.mxu0 %v2751
          %3121 = vmatprep.subr.bf16.mxu0 0
          %3122 = vmatpush1.bf16.msra.mxu0 %v2752
          %3123 = vmatprep.subr.bf16.mxu0 0
          %3124 = vmatpush1.bf16.msra.mxu0 %v2753
          %3125 = vmatprep.subr.bf16.mxu0 0
          %3126 = vmatpush1.bf16.msra.mxu0 %v2754
          %3127 = vmatprep.mubr.bf16.mxu0 %v1896
          %3128 = vmatmul.mubr.bf16.gmra.mrb[0].mxu0 %v1895
          %v3129 = vpop.f32.mrb[0].mxu0
          %v3130 = vadd.f32 %v3089, %v3129
          %v3131 = vpop.f32.mrb[0].mxu0
          %v3132 = vpop.f32.mrb[0].mxu0
          %v3133 = vadd.f32 %v3092, %v3132
          %v3134 = vpop.f32.mrb[0].mxu0
          %3135 = vdwg.mxu0
          %3136 = vmatprep.subr.bf16.mxu0 0
          %3137 = vmatpush1.bf16.msra.mxu0 %v2755
          %3138 = vmatprep.subr.bf16.mxu0 0
          %3139 = vmatpush1.bf16.msra.mxu0 %v2756
          %3140 = vmatprep.subr.bf16.mxu0 0
          %3141 = vmatpush1.bf16.msra.mxu0 %v2757
          %3142 = vmatprep.subr.bf16.mxu0 0
          %3143 = vmatpush1.bf16.msra.mxu0 %v2758
          %3144 = vmatprep.subr.bf16.mxu0 0
          %3145 = vmatpush1.bf16.msra.mxu0 %v2759
          %3146 = vmatprep.subr.bf16.mxu0 0
          %3147 = vmatpush1.bf16.msra.mxu0 %v2760
          %3148 = vmatprep.subr.bf16.mxu0 0
          %3149 = vmatpush1.bf16.msra.mxu0 %v2761
          %3150 = vmatprep.subr.bf16.mxu0 0
          %3151 = vmatpush1.bf16.msra.mxu0 %v2762
          %3152 = vmatprep.subr.bf16.mxu0 0
          %3153 = vmatpush1.bf16.msra.mxu0 %v2763
          %3154 = vmatprep.subr.bf16.mxu0 0
          %3155 = vmatpush1.bf16.msra.mxu0 %v2764
          %3156 = vmatprep.subr.bf16.mxu0 0
          %3157 = vmatpush1.bf16.msra.mxu0 %v2765
          %3158 = vmatprep.subr.bf16.mxu0 0
          %3159 = vmatpush1.bf16.msra.mxu0 %v2766
          %3160 = vmatprep.subr.bf16.mxu0 0
          %3161 = vmatpush1.bf16.msra.mxu0 %v2767
          %3162 = vmatprep.subr.bf16.mxu0 0
          %3163 = vmatpush1.bf16.msra.mxu0 %v2768
          %3164 = vmatprep.subr.bf16.mxu0 0
          %3165 = vmatpush1.bf16.msra.mxu0 %v2769
          %3166 = vmatprep.subr.bf16.mxu0 0
          %3167 = vmatpush1.bf16.msra.mxu0 %v2770
          %3168 = vmatprep.mubr.bf16.mxu0 %v1898
          %3169 = vmatmul.mubr.bf16.gmra.mrb[0].mxu0 %v1897
          %v3170 = vpop.f32.mrb[0].mxu0
          %v3171 = vadd.f32 %v3130, %v3170
          %v3172 = vpop.f32.mrb[0].mxu0
          %v3173 = vpop.f32.mrb[0].mxu0
          %v3174 = vadd.f32 %v3133, %v3173
          %v3175 = vpop.f32.mrb[0].mxu0
          %3176 = vdwg.mxu0
          %3177 = vmatprep.subr.bf16.mxu0 0
          %3178 = vmatpush1.bf16.msra.mxu0 %v2771
          %3179 = vmatprep.subr.bf16.mxu0 0
          %3180 = vmatpush1.bf16.msra.mxu0 %v2772
          %3181 = vmatprep.subr.bf16.mxu0 0
          %3182 = vmatpush1.bf16.msra.mxu0 %v2773
          %3183 = vmatprep.subr.bf16.mxu0 0
          %3184 = vmatpush1.bf16.msra.mxu0 %v2774
          %3185 = vmatprep.subr.bf16.mxu0 0
          %3186 = vmatpush1.bf16.msra.mxu0 %v2775
          %3187 = vmatprep.subr.bf16.mxu0 0
          %3188 = vmatpush1.bf16.msra.mxu0 %v2776
          %3189 = vmatprep.subr.bf16.mxu0 0
          %3190 = vmatpush1.bf16.msra.mxu0 %v2777
          %3191 = vmatprep.subr.bf16.mxu0 0
          %3192 = vmatpush1.bf16.msra.mxu0 %v2778
          %3193 = vmatprep.subr.bf16.mxu0 0
          %3194 = vmatpush1.bf16.msra.mxu0 %v2779
          %3195 = vmatprep.subr.bf16.mxu0 0
          %3196 = vmatpush1.bf16.msra.mxu0 %v2780
          %3197 = vmatprep.subr.bf16.mxu0 0
          %3198 = vmatpush1.bf16.msra.mxu0 %v2781
          %3199 = vmatprep.subr.bf16.mxu0 0
          %3200 = vmatpush1.bf16.msra.mxu0 %v2782
          %3201 = vmatprep.subr.bf16.mxu0 0
          %3202 = vmatpush1.bf16.msra.mxu0 %v2783
          %3203 = vmatprep.subr.bf16.mxu0 0
          %3204 = vmatpush1.bf16.msra.mxu0 %v2784
          %3205 = vmatprep.subr.bf16.mxu0 0
          %3206 = vmatpush1.bf16.msra.mxu0 %v2785
          %3207 = vmatprep.subr.bf16.mxu0 0
          %3208 = vmatpush1.bf16.msra.mxu0 %v2786
          %3209 = vmatprep.mubr.bf16.mxu0 %v1900
          %3210 = vmatmul.mubr.bf16.gmra.mrb[0].mxu0 %v1899
          %v3211 = vpop.f32.mrb[0].mxu0
          %v3212 = vadd.f32 %v3171, %v3211
          %v3213 = vpop.f32.mrb[0].mxu0
          %v3214 = vpop.f32.mrb[0].mxu0
          %v3215 = vadd.f32 %v3174, %v3214
          %v3216 = vpop.f32.mrb[0].mxu0
          %3217 = vdwg.mxu0
          %3218 = vmatprep.subr.bf16.mxu0 0
          %3219 = vmatpush1.bf16.msra.mxu0 %v2787
          %3220 = vmatprep.subr.bf16.mxu0 0
          %3221 = vmatpush1.bf16.msra.mxu0 %v2788
          %3222 = vmatprep.subr.bf16.mxu0 0
          %3223 = vmatpush1.bf16.msra.mxu0 %v2789
          %3224 = vmatprep.subr.bf16.mxu0 0
          %3225 = vmatpush1.bf16.msra.mxu0 %v2790
          %3226 = vmatprep.subr.bf16.mxu0 0
          %3227 = vmatpush1.bf16.msra.mxu0 %v2791
          %3228 = vmatprep.subr.bf16.mxu0 0
          %3229 = vmatpush1.bf16.msra.mxu0 %v2792
          %3230 = vmatprep.subr.bf16.mxu0 0
          %3231 = vmatpush1.bf16.msra.mxu0 %v2793
          %3232 = vmatprep.subr.bf16.mxu0 0
          %3233 = vmatpush1.bf16.msra.mxu0 %v2794
          %3234 = vmatprep.subr.bf16.mxu0 0
          %3235 = vmatpush1.bf16.msra.mxu0 %v2795
          %3236 = vmatprep.subr.bf16.mxu0 0
          %3237 = vmatpush1.bf16.msra.mxu0 %v2796
          %3238 = vmatprep.subr.bf16.mxu0 0
          %3239 = vmatpush1.bf16.msra.mxu0 %v2797
          %3240 = vmatprep.subr.bf16.mxu0 0
          %3241 = vmatpush1.bf16.msra.mxu0 %v2798
          %3242 = vmatprep.subr.bf16.mxu0 0
          %3243 = vmatpush1.bf16.msra.mxu0 %v2799
          %3244 = vmatprep.subr.bf16.mxu0 0
          %3245 = vmatpush1.bf16.msra.mxu0 %v2800
          %3246 = vmatprep.subr.bf16.mxu0 0
          %3247 = vmatpush1.bf16.msra.mxu0 %v2801
          %3248 = vmatprep.subr.bf16.mxu0 0
          %3249 = vmatpush1.bf16.msra.mxu0 %v2802
          %3250 = vmatprep.mubr.bf16.mxu0 %v1902
          %3251 = vmatmul.mubr.bf16.gmra.mrb[0].mxu0 %v1901
          %v3252 = vpop.f32.mrb[0].mxu0
          %v3253 = vadd.f32 %v3212, %v3252
          %v3254 = vpop.f32.mrb[0].mxu0
          %v3255 = vpop.f32.mrb[0].mxu0
          %v3256 = vadd.f32 %v3215, %v3255
          %v3257 = vpop.f32.mrb[0].mxu0
          %3258 = vdwg.mxu0
          %v3259 = vadd.f32 %v1225, %v3253
          %v3260 = vadd.f32 %v1226, %v3256
          %v3261 = vsel %vm732, %v3259, 0.0
          %3262 = vadd.xlane.f32.xlu0 %v3261
          %v3263 = vpop.xlane.xlu0 %3262
          %v3264 = vsel %vm732, %v3260, 0.0
          %3265 = vadd.xlane.f32.xlu0 %v3264
          %v3266 = vpop.xlane.xlu0 %3265
          %v3267 = vmul.f32 %v3263, %v1194
          %v3268 = vmul.f32 %v3266, %v1194
          %v3269 = vsub.f32 %v3259, %v3267
          %v3270 = vsub.f32 %v3260, %v3268
          %v3271 = vmul.f32 %v3269, %v3269
          %v3272 = vmul.f32 %v3270, %v3270
          %v3273 = vsel %vm732, %v3271, 0.0
          %3274 = vadd.xlane.f32.xlu0 %v3273
          %v3275 = vpop.xlane.xlu0 %3274
          %v3276 = vsel %vm732, %v3272, 0.0
          %3277 = vadd.xlane.f32.xlu0 %v3276
          %v3278 = vpop.xlane.xlu0 %3277
          %v3279 = vmul.f32 %v3275, %v1194
          %v3280 = vmul.f32 %v3278, %v1194
          %v3281 = vadd.f32 %v3279, 1e-05
          %v3282 = vadd.f32 %v3280, 1e-05
          %v3283 = vrsqrt.pop %v3281
          %v3284 = vrsqrt.pop %v3282
          %v3285 = vmul.f32 %v3269, %v3283
          %v3286 = vmul.f32 %v3270, %v3284
          %v3287 = vlaneseq
          %v3288 = vshrl.u32 %v3287, 7
          %v3289 = vsub.s32 0, %v3288
          %v3290 = vrot.slane %v624, %v3289
          %v3291 = vmul.f32 %v3285, %v3290
          %v3292 = vmul.f32 %v3286, %v3290
          %v3293 = vlaneseq
          %v3294 = vshrl.u32 %v3293, 7
          %v3295 = vsub.s32 0, %v3294
          %v3296 = vrot.slane %v625, %v3295
          %v3297 = vadd.f32 %v3291, %v3296
          %v3298 = vadd.f32 %v3292, %v3296
          %3299 = vst.msk [vmem:[#allocation2] sm:$0xff] %vm732, %v3297
          %3300 = vst.msk [vmem:[#allocation2 + $0x8] sm:$0xff] %vm732, %v3298
        $region84: #{_lambda_.1} parent=71 // pred_fallthru
          _
        %p3301 = scmp.eq.s32.totalorder %s33, 1
        // Predicated region
        $region85: #{_lambda_.1} parent=71 // pred_check
          %p3302 = pneg %p3301
        $region86: #{_lambda_.1} parent=71 // pred_check_branch
          %3304 = sbr.rel (%p3302) target = $region88
        $region87: #{_lambda_.1} parent=71 // pred_region
          %v3305 = vlaneseq
          %v3306 = vshrl.u32 %v3305, 7
          %v3307 = vlaneseq
          %v3308 = vand.u32 %v3307, 127
          %v3309 = vmul.u32 %v3306, 8
          %v3310 = vadd.s32 %v3309, 7
          %vm3311 = vcmp.eq.s32.totalorder %v3308, %v3310
          %v3312 = vsel %vm3311, 1.0, 0.0
          %vm3313 = vcmask 130048
          %v3315 = vsel %vm3313, %v3312, 0
          %3317 = vmatprep.subr.mxu0 0.0
          %3318 = vmatpush1.msra.mxu0 %v1225
          %3319 = vmatprep.subr.mxu0 0.0
          %3320 = vmatpush1.msra.mxu0 %v1226
          %3321 = vmatprep.subr.mxu0 0.0
          %3322 = vmatpush1.msra.mxu0 0.0
          %3323 = vmatprep.subr.mxu0 0.0
          %3324 = vmatpush1.msra.mxu0 0.0
          %3325 = vmatprep.subr.mxu0 0.0
          %3326 = vmatpush1.msra.mxu0 0.0
          %3327 = vmatprep.subr.mxu0 0.0
          %3328 = vmatpush1.msra.mxu0 0.0
          %3329 = vmatprep.subr.mxu0 0.0
          %3330 = vmatpush1.msra.mxu0 0.0
          %3331 = vmatprep.subr.mxu0 0.0
          %3332 = vmatpush1.msra.mxu0 0.0
          %3333 = vmatprep.subr.mxu0 0.0
          %3334 = vmatpush1.msra.mxu0 0.0
          %3335 = vmatprep.subr.mxu0 0.0
          %3336 = vmatpush1.msra.mxu0 0.0
          %3337 = vmatprep.subr.mxu0 0.0
          %3338 = vmatpush1.msra.mxu0 0.0
          %3339 = vmatprep.subr.mxu0 0.0
          %3340 = vmatpush1.msra.mxu0 0.0
          %3341 = vmatprep.subr.mxu0 0.0
          %3342 = vmatpush1.msra.mxu0 0.0
          %3343 = vmatprep.subr.mxu0 0.0
          %3344 = vmatpush1.msra.mxu0 0.0
          %3345 = vmatprep.subr.mxu0 0.0
          %3346 = vmatpush1.msra.mxu0 0.0
          %3347 = vmatprep.subr.mxu0 0.0
          %3348 = vmatpush1.msra.mxu0 0.0
          %3349 = vmatprep.subr.mxu0 0.0
          %3350 = vmatpush1.msra.mxu0 0.0
          %3351 = vmatprep.subr.mxu0 0.0
          %3352 = vmatpush1.msra.mxu0 0.0
          %3353 = vmatprep.subr.mxu0 0.0
          %3354 = vmatpush1.msra.mxu0 0.0
          %3355 = vmatprep.subr.mxu0 0.0
          %3356 = vmatpush1.msra.mxu0 0.0
          %3357 = vmatprep.subr.mxu0 0.0
          %3358 = vmatpush1.msra.mxu0 0.0
          %3359 = vmatprep.subr.mxu0 0.0
          %3360 = vmatpush1.msra.mxu0 0.0
          %3361 = vmatprep.subr.mxu0 0.0
          %3362 = vmatpush1.msra.mxu0 0.0
          %3363 = vmatprep.subr.mxu0 0.0
          %3364 = vmatpush1.msra.mxu0 0.0
          %3365 = vmatprep.subr.mxu0 0.0
          %3366 = vmatpush1.msra.mxu0 0.0
          %3367 = vmatprep.subr.mxu0 0.0
          %3368 = vmatpush1.msra.mxu0 0.0
          %3369 = vmatprep.subr.mxu0 0.0
          %3370 = vmatpush1.msra.mxu0 0.0
          %3371 = vmatprep.subr.mxu0 0.0
          %3372 = vmatpush1.msra.mxu0 0.0
          %3373 = vmatprep.subr.mxu0 0.0
          %3374 = vmatpush1.msra.mxu0 0.0
          %3375 = vmatprep.subr.mxu0 0.0
          %3376 = vmatpush1.msra.mxu0 0.0
          %3377 = vmatprep.subr.mxu0 0.0
          %3378 = vmatpush1.msra.mxu0 0.0
          %3379 = vmatprep.subr.mxu0 0.0
          %3380 = vmatpush1.msra.mxu0 0.0
          %3381 = vmatprep.mubr.f32.mxu0 0.0
          %3382 = vmatmul.mubr.f32.gmra.mrb[0].mxu0 %v3315
          %v3383 = vpop.f32.mrb[0].mxu0
          %v3384 = vadd.f32 0.0, %v3383
          %v3385 = vpop.f32.mrb[0].mxu0
          %3386 = vdwg.mxu0
          %v3387 = vpack.c.bf16 %v3384, %v3384
          %v3388 = vld [vmem:[%s610] sm:$0xff]
          %v3389 = vld [vmem:[%s610 + $0x8] sm:$0xff]
          %v3390 = vld [vmem:[%s610 + $0x10] sm:$0xff]
          %v3391 = vld [vmem:[%s610 + $0x18] sm:$0xff]
          %v3392 = vld [vmem:[%s610 + $0x20] sm:$0xff]
          %v3393 = vld [vmem:[%s610 + $0x28] sm:$0xff]
          %v3394 = vld [vmem:[%s610 + $0x30] sm:$0xff]
          %v3395 = vld [vmem:[%s610 + $0x38] sm:$0xff]
          %v3396 = vld [vmem:[%s610 + $0x40] sm:$0xff]
          %v3397 = vld [vmem:[%s610 + $0x48] sm:$0xff]
          %v3398 = vld [vmem:[%s610 + $0x50] sm:$0xff]
          %v3399 = vld [vmem:[%s610 + $0x58] sm:$0xff]
          %v3400 = vld [vmem:[%s610 + $0x60] sm:$0xff]
          %v3401 = vld [vmem:[%s610 + $0x68] sm:$0xff]
          %v3402 = vld [vmem:[%s610 + $0x70] sm:$0xff]
          %v3403 = vld [vmem:[%s610 + $0x78] sm:$0xff]
          %v3404 = vld [vmem:[%s610 + $0x80] sm:$0xff]
          %v3405 = vld [vmem:[%s610 + $0x88] sm:$0xff]
          %v3406 = vld [vmem:[%s610 + $0x90] sm:$0xff]
          %v3407 = vld [vmem:[%s610 + $0x98] sm:$0xff]
          %v3408 = vld [vmem:[%s610 + $0xa0] sm:$0xff]
          %v3409 = vld [vmem:[%s610 + $0xa8] sm:$0xff]
          %v3410 = vld [vmem:[%s610 + $0xb0] sm:$0xff]
          %v3411 = vld [vmem:[%s610 + $0xb8] sm:$0xff]
          %v3412 = vld [vmem:[%s610 + $0xc0] sm:$0xff]
          %v3413 = vld [vmem:[%s610 + $0xc8] sm:$0xff]
          %v3414 = vld [vmem:[%s610 + $0xd0] sm:$0xff]
          %v3415 = vld [vmem:[%s610 + $0xd8] sm:$0xff]
          %v3416 = vld [vmem:[%s610 + $0xe0] sm:$0xff]
          %v3417 = vld [vmem:[%s610 + $0xe8] sm:$0xff]
          %v3418 = vld [vmem:[%s610 + $0xf0] sm:$0xff]
          %v3419 = vld [vmem:[%s610 + $0xf8] sm:$0xff]
          %v3420 = vld [vmem:[%s614] sm:$0xff]
          %v3421 = vld [vmem:[%s614 + $0x8] sm:$0xff]
          %v3424 = vlaneseq
          %v3425 = vshrl.u32 %v3424, 7
          %v3426 = vsub.s32 0, %v3425
          %v3427 = vrot.slane %v3420, %v3426
          %v3428 = vlaneseq
          %v3429 = vshrl.u32 %v3428, 7
          %v3430 = vsub.s32 1, %v3429
          %v3431 = vrot.slane %v3420, %v3430
          %v3432 = vlaneseq
          %v3433 = vshrl.u32 %v3432, 7
          %v3434 = vsub.s32 2, %v3433
          %v3435 = vrot.slane %v3420, %v3434
          %v3436 = vlaneseq
          %v3437 = vshrl.u32 %v3436, 7
          %v3438 = vsub.s32 3, %v3437
          %v3439 = vrot.slane %v3420, %v3438
          %v3440 = vlaneseq
          %v3441 = vshrl.u32 %v3440, 7
          %v3442 = vsub.s32 4, %v3441
          %v3443 = vrot.slane %v3420, %v3442
          %v3444 = vlaneseq
          %v3445 = vshrl.u32 %v3444, 7
          %v3446 = vsub.s32 5, %v3445
          %v3447 = vrot.slane %v3420, %v3446
          %v3448 = vlaneseq
          %v3449 = vshrl.u32 %v3448, 7
          %v3450 = vsub.s32 6, %v3449
          %v3451 = vrot.slane %v3420, %v3450
          %v3452 = vlaneseq
          %v3453 = vshrl.u32 %v3452, 7
          %v3454 = vsub.s32 7, %v3453
          %v3455 = vrot.slane %v3420, %v3454
          %v3456 = vlaneseq
          %v3457 = vshrl.u32 %v3456, 7
          %v3458 = vsub.s32 0, %v3457
          %v3459 = vrot.slane %v3421, %v3458
          %v3460 = vlaneseq
          %v3461 = vshrl.u32 %v3460, 7
          %v3462 = vsub.s32 1, %v3461
          %v3463 = vrot.slane %v3421, %v3462
          %v3464 = vlaneseq
          %v3465 = vshrl.u32 %v3464, 7
          %v3466 = vsub.s32 2, %v3465
          %v3467 = vrot.slane %v3421, %v3466
          %v3468 = vlaneseq
          %v3469 = vshrl.u32 %v3468, 7
          %v3470 = vsub.s32 3, %v3469
          %v3471 = vrot.slane %v3421, %v3470
          %v3472 = vlaneseq
          %v3473 = vshrl.u32 %v3472, 7
          %v3474 = vsub.s32 4, %v3473
          %v3475 = vrot.slane %v3421, %v3474
          %v3476 = vlaneseq
          %v3477 = vshrl.u32 %v3476, 7
          %v3478 = vsub.s32 5, %v3477
          %v3479 = vrot.slane %v3421, %v3478
          %v3480 = vlaneseq
          %v3481 = vshrl.u32 %v3480, 7
          %v3482 = vsub.s32 6, %v3481
          %v3483 = vrot.slane %v3421, %v3482
          %v3484 = vlaneseq
          %v3485 = vshrl.u32 %v3484, 7
          %v3486 = vsub.s32 7, %v3485
          %v3487 = vrot.slane %v3421, %v3486
          %v3536 = vunpack.c.l.b16 %v3388
          %v3537 = vunpack.c.h.b16 %v3388
          %v3538 = vunpack.c.l.b16 %v3389
          %v3539 = vunpack.c.h.b16 %v3389
          %v3540 = vunpack.c.l.b16 %v3390
          %v3541 = vunpack.c.h.b16 %v3390
          %v3542 = vunpack.c.l.b16 %v3391
          %v3543 = vunpack.c.h.b16 %v3391
          %v3544 = vunpack.c.l.b16 %v3392
          %v3545 = vunpack.c.h.b16 %v3392
          %v3546 = vunpack.c.l.b16 %v3393
          %v3547 = vunpack.c.h.b16 %v3393
          %v3548 = vunpack.c.l.b16 %v3394
          %v3549 = vunpack.c.h.b16 %v3394
          %v3550 = vunpack.c.l.b16 %v3395
          %v3551 = vunpack.c.h.b16 %v3395
          %v3552 = vunpack.c.l.b16 %v3396
          %v3553 = vunpack.c.h.b16 %v3396
          %v3554 = vunpack.c.l.b16 %v3397
          %v3555 = vunpack.c.h.b16 %v3397
          %v3556 = vunpack.c.l.b16 %v3398
          %v3557 = vunpack.c.h.b16 %v3398
          %v3558 = vunpack.c.l.b16 %v3399
          %v3559 = vunpack.c.h.b16 %v3399
          %v3560 = vunpack.c.l.b16 %v3400
          %v3561 = vunpack.c.h.b16 %v3400
          %v3562 = vunpack.c.l.b16 %v3401
          %v3563 = vunpack.c.h.b16 %v3401
          %v3564 = vunpack.c.l.b16 %v3402
          %v3565 = vunpack.c.h.b16 %v3402
          %v3566 = vunpack.c.l.b16 %v3403
          %v3567 = vunpack.c.h.b16 %v3403
          %v3568 = vunpack.c.l.b16 %v3404
          %v3569 = vunpack.c.h.b16 %v3404
          %v3570 = vunpack.c.l.b16 %v3405
          %v3571 = vunpack.c.h.b16 %v3405
          %v3572 = vunpack.c.l.b16 %v3406
          %v3573 = vunpack.c.h.b16 %v3406
          %v3574 = vunpack.c.l.b16 %v3407
          %v3575 = vunpack.c.h.b16 %v3407
          %v3576 = vunpack.c.l.b16 %v3408
          %v3577 = vunpack.c.h.b16 %v3408
          %v3578 = vunpack.c.l.b16 %v3409
          %v3579 = vunpack.c.h.b16 %v3409
          %v3580 = vunpack.c.l.b16 %v3410
          %v3581 = vunpack.c.h.b16 %v3410
          %v3582 = vunpack.c.l.b16 %v3411
          %v3583 = vunpack.c.h.b16 %v3411
          %v3584 = vunpack.c.l.b16 %v3412
          %v3585 = vunpack.c.h.b16 %v3412
          %v3586 = vunpack.c.l.b16 %v3413
          %v3587 = vunpack.c.h.b16 %v3413
          %v3588 = vunpack.c.l.b16 %v3414
          %v3589 = vunpack.c.h.b16 %v3414
          %v3590 = vunpack.c.l.b16 %v3415
          %v3591 = vunpack.c.h.b16 %v3415
          %v3592 = vunpack.c.l.b16 %v3416
          %v3593 = vunpack.c.h.b16 %v3416
          %v3594 = vunpack.c.l.b16 %v3417
          %v3595 = vunpack.c.h.b16 %v3417
          %v3596 = vunpack.c.l.b16 %v3418
          %v3597 = vunpack.c.h.b16 %v3418
          %v3598 = vunpack.c.l.b16 %v3419
          %v3599 = vunpack.c.h.b16 %v3419
          %v3600 = vpack.c.b16 %v3552, %v3536
          %v3601 = vpack.c.b16 %v3553, %v3537
          %v3602 = vpack.c.b16 %v3554, %v3538
          %v3603 = vpack.c.b16 %v3555, %v3539
          %v3604 = vpack.c.b16 %v3556, %v3540
          %v3605 = vpack.c.b16 %v3557, %v3541
          %v3606 = vpack.c.b16 %v3558, %v3542
          %v3607 = vpack.c.b16 %v3559, %v3543
          %v3608 = vpack.c.b16 %v3560, %v3544
          %v3609 = vpack.c.b16 %v3561, %v3545
          %v3610 = vpack.c.b16 %v3562, %v3546
          %v3611 = vpack.c.b16 %v3563, %v3547
          %v3612 = vpack.c.b16 %v3564, %v3548
          %v3613 = vpack.c.b16 %v3565, %v3549
          %v3614 = vpack.c.b16 %v3566, %v3550
          %v3615 = vpack.c.b16 %v3567, %v3551
          %v3616 = vpack.c.b16 %v3584, %v3568
          %v3617 = vpack.c.b16 %v3585, %v3569
          %v3618 = vpack.c.b16 %v3586, %v3570
          %v3619 = vpack.c.b16 %v3587, %v3571
          %v3620 = vpack.c.b16 %v3588, %v3572
          %v3621 = vpack.c.b16 %v3589, %v3573
          %v3622 = vpack.c.b16 %v3590, %v3574
          %v3623 = vpack.c.b16 %v3591, %v3575
          %v3624 = vpack.c.b16 %v3592, %v3576
          %v3625 = vpack.c.b16 %v3593, %v3577
          %v3626 = vpack.c.b16 %v3594, %v3578
          %v3627 = vpack.c.b16 %v3595, %v3579
          %v3628 = vpack.c.b16 %v3596, %v3580
          %v3629 = vpack.c.b16 %v3597, %v3581
          %v3630 = vpack.c.b16 %v3598, %v3582
          %v3631 = vpack.c.b16 %v3599, %v3583
          %v3665 = vsel %vm732, %v3387, 0
          %3667 = vmatprep.subr.bf16.mxu0 %v3601
          %3668 = vmatpush1.bf16.msra.mxu0 %v3600
          %3669 = vmatprep.subr.bf16.mxu0 %v3617
          %3670 = vmatpush1.bf16.msra.mxu0 %v3616
          %3671 = vmatprep.subr.bf16.mxu0 0
          %3672 = vmatpush1.bf16.msra.mxu0 0
          %3673 = vmatprep.subr.bf16.mxu0 0
          %3674 = vmatpush1.bf16.msra.mxu0 0
          %3675 = vmatprep.subr.bf16.mxu0 0
          %3676 = vmatpush1.bf16.msra.mxu0 0
          %3677 = vmatprep.subr.bf16.mxu0 0
          %3678 = vmatpush1.bf16.msra.mxu0 0
          %3679 = vmatprep.subr.bf16.mxu0 0
          %3680 = vmatpush1.bf16.msra.mxu0 0
          %3681 = vmatprep.subr.bf16.mxu0 0
          %3682 = vmatpush1.bf16.msra.mxu0 0
          %3683 = vmatprep.subr.bf16.mxu0 0
          %3684 = vmatpush1.bf16.msra.mxu0 0
          %3685 = vmatprep.subr.bf16.mxu0 0
          %3686 = vmatpush1.bf16.msra.mxu0 0
          %3687 = vmatprep.subr.bf16.mxu0 0
          %3688 = vmatpush1.bf16.msra.mxu0 0
          %3689 = vmatprep.subr.bf16.mxu0 0
          %3690 = vmatpush1.bf16.msra.mxu0 0
          %3691 = vmatprep.subr.bf16.mxu0 0
          %3692 = vmatpush1.bf16.msra.mxu0 0
          %3693 = vmatprep.subr.bf16.mxu0 0
          %3694 = vmatpush1.bf16.msra.mxu0 0
          %3695 = vmatprep.subr.bf16.mxu0 0
          %3696 = vmatpush1.bf16.msra.mxu0 0
          %3697 = vmatprep.subr.bf16.mxu0 0
          %3698 = vmatpush1.bf16.msra.mxu0 0
          %3699 = vmatprep.mubr.bf16.mxu0 0
          %3700 = vmatmul.mubr.bf16.gmra.mrb[0].mxu0 %v3665
          %v3701 = vpop.f32.mrb[0].mxu0
          %v3702 = vadd.f32 %v3427, %v3701
          %v3703 = vpop.f32.mrb[0].mxu0
          %v3704 = vadd.f32 %v3431, %v3703
          %v3705 = vpop.f32.mrb[0].mxu0
          %v3706 = vpop.f32.mrb[0].mxu0
          %3707 = vdwg.mxu0
          %3708 = vmatprep.subr.bf16.mxu0 %v3603
          %3709 = vmatpush1.bf16.msra.mxu0 %v3602
          %3710 = vmatprep.subr.bf16.mxu0 %v3619
          %3711 = vmatpush1.bf16.msra.mxu0 %v3618
          %3712 = vmatprep.subr.bf16.mxu0 0
          %3713 = vmatpush1.bf16.msra.mxu0 0
          %3714 = vmatprep.subr.bf16.mxu0 0
          %3715 = vmatpush1.bf16.msra.mxu0 0
          %3716 = vmatprep.subr.bf16.mxu0 0
          %3717 = vmatpush1.bf16.msra.mxu0 0
          %3718 = vmatprep.subr.bf16.mxu0 0
          %3719 = vmatpush1.bf16.msra.mxu0 0
          %3720 = vmatprep.subr.bf16.mxu0 0
          %3721 = vmatpush1.bf16.msra.mxu0 0
          %3722 = vmatprep.subr.bf16.mxu0 0
          %3723 = vmatpush1.bf16.msra.mxu0 0
          %3724 = vmatprep.subr.bf16.mxu0 0
          %3725 = vmatpush1.bf16.msra.mxu0 0
          %3726 = vmatprep.subr.bf16.mxu0 0
          %3727 = vmatpush1.bf16.msra.mxu0 0
          %3728 = vmatprep.subr.bf16.mxu0 0
          %3729 = vmatpush1.bf16.msra.mxu0 0
          %3730 = vmatprep.subr.bf16.mxu0 0
          %3731 = vmatpush1.bf16.msra.mxu0 0
          %3732 = vmatprep.subr.bf16.mxu0 0
          %3733 = vmatpush1.bf16.msra.mxu0 0
          %3734 = vmatprep.subr.bf16.mxu0 0
          %3735 = vmatpush1.bf16.msra.mxu0 0
          %3736 = vmatprep.subr.bf16.mxu0 0
          %3737 = vmatpush1.bf16.msra.mxu0 0
          %3738 = vmatprep.subr.bf16.mxu0 0
          %3739 = vmatpush1.bf16.msra.mxu0 0
          %3740 = vmatprep.mubr.bf16.mxu0 0
          %3741 = vmatmul.mubr.bf16.gmra.mrb[0].mxu0 %v3665
          %v3742 = vpop.f32.mrb[0].mxu0
          %v3743 = vadd.f32 %v3435, %v3742
          %v3744 = vpop.f32.mrb[0].mxu0
          %v3745 = vadd.f32 %v3439, %v3744
          %v3746 = vpop.f32.mrb[0].mxu0
          %v3747 = vpop.f32.mrb[0].mxu0
          %3748 = vdwg.mxu0
          %3749 = vmatprep.subr.bf16.mxu0 %v3605
          %3750 = vmatpush1.bf16.msra.mxu0 %v3604
          %3751 = vmatprep.subr.bf16.mxu0 %v3621
          %3752 = vmatpush1.bf16.msra.mxu0 %v3620
          %3753 = vmatprep.subr.bf16.mxu0 0
          %3754 = vmatpush1.bf16.msra.mxu0 0
          %3755 = vmatprep.subr.bf16.mxu0 0
          %3756 = vmatpush1.bf16.msra.mxu0 0
          %3757 = vmatprep.subr.bf16.mxu0 0
          %3758 = vmatpush1.bf16.msra.mxu0 0
          %3759 = vmatprep.subr.bf16.mxu0 0
          %3760 = vmatpush1.bf16.msra.mxu0 0
          %3761 = vmatprep.subr.bf16.mxu0 0
          %3762 = vmatpush1.bf16.msra.mxu0 0
          %3763 = vmatprep.subr.bf16.mxu0 0
          %3764 = vmatpush1.bf16.msra.mxu0 0
          %3765 = vmatprep.subr.bf16.mxu0 0
          %3766 = vmatpush1.bf16.msra.mxu0 0
          %3767 = vmatprep.subr.bf16.mxu0 0
          %3768 = vmatpush1.bf16.msra.mxu0 0
          %3769 = vmatprep.subr.bf16.mxu0 0
          %3770 = vmatpush1.bf16.msra.mxu0 0
          %3771 = vmatprep.subr.bf16.mxu0 0
          %3772 = vmatpush1.bf16.msra.mxu0 0
          %3773 = vmatprep.subr.bf16.mxu0 0
          %3774 = vmatpush1.bf16.msra.mxu0 0
          %3775 = vmatprep.subr.bf16.mxu0 0
          %3776 = vmatpush1.bf16.msra.mxu0 0
          %3777 = vmatprep.subr.bf16.mxu0 0
          %3778 = vmatpush1.bf16.msra.mxu0 0
          %3779 = vmatprep.subr.bf16.mxu0 0
          %3780 = vmatpush1.bf16.msra.mxu0 0
          %3781 = vmatprep.mubr.bf16.mxu0 0
          %3782 = vmatmul.mubr.bf16.gmra.mrb[0].mxu0 %v3665
          %v3783 = vpop.f32.mrb[0].mxu0
          %v3784 = vadd.f32 %v3443, %v3783
          %v3785 = vpop.f32.mrb[0].mxu0
          %v3786 = vadd.f32 %v3447, %v3785
          %v3787 = vpop.f32.mrb[0].mxu0
          %v3788 = vpop.f32.mrb[0].mxu0
          %3789 = vdwg.mxu0
          %3790 = vmatprep.subr.bf16.mxu0 %v3607
          %3791 = vmatpush1.bf16.msra.mxu0 %v3606
          %3792 = vmatprep.subr.bf16.mxu0 %v3623
          %3793 = vmatpush1.bf16.msra.mxu0 %v3622
          %3794 = vmatprep.subr.bf16.mxu0 0
          %3795 = vmatpush1.bf16.msra.mxu0 0
          %3796 = vmatprep.subr.bf16.mxu0 0
          %3797 = vmatpush1.bf16.msra.mxu0 0
          %3798 = vmatprep.subr.bf16.mxu0 0
          %3799 = vmatpush1.bf16.msra.mxu0 0
          %3800 = vmatprep.subr.bf16.mxu0 0
          %3801 = vmatpush1.bf16.msra.mxu0 0
          %3802 = vmatprep.subr.bf16.mxu0 0
          %3803 = vmatpush1.bf16.msra.mxu0 0
          %3804 = vmatprep.subr.bf16.mxu0 0
          %3805 = vmatpush1.bf16.msra.mxu0 0
          %3806 = vmatprep.subr.bf16.mxu0 0
          %3807 = vmatpush1.bf16.msra.mxu0 0
          %3808 = vmatprep.subr.bf16.mxu0 0
          %3809 = vmatpush1.bf16.msra.mxu0 0
          %3810 = vmatprep.subr.bf16.mxu0 0
          %3811 = vmatpush1.bf16.msra.mxu0 0
          %3812 = vmatprep.subr.bf16.mxu0 0
          %3813 = vmatpush1.bf16.msra.mxu0 0
          %3814 = vmatprep.subr.bf16.mxu0 0
          %3815 = vmatpush1.bf16.msra.mxu0 0
          %3816 = vmatprep.subr.bf16.mxu0 0
          %3817 = vmatpush1.bf16.msra.mxu0 0
          %3818 = vmatprep.subr.bf16.mxu0 0
          %3819 = vmatpush1.bf16.msra.mxu0 0
          %3820 = vmatprep.subr.bf16.mxu0 0
          %3821 = vmatpush1.bf16.msra.mxu0 0
          %3822 = vmatprep.mubr.bf16.mxu0 0
          %3823 = vmatmul.mubr.bf16.gmra.mrb[0].mxu0 %v3665
          %v3824 = vpop.f32.mrb[0].mxu0
          %v3825 = vadd.f32 %v3451, %v3824
          %v3826 = vpop.f32.mrb[0].mxu0
          %v3827 = vadd.f32 %v3455, %v3826
          %v3828 = vpop.f32.mrb[0].mxu0
          %v3829 = vpop.f32.mrb[0].mxu0
          %3830 = vdwg.mxu0
          %3831 = vmatprep.subr.bf16.mxu0 %v3609
          %3832 = vmatpush1.bf16.msra.mxu0 %v3608
          %3833 = vmatprep.subr.bf16.mxu0 %v3625
          %3834 = vmatpush1.bf16.msra.mxu0 %v3624
          %3835 = vmatprep.subr.bf16.mxu0 0
          %3836 = vmatpush1.bf16.msra.mxu0 0
          %3837 = vmatprep.subr.bf16.mxu0 0
          %3838 = vmatpush1.bf16.msra.mxu0 0
          %3839 = vmatprep.subr.bf16.mxu0 0
          %3840 = vmatpush1.bf16.msra.mxu0 0
          %3841 = vmatprep.subr.bf16.mxu0 0
          %3842 = vmatpush1.bf16.msra.mxu0 0
          %3843 = vmatprep.subr.bf16.mxu0 0
          %3844 = vmatpush1.bf16.msra.mxu0 0
          %3845 = vmatprep.subr.bf16.mxu0 0
          %3846 = vmatpush1.bf16.msra.mxu0 0
          %3847 = vmatprep.subr.bf16.mxu0 0
          %3848 = vmatpush1.bf16.msra.mxu0 0
          %3849 = vmatprep.subr.bf16.mxu0 0
          %3850 = vmatpush1.bf16.msra.mxu0 0
          %3851 = vmatprep.subr.bf16.mxu0 0
          %3852 = vmatpush1.bf16.msra.mxu0 0
          %3853 = vmatprep.subr.bf16.mxu0 0
          %3854 = vmatpush1.bf16.msra.mxu0 0
          %3855 = vmatprep.subr.bf16.mxu0 0
          %3856 = vmatpush1.bf16.msra.mxu0 0
          %3857 = vmatprep.subr.bf16.mxu0 0
          %3858 = vmatpush1.bf16.msra.mxu0 0
          %3859 = vmatprep.subr.bf16.mxu0 0
          %3860 = vmatpush1.bf16.msra.mxu0 0
          %3861 = vmatprep.subr.bf16.mxu0 0
          %3862 = vmatpush1.bf16.msra.mxu0 0
          %3863 = vmatprep.mubr.bf16.mxu0 0
          %3864 = vmatmul.mubr.bf16.gmra.mrb[0].mxu0 %v3665
          %v3865 = vpop.f32.mrb[0].mxu0
          %v3866 = vadd.f32 %v3459, %v3865
          %v3867 = vpop.f32.mrb[0].mxu0
          %v3868 = vadd.f32 %v3463, %v3867
          %v3869 = vpop.f32.mrb[0].mxu0
          %v3870 = vpop.f32.mrb[0].mxu0
          %3871 = vdwg.mxu0
          %3872 = vmatprep.subr.bf16.mxu0 %v3611
          %3873 = vmatpush1.bf16.msra.mxu0 %v3610
          %3874 = vmatprep.subr.bf16.mxu0 %v3627
          %3875 = vmatpush1.bf16.msra.mxu0 %v3626
          %3876 = vmatprep.subr.bf16.mxu0 0
          %3877 = vmatpush1.bf16.msra.mxu0 0
          %3878 = vmatprep.subr.bf16.mxu0 0
          %3879 = vmatpush1.bf16.msra.mxu0 0
          %3880 = vmatprep.subr.bf16.mxu0 0
          %3881 = vmatpush1.bf16.msra.mxu0 0
          %3882 = vmatprep.subr.bf16.mxu0 0
          %3883 = vmatpush1.bf16.msra.mxu0 0
          %3884 = vmatprep.subr.bf16.mxu0 0
          %3885 = vmatpush1.bf16.msra.mxu0 0
          %3886 = vmatprep.subr.bf16.mxu0 0
          %3887 = vmatpush1.bf16.msra.mxu0 0
          %3888 = vmatprep.subr.bf16.mxu0 0
          %3889 = vmatpush1.bf16.msra.mxu0 0
          %3890 = vmatprep.subr.bf16.mxu0 0
          %3891 = vmatpush1.bf16.msra.mxu0 0
          %3892 = vmatprep.subr.bf16.mxu0 0
          %3893 = vmatpush1.bf16.msra.mxu0 0
          %3894 = vmatprep.subr.bf16.mxu0 0
          %3895 = vmatpush1.bf16.msra.mxu0 0
          %3896 = vmatprep.subr.bf16.mxu0 0
          %3897 = vmatpush1.bf16.msra.mxu0 0
          %3898 = vmatprep.subr.bf16.mxu0 0
          %3899 = vmatpush1.bf16.msra.mxu0 0
          %3900 = vmatprep.subr.bf16.mxu0 0
          %3901 = vmatpush1.bf16.msra.mxu0 0
          %3902 = vmatprep.subr.bf16.mxu0 0
          %3903 = vmatpush1.bf16.msra.mxu0 0
          %3904 = vmatprep.mubr.bf16.mxu0 0
          %3905 = vmatmul.mubr.bf16.gmra.mrb[0].mxu0 %v3665
          %v3906 = vpop.f32.mrb[0].mxu0
          %v3907 = vadd.f32 %v3467, %v3906
          %v3908 = vpop.f32.mrb[0].mxu0
          %v3909 = vadd.f32 %v3471, %v3908
          %v3910 = vpop.f32.mrb[0].mxu0
          %v3911 = vpop.f32.mrb[0].mxu0
          %3912 = vdwg.mxu0
          %3913 = vmatprep.subr.bf16.mxu0 %v3613
          %3914 = vmatpush1.bf16.msra.mxu0 %v3612
          %3915 = vmatprep.subr.bf16.mxu0 %v3629
          %3916 = vmatpush1.bf16.msra.mxu0 %v3628
          %3917 = vmatprep.subr.bf16.mxu0 0
          %3918 = vmatpush1.bf16.msra.mxu0 0
          %3919 = vmatprep.subr.bf16.mxu0 0
          %3920 = vmatpush1.bf16.msra.mxu0 0
          %3921 = vmatprep.subr.bf16.mxu0 0
          %3922 = vmatpush1.bf16.msra.mxu0 0
          %3923 = vmatprep.subr.bf16.mxu0 0
          %3924 = vmatpush1.bf16.msra.mxu0 0
          %3925 = vmatprep.subr.bf16.mxu0 0
          %3926 = vmatpush1.bf16.msra.mxu0 0
          %3927 = vmatprep.subr.bf16.mxu0 0
          %3928 = vmatpush1.bf16.msra.mxu0 0
          %3929 = vmatprep.subr.bf16.mxu0 0
          %3930 = vmatpush1.bf16.msra.mxu0 0
          %3931 = vmatprep.subr.bf16.mxu0 0
          %3932 = vmatpush1.bf16.msra.mxu0 0
          %3933 = vmatprep.subr.bf16.mxu0 0
          %3934 = vmatpush1.bf16.msra.mxu0 0
          %3935 = vmatprep.subr.bf16.mxu0 0
          %3936 = vmatpush1.bf16.msra.mxu0 0
          %3937 = vmatprep.subr.bf16.mxu0 0
          %3938 = vmatpush1.bf16.msra.mxu0 0
          %3939 = vmatprep.subr.bf16.mxu0 0
          %3940 = vmatpush1.bf16.msra.mxu0 0
          %3941 = vmatprep.subr.bf16.mxu0 0
          %3942 = vmatpush1.bf16.msra.mxu0 0
          %3943 = vmatprep.subr.bf16.mxu0 0
          %3944 = vmatpush1.bf16.msra.mxu0 0
          %3945 = vmatprep.mubr.bf16.mxu0 0
          %3946 = vmatmul.mubr.bf16.gmra.mrb[0].mxu0 %v3665
          %v3947 = vpop.f32.mrb[0].mxu0
          %v3948 = vadd.f32 %v3475, %v3947
          %v3949 = vpop.f32.mrb[0].mxu0
          %v3950 = vadd.f32 %v3479, %v3949
          %v3951 = vpop.f32.mrb[0].mxu0
          %v3952 = vpop.f32.mrb[0].mxu0
          %3953 = vdwg.mxu0
          %3954 = vmatprep.subr.bf16.mxu0 %v3615
          %3955 = vmatpush1.bf16.msra.mxu0 %v3614
          %3956 = vmatprep.subr.bf16.mxu0 %v3631
          %3957 = vmatpush1.bf16.msra.mxu0 %v3630
          %3958 = vmatprep.subr.bf16.mxu0 0
          %3959 = vmatpush1.bf16.msra.mxu0 0
          %3960 = vmatprep.subr.bf16.mxu0 0
          %3961 = vmatpush1.bf16.msra.mxu0 0
          %3962 = vmatprep.subr.bf16.mxu0 0
          %3963 = vmatpush1.bf16.msra.mxu0 0
          %3964 = vmatprep.subr.bf16.mxu0 0
          %3965 = vmatpush1.bf16.msra.mxu0 0
          %3966 = vmatprep.subr.bf16.mxu0 0
          %3967 = vmatpush1.bf16.msra.mxu0 0
          %3968 = vmatprep.subr.bf16.mxu0 0
          %3969 = vmatpush1.bf16.msra.mxu0 0
          %3970 = vmatprep.subr.bf16.mxu0 0
          %3971 = vmatpush1.bf16.msra.mxu0 0
          %3972 = vmatprep.subr.bf16.mxu0 0
          %3973 = vmatpush1.bf16.msra.mxu0 0
          %3974 = vmatprep.subr.bf16.mxu0 0
          %3975 = vmatpush1.bf16.msra.mxu0 0
          %3976 = vmatprep.subr.bf16.mxu0 0
          %3977 = vmatpush1.bf16.msra.mxu0 0
          %3978 = vmatprep.subr.bf16.mxu0 0
          %3979 = vmatpush1.bf16.msra.mxu0 0
          %3980 = vmatprep.subr.bf16.mxu0 0
          %3981 = vmatpush1.bf16.msra.mxu0 0
          %3982 = vmatprep.subr.bf16.mxu0 0
          %3983 = vmatpush1.bf16.msra.mxu0 0
          %3984 = vmatprep.subr.bf16.mxu0 0
          %3985 = vmatpush1.bf16.msra.mxu0 0
          %3986 = vmatprep.mubr.bf16.mxu0 0
          %3987 = vmatmul.mubr.bf16.gmra.mrb[0].mxu0 %v3665
          %v3988 = vpop.f32.mrb[0].mxu0
          %v3989 = vadd.f32 %v3483, %v3988
          %v3990 = vpop.f32.mrb[0].mxu0
          %v3991 = vadd.f32 %v3487, %v3990
          %v3992 = vpop.f32.mrb[0].mxu0
          %v3993 = vpop.f32.mrb[0].mxu0
          %3994 = vdwg.mxu0
          %v3995 = vmax.f32 %v3702, 0.0
          %v3996 = vmax.f32 %v3704, 0.0
          %v3997 = vmax.f32 %v3743, 0.0
          %v3998 = vmax.f32 %v3745, 0.0
          %v3999 = vmax.f32 %v3784, 0.0
          %v4000 = vmax.f32 %v3786, 0.0
          %v4001 = vmax.f32 %v3825, 0.0
          %v4002 = vmax.f32 %v3827, 0.0
          %v4003 = vmax.f32 %v3866, 0.0
          %v4004 = vmax.f32 %v3868, 0.0
          %v4005 = vmax.f32 %v3907, 0.0
          %v4006 = vmax.f32 %v3909, 0.0
          %v4007 = vmax.f32 %v3948, 0.0
          %v4008 = vmax.f32 %v3950, 0.0
          %v4009 = vmax.f32 %v3989, 0.0
          %v4010 = vmax.f32 %v3991, 0.0
          %v4011 = vpack.c.bf16 %v3995, %v3995
          %v4012 = vpack.c.bf16 %v3996, %v3996
          %v4013 = vpack.c.bf16 %v3997, %v3997
          %v4014 = vpack.c.bf16 %v3998, %v3998
          %v4015 = vpack.c.bf16 %v3999, %v3999
          %v4016 = vpack.c.bf16 %v4000, %v4000
          %v4017 = vpack.c.bf16 %v4001, %v4001
          %v4018 = vpack.c.bf16 %v4002, %v4002
          %v4019 = vpack.c.bf16 %v4003, %v4003
          %v4020 = vpack.c.bf16 %v4004, %v4004
          %v4021 = vpack.c.bf16 %v4005, %v4005
          %v4022 = vpack.c.bf16 %v4006, %v4006
          %v4023 = vpack.c.bf16 %v4007, %v4007
          %v4024 = vpack.c.bf16 %v4008, %v4008
          %v4025 = vpack.c.bf16 %v4009, %v4009
          %v4026 = vpack.c.bf16 %v4010, %v4010
          %v4027 = vld [vmem:[%s505] sm:$0xf]
          %v4028 = vld [vmem:[%s505 + $0x4] sm:$0xf]
          %v4029 = vld [vmem:[%s505 + $0x8] sm:$0xf]
          %v4030 = vld [vmem:[%s505 + $0xc] sm:$0xf]
          %v4031 = vld [vmem:[%s505 + $0x10] sm:$0xf]
          %v4032 = vld [vmem:[%s505 + $0x14] sm:$0xf]
          %v4033 = vld [vmem:[%s505 + $0x18] sm:$0xf]
          %v4034 = vld [vmem:[%s505 + $0x1c] sm:$0xf]
          %v4035 = vld [vmem:[%s505 + $0x20] sm:$0xf]
          %v4036 = vld [vmem:[%s505 + $0x24] sm:$0xf]
          %v4037 = vld [vmem:[%s505 + $0x28] sm:$0xf]
          %v4038 = vld [vmem:[%s505 + $0x2c] sm:$0xf]
          %v4039 = vld [vmem:[%s505 + $0x30] sm:$0xf]
          %v4040 = vld [vmem:[%s505 + $0x34] sm:$0xf]
          %v4041 = vld [vmem:[%s505 + $0x38] sm:$0xf]
          %v4042 = vld [vmem:[%s505 + $0x3c] sm:$0xf]
          %v4043 = vld [vmem:[%s505 + $0x40] sm:$0xf]
          %v4044 = vld [vmem:[%s505 + $0x44] sm:$0xf]
          %v4045 = vld [vmem:[%s505 + $0x48] sm:$0xf]
          %v4046 = vld [vmem:[%s505 + $0x4c] sm:$0xf]
          %v4047 = vld [vmem:[%s505 + $0x50] sm:$0xf]
          %v4048 = vld [vmem:[%s505 + $0x54] sm:$0xf]
          %v4049 = vld [vmem:[%s505 + $0x58] sm:$0xf]
          %v4050 = vld [vmem:[%s505 + $0x5c] sm:$0xf]
          %v4051 = vld [vmem:[%s505 + $0x60] sm:$0xf]
          %v4052 = vld [vmem:[%s505 + $0x64] sm:$0xf]
          %v4053 = vld [vmem:[%s505 + $0x68] sm:$0xf]
          %v4054 = vld [vmem:[%s505 + $0x6c] sm:$0xf]
          %v4055 = vld [vmem:[%s505 + $0x70] sm:$0xf]
          %v4056 = vld [vmem:[%s505 + $0x74] sm:$0xf]
          %v4057 = vld [vmem:[%s505 + $0x78] sm:$0xf]
          %v4058 = vld [vmem:[%s505 + $0x7c] sm:$0xf]
          %v4059 = vld [vmem:[%s505 + $0x80] sm:$0xf]
          %v4060 = vld [vmem:[%s505 + $0x84] sm:$0xf]
          %v4061 = vld [vmem:[%s505 + $0x88] sm:$0xf]
          %v4062 = vld [vmem:[%s505 + $0x8c] sm:$0xf]
          %v4063 = vld [vmem:[%s505 + $0x90] sm:$0xf]
          %v4064 = vld [vmem:[%s505 + $0x94] sm:$0xf]
          %v4065 = vld [vmem:[%s505 + $0x98] sm:$0xf]
          %v4066 = vld [vmem:[%s505 + $0x9c] sm:$0xf]
          %v4067 = vld [vmem:[%s505 + $0xa0] sm:$0xf]
          %v4068 = vld [vmem:[%s505 + $0xa4] sm:$0xf]
          %v4069 = vld [vmem:[%s505 + $0xa8] sm:$0xf]
          %v4070 = vld [vmem:[%s505 + $0xac] sm:$0xf]
          %v4071 = vld [vmem:[%s505 + $0xb0] sm:$0xf]
          %v4072 = vld [vmem:[%s505 + $0xb4] sm:$0xf]
          %v4073 = vld [vmem:[%s505 + $0xb8] sm:$0xf]
          %v4074 = vld [vmem:[%s505 + $0xbc] sm:$0xf]
          %v4075 = vld [vmem:[%s505 + $0xc0] sm:$0xf]
          %v4076 = vld [vmem:[%s505 + $0xc4] sm:$0xf]
          %v4077 = vld [vmem:[%s505 + $0xc8] sm:$0xf]
          %v4078 = vld [vmem:[%s505 + $0xcc] sm:$0xf]
          %v4079 = vld [vmem:[%s505 + $0xd0] sm:$0xf]
          %v4080 = vld [vmem:[%s505 + $0xd4] sm:$0xf]
          %v4081 = vld [vmem:[%s505 + $0xd8] sm:$0xf]
          %v4082 = vld [vmem:[%s505 + $0xdc] sm:$0xf]
          %v4083 = vld [vmem:[%s505 + $0xe0] sm:$0xf]
          %v4084 = vld [vmem:[%s505 + $0xe4] sm:$0xf]
          %v4085 = vld [vmem:[%s505 + $0xe8] sm:$0xf]
          %v4086 = vld [vmem:[%s505 + $0xec] sm:$0xf]
          %v4087 = vld [vmem:[%s505 + $0xf0] sm:$0xf]
          %v4088 = vld [vmem:[%s505 + $0xf4] sm:$0xf]
          %v4089 = vld [vmem:[%s505 + $0xf8] sm:$0xf]
          %v4090 = vld [vmem:[%s505 + $0xfc] sm:$0xf]
          %v4091 = vld [vmem:[%s505 + $0x100] sm:$0xf]
          %v4092 = vld [vmem:[%s505 + $0x104] sm:$0xf]
          %v4093 = vld [vmem:[%s505 + $0x108] sm:$0xf]
          %v4094 = vld [vmem:[%s505 + $0x10c] sm:$0xf]
          %v4095 = vld [vmem:[%s505 + $0x110] sm:$0xf]
          %v4096 = vld [vmem:[%s505 + $0x114] sm:$0xf]
          %v4097 = vld [vmem:[%s505 + $0x118] sm:$0xf]
          %v4098 = vld [vmem:[%s505 + $0x11c] sm:$0xf]
          %v4099 = vld [vmem:[%s505 + $0x120] sm:$0xf]
          %v4100 = vld [vmem:[%s505 + $0x124] sm:$0xf]
          %v4101 = vld [vmem:[%s505 + $0x128] sm:$0xf]
          %v4102 = vld [vmem:[%s505 + $0x12c] sm:$0xf]
          %v4103 = vld [vmem:[%s505 + $0x130] sm:$0xf]
          %v4104 = vld [vmem:[%s505 + $0x134] sm:$0xf]
          %v4105 = vld [vmem:[%s505 + $0x138] sm:$0xf]
          %v4106 = vld [vmem:[%s505 + $0x13c] sm:$0xf]
          %v4107 = vld [vmem:[%s505 + $0x140] sm:$0xf]
          %v4108 = vld [vmem:[%s505 + $0x144] sm:$0xf]
          %v4109 = vld [vmem:[%s505 + $0x148] sm:$0xf]
          %v4110 = vld [vmem:[%s505 + $0x14c] sm:$0xf]
          %v4111 = vld [vmem:[%s505 + $0x150] sm:$0xf]
          %v4112 = vld [vmem:[%s505 + $0x154] sm:$0xf]
          %v4113 = vld [vmem:[%s505 + $0x158] sm:$0xf]
          %v4114 = vld [vmem:[%s505 + $0x15c] sm:$0xf]
          %v4115 = vld [vmem:[%s505 + $0x160] sm:$0xf]
          %v4116 = vld [vmem:[%s505 + $0x164] sm:$0xf]
          %v4117 = vld [vmem:[%s505 + $0x168] sm:$0xf]
          %v4118 = vld [vmem:[%s505 + $0x16c] sm:$0xf]
          %v4119 = vld [vmem:[%s505 + $0x170] sm:$0xf]
          %v4120 = vld [vmem:[%s505 + $0x174] sm:$0xf]
          %v4121 = vld [vmem:[%s505 + $0x178] sm:$0xf]
          %v4122 = vld [vmem:[%s505 + $0x17c] sm:$0xf]
          %v4123 = vld [vmem:[%s505 + $0x180] sm:$0xf]
          %v4124 = vld [vmem:[%s505 + $0x184] sm:$0xf]
          %v4125 = vld [vmem:[%s505 + $0x188] sm:$0xf]
          %v4126 = vld [vmem:[%s505 + $0x18c] sm:$0xf]
          %v4127 = vld [vmem:[%s505 + $0x190] sm:$0xf]
          %v4128 = vld [vmem:[%s505 + $0x194] sm:$0xf]
          %v4129 = vld [vmem:[%s505 + $0x198] sm:$0xf]
          %v4130 = vld [vmem:[%s505 + $0x19c] sm:$0xf]
          %v4131 = vld [vmem:[%s505 + $0x1a0] sm:$0xf]
          %v4132 = vld [vmem:[%s505 + $0x1a4] sm:$0xf]
          %v4133 = vld [vmem:[%s505 + $0x1a8] sm:$0xf]
          %v4134 = vld [vmem:[%s505 + $0x1ac] sm:$0xf]
          %v4135 = vld [vmem:[%s505 + $0x1b0] sm:$0xf]
          %v4136 = vld [vmem:[%s505 + $0x1b4] sm:$0xf]
          %v4137 = vld [vmem:[%s505 + $0x1b8] sm:$0xf]
          %v4138 = vld [vmem:[%s505 + $0x1bc] sm:$0xf]
          %v4139 = vld [vmem:[%s505 + $0x1c0] sm:$0xf]
          %v4140 = vld [vmem:[%s505 + $0x1c4] sm:$0xf]
          %v4141 = vld [vmem:[%s505 + $0x1c8] sm:$0xf]
          %v4142 = vld [vmem:[%s505 + $0x1cc] sm:$0xf]
          %v4143 = vld [vmem:[%s505 + $0x1d0] sm:$0xf]
          %v4144 = vld [vmem:[%s505 + $0x1d4] sm:$0xf]
          %v4145 = vld [vmem:[%s505 + $0x1d8] sm:$0xf]
          %v4146 = vld [vmem:[%s505 + $0x1dc] sm:$0xf]
          %v4147 = vld [vmem:[%s505 + $0x1e0] sm:$0xf]
          %v4148 = vld [vmem:[%s505 + $0x1e4] sm:$0xf]
          %v4149 = vld [vmem:[%s505 + $0x1e8] sm:$0xf]
          %v4150 = vld [vmem:[%s505 + $0x1ec] sm:$0xf]
          %v4151 = vld [vmem:[%s505 + $0x1f0] sm:$0xf]
          %v4152 = vld [vmem:[%s505 + $0x1f4] sm:$0xf]
          %v4153 = vld [vmem:[%s505 + $0x1f8] sm:$0xf]
          %v4154 = vld [vmem:[%s505 + $0x1fc] sm:$0xf]
          %v4155 = vld [vmem:[%s505 + $0x200] sm:$0xf]
          %v4156 = vld [vmem:[%s505 + $0x204] sm:$0xf]
          %v4157 = vld [vmem:[%s505 + $0x208] sm:$0xf]
          %v4158 = vld [vmem:[%s505 + $0x20c] sm:$0xf]
          %v4159 = vld [vmem:[%s505 + $0x210] sm:$0xf]
          %v4160 = vld [vmem:[%s505 + $0x214] sm:$0xf]
          %v4161 = vld [vmem:[%s505 + $0x218] sm:$0xf]
          %v4162 = vld [vmem:[%s505 + $0x21c] sm:$0xf]
          %v4163 = vld [vmem:[%s505 + $0x220] sm:$0xf]
          %v4164 = vld [vmem:[%s505 + $0x224] sm:$0xf]
          %v4165 = vld [vmem:[%s505 + $0x228] sm:$0xf]
          %v4166 = vld [vmem:[%s505 + $0x22c] sm:$0xf]
          %v4167 = vld [vmem:[%s505 + $0x230] sm:$0xf]
          %v4168 = vld [vmem:[%s505 + $0x234] sm:$0xf]
          %v4169 = vld [vmem:[%s505 + $0x238] sm:$0xf]
          %v4170 = vld [vmem:[%s505 + $0x23c] sm:$0xf]
          %v4171 = vld [vmem:[%s505 + $0x240] sm:$0xf]
          %v4172 = vld [vmem:[%s505 + $0x244] sm:$0xf]
          %v4173 = vld [vmem:[%s505 + $0x248] sm:$0xf]
          %v4174 = vld [vmem:[%s505 + $0x24c] sm:$0xf]
          %v4175 = vld [vmem:[%s505 + $0x250] sm:$0xf]
          %v4176 = vld [vmem:[%s505 + $0x254] sm:$0xf]
          %v4177 = vld [vmem:[%s505 + $0x258] sm:$0xf]
          %v4178 = vld [vmem:[%s505 + $0x25c] sm:$0xf]
          %v4179 = vld [vmem:[%s505 + $0x260] sm:$0xf]
          %v4180 = vld [vmem:[%s505 + $0x264] sm:$0xf]
          %v4181 = vld [vmem:[%s505 + $0x268] sm:$0xf]
          %v4182 = vld [vmem:[%s505 + $0x26c] sm:$0xf]
          %v4183 = vld [vmem:[%s505 + $0x270] sm:$0xf]
          %v4184 = vld [vmem:[%s505 + $0x274] sm:$0xf]
          %v4185 = vld [vmem:[%s505 + $0x278] sm:$0xf]
          %v4186 = vld [vmem:[%s505 + $0x27c] sm:$0xf]
          %v4187 = vld [vmem:[%s505 + $0x280] sm:$0xf]
          %v4188 = vld [vmem:[%s505 + $0x284] sm:$0xf]
          %v4189 = vld [vmem:[%s505 + $0x288] sm:$0xf]
          %v4190 = vld [vmem:[%s505 + $0x28c] sm:$0xf]
          %v4191 = vld [vmem:[%s505 + $0x290] sm:$0xf]
          %v4192 = vld [vmem:[%s505 + $0x294] sm:$0xf]
          %v4193 = vld [vmem:[%s505 + $0x298] sm:$0xf]
          %v4194 = vld [vmem:[%s505 + $0x29c] sm:$0xf]
          %v4195 = vld [vmem:[%s505 + $0x2a0] sm:$0xf]
          %v4196 = vld [vmem:[%s505 + $0x2a4] sm:$0xf]
          %v4197 = vld [vmem:[%s505 + $0x2a8] sm:$0xf]
          %v4198 = vld [vmem:[%s505 + $0x2ac] sm:$0xf]
          %v4199 = vld [vmem:[%s505 + $0x2b0] sm:$0xf]
          %v4200 = vld [vmem:[%s505 + $0x2b4] sm:$0xf]
          %v4201 = vld [vmem:[%s505 + $0x2b8] sm:$0xf]
          %v4202 = vld [vmem:[%s505 + $0x2bc] sm:$0xf]
          %v4203 = vld [vmem:[%s505 + $0x2c0] sm:$0xf]
          %v4204 = vld [vmem:[%s505 + $0x2c4] sm:$0xf]
          %v4205 = vld [vmem:[%s505 + $0x2c8] sm:$0xf]
          %v4206 = vld [vmem:[%s505 + $0x2cc] sm:$0xf]
          %v4207 = vld [vmem:[%s505 + $0x2d0] sm:$0xf]
          %v4208 = vld [vmem:[%s505 + $0x2d4] sm:$0xf]
          %v4209 = vld [vmem:[%s505 + $0x2d8] sm:$0xf]
          %v4210 = vld [vmem:[%s505 + $0x2dc] sm:$0xf]
          %v4211 = vld [vmem:[%s505 + $0x2e0] sm:$0xf]
          %v4212 = vld [vmem:[%s505 + $0x2e4] sm:$0xf]
          %v4213 = vld [vmem:[%s505 + $0x2e8] sm:$0xf]
          %v4214 = vld [vmem:[%s505 + $0x2ec] sm:$0xf]
          %v4215 = vld [vmem:[%s505 + $0x2f0] sm:$0xf]
          %v4216 = vld [vmem:[%s505 + $0x2f4] sm:$0xf]
          %v4217 = vld [vmem:[%s505 + $0x2f8] sm:$0xf]
          %v4218 = vld [vmem:[%s505 + $0x2fc] sm:$0xf]
          %v4219 = vld [vmem:[%s505 + $0x300] sm:$0xf]
          %v4220 = vld [vmem:[%s505 + $0x304] sm:$0xf]
          %v4221 = vld [vmem:[%s505 + $0x308] sm:$0xf]
          %v4222 = vld [vmem:[%s505 + $0x30c] sm:$0xf]
          %v4223 = vld [vmem:[%s505 + $0x310] sm:$0xf]
          %v4224 = vld [vmem:[%s505 + $0x314] sm:$0xf]
          %v4225 = vld [vmem:[%s505 + $0x318] sm:$0xf]
          %v4226 = vld [vmem:[%s505 + $0x31c] sm:$0xf]
          %v4227 = vld [vmem:[%s505 + $0x320] sm:$0xf]
          %v4228 = vld [vmem:[%s505 + $0x324] sm:$0xf]
          %v4229 = vld [vmem:[%s505 + $0x328] sm:$0xf]
          %v4230 = vld [vmem:[%s505 + $0x32c] sm:$0xf]
          %v4231 = vld [vmem:[%s505 + $0x330] sm:$0xf]
          %v4232 = vld [vmem:[%s505 + $0x334] sm:$0xf]
          %v4233 = vld [vmem:[%s505 + $0x338] sm:$0xf]
          %v4234 = vld [vmem:[%s505 + $0x33c] sm:$0xf]
          %v4235 = vld [vmem:[%s505 + $0x340] sm:$0xf]
          %v4236 = vld [vmem:[%s505 + $0x344] sm:$0xf]
          %v4237 = vld [vmem:[%s505 + $0x348] sm:$0xf]
          %v4238 = vld [vmem:[%s505 + $0x34c] sm:$0xf]
          %v4239 = vld [vmem:[%s505 + $0x350] sm:$0xf]
          %v4240 = vld [vmem:[%s505 + $0x354] sm:$0xf]
          %v4241 = vld [vmem:[%s505 + $0x358] sm:$0xf]
          %v4242 = vld [vmem:[%s505 + $0x35c] sm:$0xf]
          %v4243 = vld [vmem:[%s505 + $0x360] sm:$0xf]
          %v4244 = vld [vmem:[%s505 + $0x364] sm:$0xf]
          %v4245 = vld [vmem:[%s505 + $0x368] sm:$0xf]
          %v4246 = vld [vmem:[%s505 + $0x36c] sm:$0xf]
          %v4247 = vld [vmem:[%s505 + $0x370] sm:$0xf]
          %v4248 = vld [vmem:[%s505 + $0x374] sm:$0xf]
          %v4249 = vld [vmem:[%s505 + $0x378] sm:$0xf]
          %v4250 = vld [vmem:[%s505 + $0x37c] sm:$0xf]
          %v4251 = vld [vmem:[%s505 + $0x380] sm:$0xf]
          %v4252 = vld [vmem:[%s505 + $0x384] sm:$0xf]
          %v4253 = vld [vmem:[%s505 + $0x388] sm:$0xf]
          %v4254 = vld [vmem:[%s505 + $0x38c] sm:$0xf]
          %v4255 = vld [vmem:[%s505 + $0x390] sm:$0xf]
          %v4256 = vld [vmem:[%s505 + $0x394] sm:$0xf]
          %v4257 = vld [vmem:[%s505 + $0x398] sm:$0xf]
          %v4258 = vld [vmem:[%s505 + $0x39c] sm:$0xf]
          %v4259 = vld [vmem:[%s505 + $0x3a0] sm:$0xf]
          %v4260 = vld [vmem:[%s505 + $0x3a4] sm:$0xf]
          %v4261 = vld [vmem:[%s505 + $0x3a8] sm:$0xf]
          %v4262 = vld [vmem:[%s505 + $0x3ac] sm:$0xf]
          %v4263 = vld [vmem:[%s505 + $0x3b0] sm:$0xf]
          %v4264 = vld [vmem:[%s505 + $0x3b4] sm:$0xf]
          %v4265 = vld [vmem:[%s505 + $0x3b8] sm:$0xf]
          %v4266 = vld [vmem:[%s505 + $0x3bc] sm:$0xf]
          %v4267 = vld [vmem:[%s505 + $0x3c0] sm:$0xf]
          %v4268 = vld [vmem:[%s505 + $0x3c4] sm:$0xf]
          %v4269 = vld [vmem:[%s505 + $0x3c8] sm:$0xf]
          %v4270 = vld [vmem:[%s505 + $0x3cc] sm:$0xf]
          %v4271 = vld [vmem:[%s505 + $0x3d0] sm:$0xf]
          %v4272 = vld [vmem:[%s505 + $0x3d4] sm:$0xf]
          %v4273 = vld [vmem:[%s505 + $0x3d8] sm:$0xf]
          %v4274 = vld [vmem:[%s505 + $0x3dc] sm:$0xf]
          %v4275 = vld [vmem:[%s505 + $0x3e0] sm:$0xf]
          %v4276 = vld [vmem:[%s505 + $0x3e4] sm:$0xf]
          %v4277 = vld [vmem:[%s505 + $0x3e8] sm:$0xf]
          %v4278 = vld [vmem:[%s505 + $0x3ec] sm:$0xf]
          %v4279 = vld [vmem:[%s505 + $0x3f0] sm:$0xf]
          %v4280 = vld [vmem:[%s505 + $0x3f4] sm:$0xf]
          %v4281 = vld [vmem:[%s505 + $0x3f8] sm:$0xf]
          %v4282 = vld [vmem:[%s505 + $0x3fc] sm:$0xf]
          %v4283 = vlaneseq
          %v4284 = vshrl.u32 %v4283, 7
          %v4285 = vsub.s32 0, %v4284
          %v4286 = vrot.slane %v623, %v4285
          %v4543 = vunpack.c.l.b16 %v4027
          %v4544 = vunpack.c.l.b16 %v4028
          %v4545 = vunpack.c.l.b16 %v4029
          %v4546 = vunpack.c.l.b16 %v4030
          %v4547 = vunpack.c.l.b16 %v4031
          %v4548 = vunpack.c.l.b16 %v4032
          %v4549 = vunpack.c.l.b16 %v4033
          %v4550 = vunpack.c.l.b16 %v4034
          %v4551 = vunpack.c.l.b16 %v4035
          %v4552 = vunpack.c.l.b16 %v4036
          %v4553 = vunpack.c.l.b16 %v4037
          %v4554 = vunpack.c.l.b16 %v4038
          %v4555 = vunpack.c.l.b16 %v4039
          %v4556 = vunpack.c.l.b16 %v4040
          %v4557 = vunpack.c.l.b16 %v4041
          %v4558 = vunpack.c.l.b16 %v4042
          %v4559 = vunpack.c.l.b16 %v4043
          %v4560 = vunpack.c.l.b16 %v4044
          %v4561 = vunpack.c.l.b16 %v4045
          %v4562 = vunpack.c.l.b16 %v4046
          %v4563 = vunpack.c.l.b16 %v4047
          %v4564 = vunpack.c.l.b16 %v4048
          %v4565 = vunpack.c.l.b16 %v4049
          %v4566 = vunpack.c.l.b16 %v4050
          %v4567 = vunpack.c.l.b16 %v4051
          %v4568 = vunpack.c.l.b16 %v4052
          %v4569 = vunpack.c.l.b16 %v4053
          %v4570 = vunpack.c.l.b16 %v4054
          %v4571 = vunpack.c.l.b16 %v4055
          %v4572 = vunpack.c.l.b16 %v4056
          %v4573 = vunpack.c.l.b16 %v4057
          %v4574 = vunpack.c.l.b16 %v4058
          %v4575 = vunpack.c.l.b16 %v4059
          %v4576 = vunpack.c.l.b16 %v4060
          %v4577 = vunpack.c.l.b16 %v4061
          %v4578 = vunpack.c.l.b16 %v4062
          %v4579 = vunpack.c.l.b16 %v4063
          %v4580 = vunpack.c.l.b16 %v4064
          %v4581 = vunpack.c.l.b16 %v4065
          %v4582 = vunpack.c.l.b16 %v4066
          %v4583 = vunpack.c.l.b16 %v4067
          %v4584 = vunpack.c.l.b16 %v4068
          %v4585 = vunpack.c.l.b16 %v4069
          %v4586 = vunpack.c.l.b16 %v4070
          %v4587 = vunpack.c.l.b16 %v4071
          %v4588 = vunpack.c.l.b16 %v4072
          %v4589 = vunpack.c.l.b16 %v4073
          %v4590 = vunpack.c.l.b16 %v4074
          %v4591 = vunpack.c.l.b16 %v4075
          %v4592 = vunpack.c.l.b16 %v4076
          %v4593 = vunpack.c.l.b16 %v4077
          %v4594 = vunpack.c.l.b16 %v4078
          %v4595 = vunpack.c.l.b16 %v4079
          %v4596 = vunpack.c.l.b16 %v4080
          %v4597 = vunpack.c.l.b16 %v4081
          %v4598 = vunpack.c.l.b16 %v4082
          %v4599 = vunpack.c.l.b16 %v4083
          %v4600 = vunpack.c.l.b16 %v4084
          %v4601 = vunpack.c.l.b16 %v4085
          %v4602 = vunpack.c.l.b16 %v4086
          %v4603 = vunpack.c.l.b16 %v4087
          %v4604 = vunpack.c.l.b16 %v4088
          %v4605 = vunpack.c.l.b16 %v4089
          %v4606 = vunpack.c.l.b16 %v4090
          %v4607 = vunpack.c.l.b16 %v4091
          %v4608 = vunpack.c.l.b16 %v4092
          %v4609 = vunpack.c.l.b16 %v4093
          %v4610 = vunpack.c.l.b16 %v4094
          %v4611 = vunpack.c.l.b16 %v4095
          %v4612 = vunpack.c.l.b16 %v4096
          %v4613 = vunpack.c.l.b16 %v4097
          %v4614 = vunpack.c.l.b16 %v4098
          %v4615 = vunpack.c.l.b16 %v4099
          %v4616 = vunpack.c.l.b16 %v4100
          %v4617 = vunpack.c.l.b16 %v4101
          %v4618 = vunpack.c.l.b16 %v4102
          %v4619 = vunpack.c.l.b16 %v4103
          %v4620 = vunpack.c.l.b16 %v4104
          %v4621 = vunpack.c.l.b16 %v4105
          %v4622 = vunpack.c.l.b16 %v4106
          %v4623 = vunpack.c.l.b16 %v4107
          %v4624 = vunpack.c.l.b16 %v4108
          %v4625 = vunpack.c.l.b16 %v4109
          %v4626 = vunpack.c.l.b16 %v4110
          %v4627 = vunpack.c.l.b16 %v4111
          %v4628 = vunpack.c.l.b16 %v4112
          %v4629 = vunpack.c.l.b16 %v4113
          %v4630 = vunpack.c.l.b16 %v4114
          %v4631 = vunpack.c.l.b16 %v4115
          %v4632 = vunpack.c.l.b16 %v4116
          %v4633 = vunpack.c.l.b16 %v4117
          %v4634 = vunpack.c.l.b16 %v4118
          %v4635 = vunpack.c.l.b16 %v4119
          %v4636 = vunpack.c.l.b16 %v4120
          %v4637 = vunpack.c.l.b16 %v4121
          %v4638 = vunpack.c.l.b16 %v4122
          %v4639 = vunpack.c.l.b16 %v4123
          %v4640 = vunpack.c.l.b16 %v4124
          %v4641 = vunpack.c.l.b16 %v4125
          %v4642 = vunpack.c.l.b16 %v4126
          %v4643 = vunpack.c.l.b16 %v4127
          %v4644 = vunpack.c.l.b16 %v4128
          %v4645 = vunpack.c.l.b16 %v4129
          %v4646 = vunpack.c.l.b16 %v4130
          %v4647 = vunpack.c.l.b16 %v4131
          %v4648 = vunpack.c.l.b16 %v4132
          %v4649 = vunpack.c.l.b16 %v4133
          %v4650 = vunpack.c.l.b16 %v4134
          %v4651 = vunpack.c.l.b16 %v4135
          %v4652 = vunpack.c.l.b16 %v4136
          %v4653 = vunpack.c.l.b16 %v4137
          %v4654 = vunpack.c.l.b16 %v4138
          %v4655 = vunpack.c.l.b16 %v4139
          %v4656 = vunpack.c.l.b16 %v4140
          %v4657 = vunpack.c.l.b16 %v4141
          %v4658 = vunpack.c.l.b16 %v4142
          %v4659 = vunpack.c.l.b16 %v4143
          %v4660 = vunpack.c.l.b16 %v4144
          %v4661 = vunpack.c.l.b16 %v4145
          %v4662 = vunpack.c.l.b16 %v4146
          %v4663 = vunpack.c.l.b16 %v4147
          %v4664 = vunpack.c.l.b16 %v4148
          %v4665 = vunpack.c.l.b16 %v4149
          %v4666 = vunpack.c.l.b16 %v4150
          %v4667 = vunpack.c.l.b16 %v4151
          %v4668 = vunpack.c.l.b16 %v4152
          %v4669 = vunpack.c.l.b16 %v4153
          %v4670 = vunpack.c.l.b16 %v4154
          %v4671 = vunpack.c.l.b16 %v4155
          %v4672 = vunpack.c.l.b16 %v4156
          %v4673 = vunpack.c.l.b16 %v4157
          %v4674 = vunpack.c.l.b16 %v4158
          %v4675 = vunpack.c.l.b16 %v4159
          %v4676 = vunpack.c.l.b16 %v4160
          %v4677 = vunpack.c.l.b16 %v4161
          %v4678 = vunpack.c.l.b16 %v4162
          %v4679 = vunpack.c.l.b16 %v4163
          %v4680 = vunpack.c.l.b16 %v4164
          %v4681 = vunpack.c.l.b16 %v4165
          %v4682 = vunpack.c.l.b16 %v4166
          %v4683 = vunpack.c.l.b16 %v4167
          %v4684 = vunpack.c.l.b16 %v4168
          %v4685 = vunpack.c.l.b16 %v4169
          %v4686 = vunpack.c.l.b16 %v4170
          %v4687 = vunpack.c.l.b16 %v4171
          %v4688 = vunpack.c.l.b16 %v4172
          %v4689 = vunpack.c.l.b16 %v4173
          %v4690 = vunpack.c.l.b16 %v4174
          %v4691 = vunpack.c.l.b16 %v4175
          %v4692 = vunpack.c.l.b16 %v4176
          %v4693 = vunpack.c.l.b16 %v4177
          %v4694 = vunpack.c.l.b16 %v4178
          %v4695 = vunpack.c.l.b16 %v4179
          %v4696 = vunpack.c.l.b16 %v4180
          %v4697 = vunpack.c.l.b16 %v4181
          %v4698 = vunpack.c.l.b16 %v4182
          %v4699 = vunpack.c.l.b16 %v4183
          %v4700 = vunpack.c.l.b16 %v4184
          %v4701 = vunpack.c.l.b16 %v4185
          %v4702 = vunpack.c.l.b16 %v4186
          %v4703 = vunpack.c.l.b16 %v4187
          %v4704 = vunpack.c.l.b16 %v4188
          %v4705 = vunpack.c.l.b16 %v4189
          %v4706 = vunpack.c.l.b16 %v4190
          %v4707 = vunpack.c.l.b16 %v4191
          %v4708 = vunpack.c.l.b16 %v4192
          %v4709 = vunpack.c.l.b16 %v4193
          %v4710 = vunpack.c.l.b16 %v4194
          %v4711 = vunpack.c.l.b16 %v4195
          %v4712 = vunpack.c.l.b16 %v4196
          %v4713 = vunpack.c.l.b16 %v4197
          %v4714 = vunpack.c.l.b16 %v4198
          %v4715 = vunpack.c.l.b16 %v4199
          %v4716 = vunpack.c.l.b16 %v4200
          %v4717 = vunpack.c.l.b16 %v4201
          %v4718 = vunpack.c.l.b16 %v4202
          %v4719 = vunpack.c.l.b16 %v4203
          %v4720 = vunpack.c.l.b16 %v4204
          %v4721 = vunpack.c.l.b16 %v4205
          %v4722 = vunpack.c.l.b16 %v4206
          %v4723 = vunpack.c.l.b16 %v4207
          %v4724 = vunpack.c.l.b16 %v4208
          %v4725 = vunpack.c.l.b16 %v4209
          %v4726 = vunpack.c.l.b16 %v4210
          %v4727 = vunpack.c.l.b16 %v4211
          %v4728 = vunpack.c.l.b16 %v4212
          %v4729 = vunpack.c.l.b16 %v4213
          %v4730 = vunpack.c.l.b16 %v4214
          %v4731 = vunpack.c.l.b16 %v4215
          %v4732 = vunpack.c.l.b16 %v4216
          %v4733 = vunpack.c.l.b16 %v4217
          %v4734 = vunpack.c.l.b16 %v4218
          %v4735 = vunpack.c.l.b16 %v4219
          %v4736 = vunpack.c.l.b16 %v4220
          %v4737 = vunpack.c.l.b16 %v4221
          %v4738 = vunpack.c.l.b16 %v4222
          %v4739 = vunpack.c.l.b16 %v4223
          %v4740 = vunpack.c.l.b16 %v4224
          %v4741 = vunpack.c.l.b16 %v4225
          %v4742 = vunpack.c.l.b16 %v4226
          %v4743 = vunpack.c.l.b16 %v4227
          %v4744 = vunpack.c.l.b16 %v4228
          %v4745 = vunpack.c.l.b16 %v4229
          %v4746 = vunpack.c.l.b16 %v4230
          %v4747 = vunpack.c.l.b16 %v4231
          %v4748 = vunpack.c.l.b16 %v4232
          %v4749 = vunpack.c.l.b16 %v4233
          %v4750 = vunpack.c.l.b16 %v4234
          %v4751 = vunpack.c.l.b16 %v4235
          %v4752 = vunpack.c.l.b16 %v4236
          %v4753 = vunpack.c.l.b16 %v4237
          %v4754 = vunpack.c.l.b16 %v4238
          %v4755 = vunpack.c.l.b16 %v4239
          %v4756 = vunpack.c.l.b16 %v4240
          %v4757 = vunpack.c.l.b16 %v4241
          %v4758 = vunpack.c.l.b16 %v4242
          %v4759 = vunpack.c.l.b16 %v4243
          %v4760 = vunpack.c.l.b16 %v4244
          %v4761 = vunpack.c.l.b16 %v4245
          %v4762 = vunpack.c.l.b16 %v4246
          %v4763 = vunpack.c.l.b16 %v4247
          %v4764 = vunpack.c.l.b16 %v4248
          %v4765 = vunpack.c.l.b16 %v4249
          %v4766 = vunpack.c.l.b16 %v4250
          %v4767 = vunpack.c.l.b16 %v4251
          %v4768 = vunpack.c.l.b16 %v4252
          %v4769 = vunpack.c.l.b16 %v4253
          %v4770 = vunpack.c.l.b16 %v4254
          %v4771 = vunpack.c.l.b16 %v4255
          %v4772 = vunpack.c.l.b16 %v4256
          %v4773 = vunpack.c.l.b16 %v4257
          %v4774 = vunpack.c.l.b16 %v4258
          %v4775 = vunpack.c.l.b16 %v4259
          %v4776 = vunpack.c.l.b16 %v4260
          %v4777 = vunpack.c.l.b16 %v4261
          %v4778 = vunpack.c.l.b16 %v4262
          %v4779 = vunpack.c.l.b16 %v4263
          %v4780 = vunpack.c.l.b16 %v4264
          %v4781 = vunpack.c.l.b16 %v4265
          %v4782 = vunpack.c.l.b16 %v4266
          %v4783 = vunpack.c.l.b16 %v4267
          %v4784 = vunpack.c.l.b16 %v4268
          %v4785 = vunpack.c.l.b16 %v4269
          %v4786 = vunpack.c.l.b16 %v4270
          %v4787 = vunpack.c.l.b16 %v4271
          %v4788 = vunpack.c.l.b16 %v4272
          %v4789 = vunpack.c.l.b16 %v4273
          %v4790 = vunpack.c.l.b16 %v4274
          %v4791 = vunpack.c.l.b16 %v4275
          %v4792 = vunpack.c.l.b16 %v4276
          %v4793 = vunpack.c.l.b16 %v4277
          %v4794 = vunpack.c.l.b16 %v4278
          %v4795 = vunpack.c.l.b16 %v4279
          %v4796 = vunpack.c.l.b16 %v4280
          %v4797 = vunpack.c.l.b16 %v4281
          %v4798 = vunpack.c.l.b16 %v4282
          %v4799 = vpack.c.b16 %v4544, %v4543
          %v4800 = vpack.c.b16 %v4546, %v4545
          %v4801 = vpack.c.b16 %v4548, %v4547
          %v4802 = vpack.c.b16 %v4550, %v4549
          %v4803 = vpack.c.b16 %v4552, %v4551
          %v4804 = vpack.c.b16 %v4554, %v4553
          %v4805 = vpack.c.b16 %v4556, %v4555
          %v4806 = vpack.c.b16 %v4558, %v4557
          %v4807 = vpack.c.b16 %v4560, %v4559
          %v4808 = vpack.c.b16 %v4562, %v4561
          %v4809 = vpack.c.b16 %v4564, %v4563
          %v4810 = vpack.c.b16 %v4566, %v4565
          %v4811 = vpack.c.b16 %v4568, %v4567
          %v4812 = vpack.c.b16 %v4570, %v4569
          %v4813 = vpack.c.b16 %v4572, %v4571
          %v4814 = vpack.c.b16 %v4574, %v4573
          %v4815 = vpack.c.b16 %v4576, %v4575
          %v4816 = vpack.c.b16 %v4578, %v4577
          %v4817 = vpack.c.b16 %v4580, %v4579
          %v4818 = vpack.c.b16 %v4582, %v4581
          %v4819 = vpack.c.b16 %v4584, %v4583
          %v4820 = vpack.c.b16 %v4586, %v4585
          %v4821 = vpack.c.b16 %v4588, %v4587
          %v4822 = vpack.c.b16 %v4590, %v4589
          %v4823 = vpack.c.b16 %v4592, %v4591
          %v4824 = vpack.c.b16 %v4594, %v4593
          %v4825 = vpack.c.b16 %v4596, %v4595
          %v4826 = vpack.c.b16 %v4598, %v4597
          %v4827 = vpack.c.b16 %v4600, %v4599
          %v4828 = vpack.c.b16 %v4602, %v4601
          %v4829 = vpack.c.b16 %v4604, %v4603
          %v4830 = vpack.c.b16 %v4606, %v4605
          %v4831 = vpack.c.b16 %v4608, %v4607
          %v4832 = vpack.c.b16 %v4610, %v4609
          %v4833 = vpack.c.b16 %v4612, %v4611
          %v4834 = vpack.c.b16 %v4614, %v4613
          %v4835 = vpack.c.b16 %v4616, %v4615
          %v4836 = vpack.c.b16 %v4618, %v4617
          %v4837 = vpack.c.b16 %v4620, %v4619
          %v4838 = vpack.c.b16 %v4622, %v4621
          %v4839 = vpack.c.b16 %v4624, %v4623
          %v4840 = vpack.c.b16 %v4626, %v4625
          %v4841 = vpack.c.b16 %v4628, %v4627
          %v4842 = vpack.c.b16 %v4630, %v4629
          %v4843 = vpack.c.b16 %v4632, %v4631
          %v4844 = vpack.c.b16 %v4634, %v4633
          %v4845 = vpack.c.b16 %v4636, %v4635
          %v4846 = vpack.c.b16 %v4638, %v4637
          %v4847 = vpack.c.b16 %v4640, %v4639
          %v4848 = vpack.c.b16 %v4642, %v4641
          %v4849 = vpack.c.b16 %v4644, %v4643
          %v4850 = vpack.c.b16 %v4646, %v4645
          %v4851 = vpack.c.b16 %v4648, %v4647
          %v4852 = vpack.c.b16 %v4650, %v4649
          %v4853 = vpack.c.b16 %v4652, %v4651
          %v4854 = vpack.c.b16 %v4654, %v4653
          %v4855 = vpack.c.b16 %v4656, %v4655
          %v4856 = vpack.c.b16 %v4658, %v4657
          %v4857 = vpack.c.b16 %v4660, %v4659
          %v4858 = vpack.c.b16 %v4662, %v4661
          %v4859 = vpack.c.b16 %v4664, %v4663
          %v4860 = vpack.c.b16 %v4666, %v4665
          %v4861 = vpack.c.b16 %v4668, %v4667
          %v4862 = vpack.c.b16 %v4670, %v4669
          %v4863 = vpack.c.b16 %v4672, %v4671
          %v4864 = vpack.c.b16 %v4674, %v4673
          %v4865 = vpack.c.b16 %v4676, %v4675
          %v4866 = vpack.c.b16 %v4678, %v4677
          %v4867 = vpack.c.b16 %v4680, %v4679
          %v4868 = vpack.c.b16 %v4682, %v4681
          %v4869 = vpack.c.b16 %v4684, %v4683
          %v4870 = vpack.c.b16 %v4686, %v4685
          %v4871 = vpack.c.b16 %v4688, %v4687
          %v4872 = vpack.c.b16 %v4690, %v4689
          %v4873 = vpack.c.b16 %v4692, %v4691
          %v4874 = vpack.c.b16 %v4694, %v4693
          %v4875 = vpack.c.b16 %v4696, %v4695
          %v4876 = vpack.c.b16 %v4698, %v4697
          %v4877 = vpack.c.b16 %v4700, %v4699
          %v4878 = vpack.c.b16 %v4702, %v4701
          %v4879 = vpack.c.b16 %v4704, %v4703
          %v4880 = vpack.c.b16 %v4706, %v4705
          %v4881 = vpack.c.b16 %v4708, %v4707
          %v4882 = vpack.c.b16 %v4710, %v4709
          %v4883 = vpack.c.b16 %v4712, %v4711
          %v4884 = vpack.c.b16 %v4714, %v4713
          %v4885 = vpack.c.b16 %v4716, %v4715
          %v4886 = vpack.c.b16 %v4718, %v4717
          %v4887 = vpack.c.b16 %v4720, %v4719
          %v4888 = vpack.c.b16 %v4722, %v4721
          %v4889 = vpack.c.b16 %v4724, %v4723
          %v4890 = vpack.c.b16 %v4726, %v4725
          %v4891 = vpack.c.b16 %v4728, %v4727
          %v4892 = vpack.c.b16 %v4730, %v4729
          %v4893 = vpack.c.b16 %v4732, %v4731
          %v4894 = vpack.c.b16 %v4734, %v4733
          %v4895 = vpack.c.b16 %v4736, %v4735
          %v4896 = vpack.c.b16 %v4738, %v4737
          %v4897 = vpack.c.b16 %v4740, %v4739
          %v4898 = vpack.c.b16 %v4742, %v4741
          %v4899 = vpack.c.b16 %v4744, %v4743
          %v4900 = vpack.c.b16 %v4746, %v4745
          %v4901 = vpack.c.b16 %v4748, %v4747
          %v4902 = vpack.c.b16 %v4750, %v4749
          %v4903 = vpack.c.b16 %v4752, %v4751
          %v4904 = vpack.c.b16 %v4754, %v4753
          %v4905 = vpack.c.b16 %v4756, %v4755
          %v4906 = vpack.c.b16 %v4758, %v4757
          %v4907 = vpack.c.b16 %v4760, %v4759
          %v4908 = vpack.c.b16 %v4762, %v4761
          %v4909 = vpack.c.b16 %v4764, %v4763
          %v4910 = vpack.c.b16 %v4766, %v4765
          %v4911 = vpack.c.b16 %v4768, %v4767
          %v4912 = vpack.c.b16 %v4770, %v4769
          %v4913 = vpack.c.b16 %v4772, %v4771
          %v4914 = vpack.c.b16 %v4774, %v4773
          %v4915 = vpack.c.b16 %v4776, %v4775
          %v4916 = vpack.c.b16 %v4778, %v4777
          %v4917 = vpack.c.b16 %v4780, %v4779
          %v4918 = vpack.c.b16 %v4782, %v4781
          %v4919 = vpack.c.b16 %v4784, %v4783
          %v4920 = vpack.c.b16 %v4786, %v4785
          %v4921 = vpack.c.b16 %v4788, %v4787
          %v4922 = vpack.c.b16 %v4790, %v4789
          %v4923 = vpack.c.b16 %v4792, %v4791
          %v4924 = vpack.c.b16 %v4794, %v4793
          %v4925 = vpack.c.b16 %v4796, %v4795
          %v4926 = vpack.c.b16 %v4798, %v4797
          %5055 = vmatprep.subr.bf16.mxu0 0
          %5056 = vmatpush1.bf16.msra.mxu0 %v4799
          %5057 = vmatprep.subr.bf16.mxu0 0
          %5058 = vmatpush1.bf16.msra.mxu0 %v4800
          %5059 = vmatprep.subr.bf16.mxu0 0
          %5060 = vmatpush1.bf16.msra.mxu0 %v4801
          %5061 = vmatprep.subr.bf16.mxu0 0
          %5062 = vmatpush1.bf16.msra.mxu0 %v4802
          %5063 = vmatprep.subr.bf16.mxu0 0
          %5064 = vmatpush1.bf16.msra.mxu0 %v4803
          %5065 = vmatprep.subr.bf16.mxu0 0
          %5066 = vmatpush1.bf16.msra.mxu0 %v4804
          %5067 = vmatprep.subr.bf16.mxu0 0
          %5068 = vmatpush1.bf16.msra.mxu0 %v4805
          %5069 = vmatprep.subr.bf16.mxu0 0
          %5070 = vmatpush1.bf16.msra.mxu0 %v4806
          %5071 = vmatprep.subr.bf16.mxu0 0
          %5072 = vmatpush1.bf16.msra.mxu0 %v4807
          %5073 = vmatprep.subr.bf16.mxu0 0
          %5074 = vmatpush1.bf16.msra.mxu0 %v4808
          %5075 = vmatprep.subr.bf16.mxu0 0
          %5076 = vmatpush1.bf16.msra.mxu0 %v4809
          %5077 = vmatprep.subr.bf16.mxu0 0
          %5078 = vmatpush1.bf16.msra.mxu0 %v4810
          %5079 = vmatprep.subr.bf16.mxu0 0
          %5080 = vmatpush1.bf16.msra.mxu0 %v4811
          %5081 = vmatprep.subr.bf16.mxu0 0
          %5082 = vmatpush1.bf16.msra.mxu0 %v4812
          %5083 = vmatprep.subr.bf16.mxu0 0
          %5084 = vmatpush1.bf16.msra.mxu0 %v4813
          %5085 = vmatprep.subr.bf16.mxu0 0
          %5086 = vmatpush1.bf16.msra.mxu0 %v4814
          %5087 = vmatprep.mubr.bf16.mxu0 %v4012
          %5088 = vmatmul.mubr.bf16.gmra.mrb[0].mxu0 %v4011
          %v5089 = vpop.f32.mrb[0].mxu0
          %v5090 = vadd.f32 %v4286, %v5089
          %v5091 = vpop.f32.mrb[0].mxu0
          %v5092 = vpop.f32.mrb[0].mxu0
          %v5093 = vpop.f32.mrb[0].mxu0
          %5094 = vdwg.mxu0
          %5095 = vmatprep.subr.bf16.mxu0 0
          %5096 = vmatpush1.bf16.msra.mxu0 %v4815
          %5097 = vmatprep.subr.bf16.mxu0 0
          %5098 = vmatpush1.bf16.msra.mxu0 %v4816
          %5099 = vmatprep.subr.bf16.mxu0 0
          %5100 = vmatpush1.bf16.msra.mxu0 %v4817
          %5101 = vmatprep.subr.bf16.mxu0 0
          %5102 = vmatpush1.bf16.msra.mxu0 %v4818
          %5103 = vmatprep.subr.bf16.mxu0 0
          %5104 = vmatpush1.bf16.msra.mxu0 %v4819
          %5105 = vmatprep.subr.bf16.mxu0 0
          %5106 = vmatpush1.bf16.msra.mxu0 %v4820
          %5107 = vmatprep.subr.bf16.mxu0 0
          %5108 = vmatpush1.bf16.msra.mxu0 %v4821
          %5109 = vmatprep.subr.bf16.mxu0 0
          %5110 = vmatpush1.bf16.msra.mxu0 %v4822
          %5111 = vmatprep.subr.bf16.mxu0 0
          %5112 = vmatpush1.bf16.msra.mxu0 %v4823
          %5113 = vmatprep.subr.bf16.mxu0 0
          %5114 = vmatpush1.bf16.msra.mxu0 %v4824
          %5115 = vmatprep.subr.bf16.mxu0 0
          %5116 = vmatpush1.bf16.msra.mxu0 %v4825
          %5117 = vmatprep.subr.bf16.mxu0 0
          %5118 = vmatpush1.bf16.msra.mxu0 %v4826
          %5119 = vmatprep.subr.bf16.mxu0 0
          %5120 = vmatpush1.bf16.msra.mxu0 %v4827
          %5121 = vmatprep.subr.bf16.mxu0 0
          %5122 = vmatpush1.bf16.msra.mxu0 %v4828
          %5123 = vmatprep.subr.bf16.mxu0 0
          %5124 = vmatpush1.bf16.msra.mxu0 %v4829
          %5125 = vmatprep.subr.bf16.mxu0 0
          %5126 = vmatpush1.bf16.msra.mxu0 %v4830
          %5127 = vmatprep.mubr.bf16.mxu0 %v4014
          %5128 = vmatmul.mubr.bf16.gmra.mrb[0].mxu0 %v4013
          %v5129 = vpop.f32.mrb[0].mxu0
          %v5130 = vadd.f32 %v5090, %v5129
          %v5131 = vpop.f32.mrb[0].mxu0
          %v5132 = vpop.f32.mrb[0].mxu0
          %v5133 = vpop.f32.mrb[0].mxu0
          %5134 = vdwg.mxu0
          %5135 = vmatprep.subr.bf16.mxu0 0
          %5136 = vmatpush1.bf16.msra.mxu0 %v4831
          %5137 = vmatprep.subr.bf16.mxu0 0
          %5138 = vmatpush1.bf16.msra.mxu0 %v4832
          %5139 = vmatprep.subr.bf16.mxu0 0
          %5140 = vmatpush1.bf16.msra.mxu0 %v4833
          %5141 = vmatprep.subr.bf16.mxu0 0
          %5142 = vmatpush1.bf16.msra.mxu0 %v4834
          %5143 = vmatprep.subr.bf16.mxu0 0
          %5144 = vmatpush1.bf16.msra.mxu0 %v4835
          %5145 = vmatprep.subr.bf16.mxu0 0
          %5146 = vmatpush1.bf16.msra.mxu0 %v4836
          %5147 = vmatprep.subr.bf16.mxu0 0
          %5148 = vmatpush1.bf16.msra.mxu0 %v4837
          %5149 = vmatprep.subr.bf16.mxu0 0
          %5150 = vmatpush1.bf16.msra.mxu0 %v4838
          %5151 = vmatprep.subr.bf16.mxu0 0
          %5152 = vmatpush1.bf16.msra.mxu0 %v4839
          %5153 = vmatprep.subr.bf16.mxu0 0
          %5154 = vmatpush1.bf16.msra.mxu0 %v4840
          %5155 = vmatprep.subr.bf16.mxu0 0
          %5156 = vmatpush1.bf16.msra.mxu0 %v4841
          %5157 = vmatprep.subr.bf16.mxu0 0
          %5158 = vmatpush1.bf16.msra.mxu0 %v4842
          %5159 = vmatprep.subr.bf16.mxu0 0
          %5160 = vmatpush1.bf16.msra.mxu0 %v4843
          %5161 = vmatprep.subr.bf16.mxu0 0
          %5162 = vmatpush1.bf16.msra.mxu0 %v4844
          %5163 = vmatprep.subr.bf16.mxu0 0
          %5164 = vmatpush1.bf16.msra.mxu0 %v4845
          %5165 = vmatprep.subr.bf16.mxu0 0
          %5166 = vmatpush1.bf16.msra.mxu0 %v4846
          %5167 = vmatprep.mubr.bf16.mxu0 %v4016
          %5168 = vmatmul.mubr.bf16.gmra.mrb[0].mxu0 %v4015
          %v5169 = vpop.f32.mrb[0].mxu0
          %v5170 = vadd.f32 %v5130, %v5169
          %v5171 = vpop.f32.mrb[0].mxu0
          %v5172 = vpop.f32.mrb[0].mxu0
          %v5173 = vpop.f32.mrb[0].mxu0
          %5174 = vdwg.mxu0
          %5175 = vmatprep.subr.bf16.mxu0 0
          %5176 = vmatpush1.bf16.msra.mxu0 %v4847
          %5177 = vmatprep.subr.bf16.mxu0 0
          %5178 = vmatpush1.bf16.msra.mxu0 %v4848
          %5179 = vmatprep.subr.bf16.mxu0 0
          %5180 = vmatpush1.bf16.msra.mxu0 %v4849
          %5181 = vmatprep.subr.bf16.mxu0 0
          %5182 = vmatpush1.bf16.msra.mxu0 %v4850
          %5183 = vmatprep.subr.bf16.mxu0 0
          %5184 = vmatpush1.bf16.msra.mxu0 %v4851
          %5185 = vmatprep.subr.bf16.mxu0 0
          %5186 = vmatpush1.bf16.msra.mxu0 %v4852
          %5187 = vmatprep.subr.bf16.mxu0 0
          %5188 = vmatpush1.bf16.msra.mxu0 %v4853
          %5189 = vmatprep.subr.bf16.mxu0 0
          %5190 = vmatpush1.bf16.msra.mxu0 %v4854
          %5191 = vmatprep.subr.bf16.mxu0 0
          %5192 = vmatpush1.bf16.msra.mxu0 %v4855
          %5193 = vmatprep.subr.bf16.mxu0 0
          %5194 = vmatpush1.bf16.msra.mxu0 %v4856
          %5195 = vmatprep.subr.bf16.mxu0 0
          %5196 = vmatpush1.bf16.msra.mxu0 %v4857
          %5197 = vmatprep.subr.bf16.mxu0 0
          %5198 = vmatpush1.bf16.msra.mxu0 %v4858
          %5199 = vmatprep.subr.bf16.mxu0 0
          %5200 = vmatpush1.bf16.msra.mxu0 %v4859
          %5201 = vmatprep.subr.bf16.mxu0 0
          %5202 = vmatpush1.bf16.msra.mxu0 %v4860
          %5203 = vmatprep.subr.bf16.mxu0 0
          %5204 = vmatpush1.bf16.msra.mxu0 %v4861
          %5205 = vmatprep.subr.bf16.mxu0 0
          %5206 = vmatpush1.bf16.msra.mxu0 %v4862
          %5207 = vmatprep.mubr.bf16.mxu0 %v4018
          %5208 = vmatmul.mubr.bf16.gmra.mrb[0].mxu0 %v4017
          %v5209 = vpop.f32.mrb[0].mxu0
          %v5210 = vadd.f32 %v5170, %v5209
          %v5211 = vpop.f32.mrb[0].mxu0
          %v5212 = vpop.f32.mrb[0].mxu0
          %v5213 = vpop.f32.mrb[0].mxu0
          %5214 = vdwg.mxu0
          %5215 = vmatprep.subr.bf16.mxu0 0
          %5216 = vmatpush1.bf16.msra.mxu0 %v4863
          %5217 = vmatprep.subr.bf16.mxu0 0
          %5218 = vmatpush1.bf16.msra.mxu0 %v4864
          %5219 = vmatprep.subr.bf16.mxu0 0
          %5220 = vmatpush1.bf16.msra.mxu0 %v4865
          %5221 = vmatprep.subr.bf16.mxu0 0
          %5222 = vmatpush1.bf16.msra.mxu0 %v4866
          %5223 = vmatprep.subr.bf16.mxu0 0
          %5224 = vmatpush1.bf16.msra.mxu0 %v4867
          %5225 = vmatprep.subr.bf16.mxu0 0
          %5226 = vmatpush1.bf16.msra.mxu0 %v4868
          %5227 = vmatprep.subr.bf16.mxu0 0
          %5228 = vmatpush1.bf16.msra.mxu0 %v4869
          %5229 = vmatprep.subr.bf16.mxu0 0
          %5230 = vmatpush1.bf16.msra.mxu0 %v4870
          %5231 = vmatprep.subr.bf16.mxu0 0
          %5232 = vmatpush1.bf16.msra.mxu0 %v4871
          %5233 = vmatprep.subr.bf16.mxu0 0
          %5234 = vmatpush1.bf16.msra.mxu0 %v4872
          %5235 = vmatprep.subr.bf16.mxu0 0
          %5236 = vmatpush1.bf16.msra.mxu0 %v4873
          %5237 = vmatprep.subr.bf16.mxu0 0
          %5238 = vmatpush1.bf16.msra.mxu0 %v4874
          %5239 = vmatprep.subr.bf16.mxu0 0
          %5240 = vmatpush1.bf16.msra.mxu0 %v4875
          %5241 = vmatprep.subr.bf16.mxu0 0
          %5242 = vmatpush1.bf16.msra.mxu0 %v4876
          %5243 = vmatprep.subr.bf16.mxu0 0
          %5244 = vmatpush1.bf16.msra.mxu0 %v4877
          %5245 = vmatprep.subr.bf16.mxu0 0
          %5246 = vmatpush1.bf16.msra.mxu0 %v4878
          %5247 = vmatprep.mubr.bf16.mxu0 %v4020
          %5248 = vmatmul.mubr.bf16.gmra.mrb[0].mxu0 %v4019
          %v5249 = vpop.f32.mrb[0].mxu0
          %v5250 = vadd.f32 %v5210, %v5249
          %v5251 = vpop.f32.mrb[0].mxu0
          %v5252 = vpop.f32.mrb[0].mxu0
          %v5253 = vpop.f32.mrb[0].mxu0
          %5254 = vdwg.mxu0
          %5255 = vmatprep.subr.bf16.mxu0 0
          %5256 = vmatpush1.bf16.msra.mxu0 %v4879
          %5257 = vmatprep.subr.bf16.mxu0 0
          %5258 = vmatpush1.bf16.msra.mxu0 %v4880
          %5259 = vmatprep.subr.bf16.mxu0 0
          %5260 = vmatpush1.bf16.msra.mxu0 %v4881
          %5261 = vmatprep.subr.bf16.mxu0 0
          %5262 = vmatpush1.bf16.msra.mxu0 %v4882
          %5263 = vmatprep.subr.bf16.mxu0 0
          %5264 = vmatpush1.bf16.msra.mxu0 %v4883
          %5265 = vmatprep.subr.bf16.mxu0 0
          %5266 = vmatpush1.bf16.msra.mxu0 %v4884
          %5267 = vmatprep.subr.bf16.mxu0 0
          %5268 = vmatpush1.bf16.msra.mxu0 %v4885
          %5269 = vmatprep.subr.bf16.mxu0 0
          %5270 = vmatpush1.bf16.msra.mxu0 %v4886
          %5271 = vmatprep.subr.bf16.mxu0 0
          %5272 = vmatpush1.bf16.msra.mxu0 %v4887
          %5273 = vmatprep.subr.bf16.mxu0 0
          %5274 = vmatpush1.bf16.msra.mxu0 %v4888
          %5275 = vmatprep.subr.bf16.mxu0 0
          %5276 = vmatpush1.bf16.msra.mxu0 %v4889
          %5277 = vmatprep.subr.bf16.mxu0 0
          %5278 = vmatpush1.bf16.msra.mxu0 %v4890
          %5279 = vmatprep.subr.bf16.mxu0 0
          %5280 = vmatpush1.bf16.msra.mxu0 %v4891
          %5281 = vmatprep.subr.bf16.mxu0 0
          %5282 = vmatpush1.bf16.msra.mxu0 %v4892
          %5283 = vmatprep.subr.bf16.mxu0 0
          %5284 = vmatpush1.bf16.msra.mxu0 %v4893
          %5285 = vmatprep.subr.bf16.mxu0 0
          %5286 = vmatpush1.bf16.msra.mxu0 %v4894
          %5287 = vmatprep.mubr.bf16.mxu0 %v4022
          %5288 = vmatmul.mubr.bf16.gmra.mrb[0].mxu0 %v4021
          %v5289 = vpop.f32.mrb[0].mxu0
          %v5290 = vadd.f32 %v5250, %v5289
          %v5291 = vpop.f32.mrb[0].mxu0
          %v5292 = vpop.f32.mrb[0].mxu0
          %v5293 = vpop.f32.mrb[0].mxu0
          %5294 = vdwg.mxu0
          %5295 = vmatprep.subr.bf16.mxu0 0
          %5296 = vmatpush1.bf16.msra.mxu0 %v4895
          %5297 = vmatprep.subr.bf16.mxu0 0
          %5298 = vmatpush1.bf16.msra.mxu0 %v4896
          %5299 = vmatprep.subr.bf16.mxu0 0
          %5300 = vmatpush1.bf16.msra.mxu0 %v4897
          %5301 = vmatprep.subr.bf16.mxu0 0
          %5302 = vmatpush1.bf16.msra.mxu0 %v4898
          %5303 = vmatprep.subr.bf16.mxu0 0
          %5304 = vmatpush1.bf16.msra.mxu0 %v4899
          %5305 = vmatprep.subr.bf16.mxu0 0
          %5306 = vmatpush1.bf16.msra.mxu0 %v4900
          %5307 = vmatprep.subr.bf16.mxu0 0
          %5308 = vmatpush1.bf16.msra.mxu0 %v4901
          %5309 = vmatprep.subr.bf16.mxu0 0
          %5310 = vmatpush1.bf16.msra.mxu0 %v4902
          %5311 = vmatprep.subr.bf16.mxu0 0
          %5312 = vmatpush1.bf16.msra.mxu0 %v4903
          %5313 = vmatprep.subr.bf16.mxu0 0
          %5314 = vmatpush1.bf16.msra.mxu0 %v4904
          %5315 = vmatprep.subr.bf16.mxu0 0
          %5316 = vmatpush1.bf16.msra.mxu0 %v4905
          %5317 = vmatprep.subr.bf16.mxu0 0
          %5318 = vmatpush1.bf16.msra.mxu0 %v4906
          %5319 = vmatprep.subr.bf16.mxu0 0
          %5320 = vmatpush1.bf16.msra.mxu0 %v4907
          %5321 = vmatprep.subr.bf16.mxu0 0
          %5322 = vmatpush1.bf16.msra.mxu0 %v4908
          %5323 = vmatprep.subr.bf16.mxu0 0
          %5324 = vmatpush1.bf16.msra.mxu0 %v4909
          %5325 = vmatprep.subr.bf16.mxu0 0
          %5326 = vmatpush1.bf16.msra.mxu0 %v4910
          %5327 = vmatprep.mubr.bf16.mxu0 %v4024
          %5328 = vmatmul.mubr.bf16.gmra.mrb[0].mxu0 %v4023
          %v5329 = vpop.f32.mrb[0].mxu0
          %v5330 = vadd.f32 %v5290, %v5329
          %v5331 = vpop.f32.mrb[0].mxu0
          %v5332 = vpop.f32.mrb[0].mxu0
          %v5333 = vpop.f32.mrb[0].mxu0
          %5334 = vdwg.mxu0
          %5335 = vmatprep.subr.bf16.mxu0 0
          %5336 = vmatpush1.bf16.msra.mxu0 %v4911
          %5337 = vmatprep.subr.bf16.mxu0 0
          %5338 = vmatpush1.bf16.msra.mxu0 %v4912
          %5339 = vmatprep.subr.bf16.mxu0 0
          %5340 = vmatpush1.bf16.msra.mxu0 %v4913
          %5341 = vmatprep.subr.bf16.mxu0 0
          %5342 = vmatpush1.bf16.msra.mxu0 %v4914
          %5343 = vmatprep.subr.bf16.mxu0 0
          %5344 = vmatpush1.bf16.msra.mxu0 %v4915
          %5345 = vmatprep.subr.bf16.mxu0 0
          %5346 = vmatpush1.bf16.msra.mxu0 %v4916
          %5347 = vmatprep.subr.bf16.mxu0 0
          %5348 = vmatpush1.bf16.msra.mxu0 %v4917
          %5349 = vmatprep.subr.bf16.mxu0 0
          %5350 = vmatpush1.bf16.msra.mxu0 %v4918
          %5351 = vmatprep.subr.bf16.mxu0 0
          %5352 = vmatpush1.bf16.msra.mxu0 %v4919
          %5353 = vmatprep.subr.bf16.mxu0 0
          %5354 = vmatpush1.bf16.msra.mxu0 %v4920
          %5355 = vmatprep.subr.bf16.mxu0 0
          %5356 = vmatpush1.bf16.msra.mxu0 %v4921
          %5357 = vmatprep.subr.bf16.mxu0 0
          %5358 = vmatpush1.bf16.msra.mxu0 %v4922
          %5359 = vmatprep.subr.bf16.mxu0 0
          %5360 = vmatpush1.bf16.msra.mxu0 %v4923
          %5361 = vmatprep.subr.bf16.mxu0 0
          %5362 = vmatpush1.bf16.msra.mxu0 %v4924
          %5363 = vmatprep.subr.bf16.mxu0 0
          %5364 = vmatpush1.bf16.msra.mxu0 %v4925
          %5365 = vmatprep.subr.bf16.mxu0 0
          %5366 = vmatpush1.bf16.msra.mxu0 %v4926
          %5367 = vmatprep.mubr.bf16.mxu0 %v4026
          %5368 = vmatmul.mubr.bf16.gmra.mrb[0].mxu0 %v4025
          %v5369 = vpop.f32.mrb[0].mxu0
          %v5370 = vadd.f32 %v5330, %v5369
          %v5371 = vpop.f32.mrb[0].mxu0
          %v5372 = vpop.f32.mrb[0].mxu0
          %v5373 = vpop.f32.mrb[0].mxu0
          %5374 = vdwg.mxu0
          %v5375 = vadd.f32 %v3384, %v5370
          %vm5376 = vcmask 254976
          %v5377 = vsel %vm5376, %v5375, 0.0
          %5378 = vadd.xlane.f32.xlu0 %v5377
          %v5379 = vpop.xlane.xlu0 %5378
          %v5380 = vmul.f32 %v5379, %v1194
          %v5381 = vsub.f32 %v5375, %v5380
          %v5382 = vmul.f32 %v5381, %v5381
          %v5383 = vsel %vm5376, %v5382, 0.0
          %5384 = vadd.xlane.f32.xlu0 %v5383
          %v5385 = vpop.xlane.xlu0 %5384
          %v5386 = vmul.f32 %v5385, %v1194
          %v5387 = vadd.f32 %v5386, 1e-05
          %v5388 = vrsqrt.pop %v5387
          %v5389 = vmul.f32 %v5381, %v5388
          %v5390 = vlaneseq
          %v5391 = vshrl.u32 %v5390, 7
          %v5392 = vsub.s32 0, %v5391
          %v5393 = vrot.slane %v624, %v5392
          %v5394 = vmul.f32 %v5389, %v5393
          %v5395 = vlaneseq
          %v5396 = vshrl.u32 %v5395, 7
          %v5397 = vsub.s32 0, %v5396
          %v5398 = vrot.slane %v625, %v5397
          %v5399 = vadd.f32 %v5394, %v5398
          %v5400 = vpack.c.bf16 %v5399, %v5399
          %v5401 = vld [vmem:[%s11] sm:$0xf]
          %v5402 = vld [vmem:[%s11 + $0x4] sm:$0xf]
          %v5403 = vld [vmem:[%s11 + $0x8] sm:$0xf]
          %v5404 = vld [vmem:[%s11 + $0xc] sm:$0xf]
          %v5405 = vld [vmem:[%s12] sm:$0x1]
          %v5407 = vlaneseq
          %v5408 = vshrl.u32 %v5407, 7
          %v5409 = vsub.s32 0, %v5408
          %v5410 = vrot.slane %v5405, %v5409
          %v5416 = vunpack.c.l.b16 %v5401
          %v5417 = vunpack.c.l.b16 %v5402
          %v5418 = vunpack.c.l.b16 %v5403
          %v5419 = vunpack.c.l.b16 %v5404
          %v5420 = vpack.c.b16 %v5417, %v5416
          %v5421 = vpack.c.b16 %v5419, %v5418
          %v5425 = vsel %vm732, %v5400, 0
          %5427 = vmatprep.subr.bf16.mxu0 0
          %5428 = vmatpush1.bf16.msra.mxu0 %v5420
          %5429 = vmatprep.subr.bf16.mxu0 0
          %5430 = vmatpush1.bf16.msra.mxu0 %v5421
          %5431 = vmatprep.subr.bf16.mxu0 0
          %5432 = vmatpush1.bf16.msra.mxu0 0
          %5433 = vmatprep.subr.bf16.mxu0 0
          %5434 = vmatpush1.bf16.msra.mxu0 0
          %5435 = vmatprep.subr.bf16.mxu0 0
          %5436 = vmatpush1.bf16.msra.mxu0 0
          %5437 = vmatprep.subr.bf16.mxu0 0
          %5438 = vmatpush1.bf16.msra.mxu0 0
          %5439 = vmatprep.subr.bf16.mxu0 0
          %5440 = vmatpush1.bf16.msra.mxu0 0
          %5441 = vmatprep.subr.bf16.mxu0 0
          %5442 = vmatpush1.bf16.msra.mxu0 0
          %5443 = vmatprep.subr.bf16.mxu0 0
          %5444 = vmatpush1.bf16.msra.mxu0 0
          %5445 = vmatprep.subr.bf16.mxu0 0
          %5446 = vmatpush1.bf16.msra.mxu0 0
          %5447 = vmatprep.subr.bf16.mxu0 0
          %5448 = vmatpush1.bf16.msra.mxu0 0
          %5449 = vmatprep.subr.bf16.mxu0 0
          %5450 = vmatpush1.bf16.msra.mxu0 0
          %5451 = vmatprep.subr.bf16.mxu0 0
          %5452 = vmatpush1.bf16.msra.mxu0 0
          %5453 = vmatprep.subr.bf16.mxu0 0
          %5454 = vmatpush1.bf16.msra.mxu0 0
          %5455 = vmatprep.subr.bf16.mxu0 0
          %5456 = vmatpush1.bf16.msra.mxu0 0
          %5457 = vmatprep.subr.bf16.mxu0 0
          %5458 = vmatpush1.bf16.msra.mxu0 0
          %5459 = vmatprep.mubr.bf16.mxu0 0
          %5460 = vmatmul.mubr.bf16.gmra.mrb[0].mxu0 %v5425
          %v5461 = vpop.f32.mrb[0].mxu0
          %v5462 = vadd.f32 %v5410, %v5461
          %v5463 = vpop.f32.mrb[0].mxu0
          %v5464 = vpop.f32.mrb[0].mxu0
          %v5465 = vpop.f32.mrb[0].mxu0
          %5466 = vdwg.mxu0
          %5467 = vst [vmem:[#allocation6] sm:$0x3] %v5462
        $region88: #{_lambda_.1} parent=71 // pred_fallthru
          _
        // Predicated region
        $region89: #{_lambda_.1} parent=71 // pred_check
          %p5468 = pneg %p376
        $region90: #{_lambda_.1} parent=71 // pred_check_branch
          %5470 = sbr.rel (%p5468) target = $region92
        $region91: #{_lambda_.1} parent=71 // pred_region
          %s5472 = ssub.s32 32, 32
          %5473 = vsyncadd [#allocation5], %s5472
          %s5474 = smul.addr %s32, 32
          %s5475 = scalar_lea.hbm %s13, %s5474
          %s5477 = sshll.u32 [#allocation6], 4
          %s5478 = int_to_ptr.vmem [resolvable:$true] %s5477
          %5480 = dma.vmem_to_hbm [thread:$0]  %s5478, 32, %s5475, [#allocation5]
        $region92: #{_lambda_.1} parent=71 // pred_fallthru
          _
        // Predicated region
        $region93: #{_lambda_.1} parent=71 // pred_check
          %p5481 = pneg %p376
        $region94: #{_lambda_.1} parent=71 // pred_check_branch
          %5483 = sbr.rel (%p5481) target = $region96
        $region95: #{_lambda_.1} parent=71 // pred_region
          %5484 = dma.done [#allocation5], 32
        $region96: #{_lambda_.1} parent=71 // pred_fallthru
          _
      $region72: #{_lambda_.1} parent=5 // pred_fallthru
        _
      %p5485 = scmp.le.s32.totalorder 2, %s23
      // Predicated region
      $region97: #{_lambda_.1} parent=5 // pred_check
        %p5486 = pneg %p5485
      $region98: #{_lambda_.1} parent=5 // pred_check_branch
        %5488 = sbr.rel (%p5486) target = $region100
      $region99: #{_lambda_.1} parent=5 // pred_region
        %s5489 = ssub.s32 %s23, 2
      $region100: #{_lambda_.1} parent=5 // pred_fallthru
        _
    $region6: #{_lambda_.1} parent=1 // loop_footer
      %s27 = sadd.s32 1, %s23
    $region7: #{_lambda_.1} parent=1 // loop_footer_branch
      %22 = sbr.rel target = $region3
    $region8: #{_lambda_.1} parent=1 // loop_exit
      _
    %5490 = vsyncpa [#allocation4], 1
    %s5491 = scalar_lea.sflag [#allocation4], 1
    %5492 = vsyncpa %s5491, 1
    %5493 = vsyncpa [#allocation5], 1
    %s5494 = scalar_lea.sflag [#allocation5], 1
    %5495 = vsyncpa %s5494, 1

</llo_original>
